<compile_context>
chip_gen: v5e
topology: v5e:2x2
jax: 0.10.0
libtpu: 0.0.40
codegen_flags: <defaults>
</compile_context>

<pallas_src>
import functools

import jax
import jax.numpy as jnp
import numpy as np
from jax.experimental import pallas as pl
from jax.experimental.pallas import tpu as pltpu


# --------------------------------------------------------------------------- helpers
def _round_up(x, m):
    return (x + m - 1) // m * m


def _pick_tile(n, max_tile, quantum):
    """Largest multiple of `quantum` that divides n and is <= max_tile (fallback: n)."""
    best = None
    t = quantum
    while t <= min(n, max_tile):
        if n % t == 0:
            best = t
        t += quantum
    return best if best is not None else n


def _pad_gate_cols(w, H, Hp):
    """w: (d, 3H) gate-major [r|z|n] -> (d, 3*Hp); each gate zero-padded to Hp columns."""
    d = w.shape[0]
    out = jnp.zeros((d, 3 * Hp), w.dtype)
    for g in range(3):
        out = out.at[:, g * Hp:g * Hp + H].set(w[:, g * H:(g + 1) * H])
    return out


def _pad_rows(w, d_pad):
    return jnp.zeros((d_pad,) + w.shape[1:], w.dtype).at[: w.shape[0]].set(w)


# --------------------------------------------------------------------------- fused GRU stack kernel
def gru_stack_kernel(x_ref, h0_ref, mask_ref, wih_ref, whh_ref, bih_ref, bhh_ref,
                     y_ref, act_scr, gi_scr, h_scr, *, T, Bp, Hp):
    """grid=(n_layers,). One grid step == one GRU layer over the whole (padded) sequence.

    act_scr holds the current layer's input in time-major flattened layout
    (row = t*Bp + b). It is overwritten in-place with the layer's output so it becomes
    the next layer's input without touching HBM.
    """
    layer = pl.program_id(0)
    last = pl.num_programs(0) - 1

    @pl.when(layer == 0)
    def _():
        act_scr[...] = x_ref[...]

    # (1) Non-recurrent input projection for ALL time steps: one big MXU matmul.
    #     (Zero-padded weight rows make any stale columns >= Hp of act_scr harmless.)
    gi_scr[...] = (jnp.dot(act_scr[...], wih_ref[0],
                           preferred_element_type=jnp.float32) + bih_ref[0])

    h_scr[...] = h0_ref[0]

    # (2) Sequential recurrence: only the small h @ W_hh^T matmul + gate math per step.
    def step(t, carry):
        row = pl.multiple_of(t * Bp, Bp)
        gi_t = gi_scr[pl.ds(row, Bp), :]                                   # (Bp, 3Hp)
        h = h_scr[...]                                                     # (Bp, Hp)
        gh = jnp.dot(h, whh_ref[0], preferred_element_type=jnp.float32) + bhh_ref[0]
        # Hp is a multiple of 128, so the gate slices are lane-aligned views.
        r = jax.nn.sigmoid(gi_t[:, 0:Hp] + gh[:, 0:Hp])
        z = jax.nn.sigmoid(gi_t[:, Hp:2 * Hp] + gh[:, Hp:2 * Hp])
        n = jnp.tanh(gi_t[:, 2 * Hp:3 * Hp] + r * gh[:, 2 * Hp:3 * Hp])
        h_new = (1.0 - z) * n + z * h
        h_scr[...] = h_new
        act_scr[pl.ds(row, Bp), pl.ds(0, Hp)] = h_new                      # feed next layer
        return carry

    jax.lax.fori_loop(0, T, step, 0, unroll=(T <= 16))

    # (3) Last layer: fold the pad_packed_sequence mask into the output write.
    #     NOTE: padded (trailing) steps are still processed by every layer; because padding
    #     trails the valid region this does not affect valid outputs, and the final hidden
    #     state (which would differ from PyTorch's packed GRU) is discarded, as in the module.
    @pl.when(layer == last)
    def _():
        y_ref[...] = act_scr[:, 0:Hp] * mask_ref[...]


def run_gru_stack(x_tm2d, h0_p, mask, wih_all, whh_all, bih_all, bhh_all, T, Bp, Hp):
    n_layers, Dmax, threeHp = wih_all.shape
    rows = T * Bp
    kernel = functools.partial(gru_stack_kernel, T=T, Bp=Bp, Hp=Hp)
    return pl.pallas_call(
        kernel,
        out_shape=jax.ShapeDtypeStruct((rows, Hp), jnp.float32),
        grid_spec=pltpu.PrefetchScalarGridSpec(
            num_scalar_prefetch=0,
            grid=(n_layers,),
            in_specs=[
                pl.BlockSpec((rows, Dmax), lambda l: (0, 0)),           # X, time-major flat
                pl.BlockSpec((1, Bp, Hp), lambda l: (l, 0, 0)),         # h0 of layer l
                pl.BlockSpec((rows, 1), lambda l: (0, 0)),              # valid-step mask
                pl.BlockSpec((1, Dmax, threeHp), lambda l: (l, 0, 0)),  # W_ih^T of layer l
                pl.BlockSpec((1, Hp, threeHp), lambda l: (l, 0, 0)),    # W_hh^T of layer l
                pl.BlockSpec((1, 1, threeHp), lambda l: (l, 0, 0)),     # b_ih
                pl.BlockSpec((1, 1, threeHp), lambda l: (l, 0, 0)),     # b_hh
            ],
            out_specs=pl.BlockSpec((rows, Hp), lambda l: (0, 0)),
            scratch_shapes=[
                pltpu.VMEM((rows, Dmax), jnp.float32),     # layer activation (carried)
                pltpu.VMEM((rows, threeHp), jnp.float32),  # per-layer input projection
                pltpu.VMEM((Bp, Hp), jnp.float32),         # hidden state
            ],
        ),
        compiler_params=pltpu.CompilerParams(dimension_semantics=("arbitrary",)),
    )(x_tm2d, h0_p, mask, wih_all, whh_all, bih_all, bhh_all)


# --------------------------------------------------------------------------- vocab projection kernel
def linear_kernel(x_ref, w_ref, b_ref, o_ref):
    o_ref[...] = (jnp.dot(x_ref[...], w_ref[...], preferred_element_type=jnp.float32)
                  + b_ref[...])


def run_linear(x2d, w_t, b):
    """(rows, K) @ (K, N) + b as a lane-dense tiled matmul; grid parallel over rows and N."""
    rows, K = x2d.shape
    _, N = w_t.shape
    tr = _pick_tile(rows, 256, 8)     # row tile (sublane multiple)
    tn = _pick_tile(N, 512, 128)      # V tile (lane multiple) -> bounded resident weight
    # TODO(synk): add a K ("arbitrary") grid axis + f32 accumulator scratch for very large H.
    return pl.pallas_call(
        linear_kernel,
        out_shape=jax.ShapeDtypeStruct((rows, N), jnp.float32),
        grid_spec=pltpu.PrefetchScalarGridSpec(
            num_scalar_prefetch=0,
            grid=(rows // tr, N // tn),
            in_specs=[
                pl.BlockSpec((tr, K), lambda i, j: (i, 0)),
                pl.BlockSpec((K, tn), lambda i, j: (0, j)),
                pl.BlockSpec((1, tn), lambda i, j: (0, j)),
            ],
            out_specs=pl.BlockSpec((tr, tn), lambda i, j: (i, j)),
        ),
        compiler_params=pltpu.CompilerParams(dimension_semantics=("parallel", "parallel")),
    )(x2d, w_t, b)


# --------------------------------------------------------------------------- params + forward
def init_decoder_params(key, input_size, n_layers, hidden_dim, output_size):
    """PyTorch-style uniform(-1/sqrt(H), 1/sqrt(H)) init; weights stored pre-transposed."""
    bound = 1.0 / np.sqrt(hidden_dim)
    params = {"layers": []}
    for layer in range(n_layers):
        d_in = input_size if layer == 0 else hidden_dim
        key, k1, k2, k3, k4 = jax.random.split(key, 5)
        params["layers"].append({
            "wih_t": jax.random.uniform(k1, (d_in, 3 * hidden_dim), jnp.float32, -bound, bound),
            "whh_t": jax.random.uniform(k2, (hidden_dim, 3 * hidden_dim), jnp.float32, -bound, bound),
            "bih": jax.random.uniform(k3, (1, 3 * hidden_dim), jnp.float32, -bound, bound),
            "bhh": jax.random.uniform(k4, (1, 3 * hidden_dim), jnp.float32, -bound, bound),
        })
    key, k5, k6 = jax.random.split(key, 3)
    params["w_out_t"] = jax.random.uniform(k5, (hidden_dim, output_size), jnp.float32, -bound, bound)
    params["b_out"] = jax.random.uniform(k6, (1, output_size), jnp.float32, -bound, bound)
    return params


@jax.jit
def decoder_forward(params, X, len_X, latent_hidden):
    """X: (B, T, input_size), len_X: (B,) int32, latent_hidden: (n_layers, B, H)."""
    B, T, Din = X.shape
    n_layers, _, H = latent_hidden.shape
    V = params["w_out_t"].shape[1]

    Bp = _round_up(B, 8)                        # sublane multiple
    Hp = _round_up(H, 128)                      # lane multiple -> aligned gate slices
    Dmax = max(_round_up(Din, 128), Hp)         # common padded "layer input" width
    Vp = _round_up(V, 128)                      # lane-dense projection output

    # ---- pad & stack the GRU weights (each r/z/n gate slot padded to Hp columns) ----
    wih_all, whh_all, bih_all, bhh_all = [], [], [], []
    for lp in params["layers"]:
        wih_all.append(_pad_rows(_pad_gate_cols(lp["wih_t"], H, Hp), Dmax))
        whh_all.append(_pad_rows(_pad_gate_cols(lp["whh_t"], H, Hp), Hp))
        bih_all.append(_pad_gate_cols(lp["bih"], H, Hp))
        bhh_all.append(_pad_gate_cols(lp["bhh"], H, Hp))
    wih_all = jnp.stack(wih_all)                # (L, Dmax, 3Hp)
    whh_all = jnp.stack(whh_all)                # (L, Hp, 3Hp)
    bih_all = jnp.stack(bih_all)                # (L, 1, 3Hp)
    bhh_all = jnp.stack(bhh_all)                # (L, 1, 3Hp)

    # ---- pad activations; time-major flattened rows (row = t*Bp + b) for the recurrence ----
    X_p = jnp.zeros((Bp, T, Dmax), jnp.float32).at[:B, :, :Din].set(X)
    x_tm2d = X_p.transpose(1, 0, 2).reshape(T * Bp, Dmax)
    h0_p = jnp.zeros((n_layers, Bp, Hp), jnp.float32).at[:, :B, :H].set(latent_hidden)

    # pad_packed_sequence mask over valid time steps (padded batch rows masked out too)
    len_p = jnp.zeros((Bp,), len_X.dtype).at[:B].set(len_X)
    mask = (jnp.arange(T)[:, None] < len_p[None, :]).astype(jnp.float32).reshape(T * Bp, 1)

    # ---- fused multi-layer GRU (single pallas_call) ----
    y_tm2d = run_gru_stack(x_tm2d, h0_p, mask, wih_all, whh_all, bih_all, bhh_all, T, Bp, Hp)

    # ---- vocab projection: lane-dense tiled matmul over batch-first rows ----
    y_bf2d = y_tm2d.reshape(T, Bp, Hp).transpose(1, 0, 2).reshape(Bp * T, Hp)
    w_out_p = jnp.zeros((Hp, Vp), jnp.float32).at[:H, :V].set(params["w_out_t"])
    b_out_p = jnp.zeros((1, Vp), jnp.float32).at[:, :V].set(params["b_out"])
    out = run_linear(y_bf2d, w_out_p, b_out_p)          # (Bp*T, Vp), batch-first rows

    return out.reshape(Bp, T, Vp)[:B, :, :V]


# --------------------------------------------------------------------------- pure-JAX reference
def reference_forward(params, X, len_X, latent_hidden):
    B, T, _ = X.shape
    H = latent_hidden.shape[-1]
    x = X
    for layer_idx, lp in enumerate(params["layers"]):
        h0 = latent_hidden[layer_idx]

        def step(h, xt, lp=lp):
            gi = xt @ lp["wih_t"] + lp["bih"]
            gh = h @ lp["whh_t"] + lp["bhh"]
            r = jax.nn.sigmoid(gi[:, :H] + gh[:, :H])
            z = jax.nn.sigmoid(gi[:, H:2 * H] + gh[:, H:2 * H])
            n = jnp.tanh(gi[:, 2 * H:] + r * gh[:, 2 * H:])
            h_new = (1.0 - z) * n + z * h
            return h_new, h_new

        _, ys = jax.lax.scan(step, h0, jnp.transpose(x, (1, 0, 2)))
        x = jnp.transpose(ys, (1, 0, 2))
    t_idx = jnp.arange(T)[None, :, None]
    x = jnp.where(t_idx < len_X[:, None, None], x, 0.0)   # pad_packed_sequence zeros
    return x @ params["w_out_t"] + params["b_out"]


if __name__ == "__main__":
    B, T = 2, 8
    input_size, n_layers, hidden_dim, output_size = 16, 2, 32, 24

    key = jax.random.PRNGKey(0)
    kp, kx, kh = jax.random.split(key, 3)

    params = init_decoder_params(kp, input_size, n_layers, hidden_dim, output_size)
    X = jax.random.normal(kx, (B, T, input_size), jnp.float32)
    len_X = jnp.array([T, T - 3], dtype=jnp.int32)
    latent_hidden = jax.random.normal(kh, (n_layers, B, hidden_dim), jnp.float32)

    out = decoder_forward(params, X, len_X, latent_hidden)
    out = jax.block_until_ready(out)

    ref = reference_forward(params, X, len_X, latent_hidden)
    np.testing.assert_allclose(np.asarray(out), np.asarray(ref), rtol=1e-5, atol=1e-5)
    assert out.shape == (B, T, output_size)

    print("KERNEL_OK")
</pallas_src>

<mosaic_0001>
module attributes {stable_mosaic.version = 11 : i64} {
  func.func @gru_stack_kernel(%arg0: i32, %arg1: memref<64x128xf32, #tpu.memory_space<vmem>>, %arg2: memref<1x8x128xf32, #tpu.memory_space<vmem>>, %arg3: memref<64x1xf32, #tpu.memory_space<vmem>>, %arg4: memref<1x128x384xf32, #tpu.memory_space<vmem>>, %arg5: memref<1x128x384xf32, #tpu.memory_space<vmem>>, %arg6: memref<1x1x384xf32, #tpu.memory_space<vmem>>, %arg7: memref<1x1x384xf32, #tpu.memory_space<vmem>>, %arg8: memref<64x128xf32, #tpu.memory_space<vmem>>, %arg9: memref<64x128xf32, #tpu.memory_space<vmem>>, %arg10: memref<64x384xf32, #tpu.memory_space<vmem>>, %arg11: memref<8x128xf32, #tpu.memory_space<vmem>>) attributes {dimension_semantics = [#tpu.dimension_semantics<arbitrary>], iteration_bounds = array<i64: 2>, scalar_prefetch = 0 : i64, scratch_operands = 3 : i64, tpu.core_type = #tpu.core_type<tc>, window_params = [{pipeline_mode = #tpu.pipeline_mode<synchronous>, transform_indices = @transform_0, window_bounds = array<i64: 64, 128>}, {transform_indices = @transform_1, window_bounds = array<i64: 1, 8, 128>}, {pipeline_mode = #tpu.pipeline_mode<synchronous>, transform_indices = @transform_2, window_bounds = array<i64: 64, 1>}, {transform_indices = @transform_3, window_bounds = array<i64: 1, 128, 384>}, {transform_indices = @transform_4, window_bounds = array<i64: 1, 128, 384>}, {transform_indices = @transform_5, window_bounds = array<i64: 1, 1, 384>}, {transform_indices = @transform_6, window_bounds = array<i64: 1, 1, 384>}, {pipeline_mode = #tpu.pipeline_mode<synchronous>, transform_indices = @transform_7, window_bounds = array<i64: 64, 128>}]} {
    %c0_i32 = arith.constant 0 : i32
    %0 = arith.cmpi eq, %arg0, %c0_i32 : i32
    %1 = arith.extui %0 : i1 to i32
    %c0_i32_0 = arith.constant 0 : i32
    %2 = arith.cmpi ne, %1, %c0_i32_0 : i32
    scf.if %2 {
      %c0_154 = arith.constant 0 : index
      %c0_155 = arith.constant 0 : index
      %346 = vector.load %arg1[%c0_154, %c0_155] : memref<64x128xf32, #tpu.memory_space<vmem>>, vector<64x128xf32>
      %c0_156 = arith.constant 0 : index
      %c0_157 = arith.constant 0 : index
      %347 = vector.load %arg9[%c0_156, %c0_157] : memref<64x128xf32, #tpu.memory_space<vmem>>, vector<64x128xf32>
      tpu.vector_store %arg9[%c0_156, %c0_157], %346 {strides = array<i32>} : memref<64x128xf32, #tpu.memory_space<vmem>>, vector<64x128xf32>,
    } else {
    }
    %c0 = arith.constant 0 : index
    %c0_1 = arith.constant 0 : index
    %3 = vector.load %arg9[%c0, %c0_1] : memref<64x128xf32, #tpu.memory_space<vmem>>, vector<64x128xf32>
    %c0_2 = arith.constant 0 : index
    %c0_3 = arith.constant 0 : index
    %c0_4 = arith.constant 0 : index
    %4 = vector.load %arg4[%c0_2, %c0_3, %c0_4] : memref<1x128x384xf32, #tpu.memory_space<vmem>>, vector<1x128x384xf32>
    %5 = vector.shape_cast %4 : vector<1x128x384xf32> to vector<128x384xf32>
    %cst = arith.constant dense<0.000000e+00> : vector<64x384xf32>
    %6 = tpu.matmul %3, %5, %cst {dimension_numbers = #tpu.dot_dimension_numbers<[1], [0], [0], [1], [0, 0, 1, 1], [], []>} : vector<64x128xf32>, vector<128x384xf32>, vector<64x384xf32> -> vector<64x384xf32>
    %c0_5 = arith.constant 0 : index
    %c0_6 = arith.constant 0 : index
    %c0_7 = arith.constant 0 : index
    %7 = vector.load %arg6[%c0_5, %c0_6, %c0_7] : memref<1x1x384xf32, #tpu.memory_space<vmem>>, vector<1x1x384xf32>
    %8 = vector.shape_cast %7 : vector<1x1x384xf32> to vector<1x384xf32>
    %9 = vector.broadcast %8 : vector<1x384xf32> to vector<64x384xf32>
    %10 = arith.addf %6, %9 : vector<64x384xf32>
    %c0_8 = arith.constant 0 : index
    %c0_9 = arith.constant 0 : index
    %11 = vector.load %arg10[%c0_8, %c0_9] : memref<64x384xf32, #tpu.memory_space<vmem>>, vector<64x384xf32>
    tpu.vector_store %arg10[%c0_8, %c0_9], %10 {strides = array<i32>} : memref<64x384xf32, #tpu.memory_space<vmem>>, vector<64x384xf32>,
    %c0_10 = arith.constant 0 : index
    %c0_11 = arith.constant 0 : index
    %c0_12 = arith.constant 0 : index
    %12 = vector.load %arg2[%c0_10, %c0_11, %c0_12] : memref<1x8x128xf32, #tpu.memory_space<vmem>>, vector<1x8x128xf32>
    %13 = vector.shape_cast %12 : vector<1x8x128xf32> to vector<8x128xf32>
    %c0_13 = arith.constant 0 : index
    %c0_14 = arith.constant 0 : index
    %14 = vector.load %arg11[%c0_13, %c0_14] : memref<8x128xf32, #tpu.memory_space<vmem>>, vector<8x128xf32>
    tpu.vector_store %arg11[%c0_13, %c0_14], %13 {strides = array<i32>} : memref<8x128xf32, #tpu.memory_space<vmem>>, vector<8x128xf32>,
    %c0_i32_15 = arith.constant 0 : i32
    %c8_i32 = arith.constant 8 : i32
    %15 = arith.muli %c0_i32_15, %c8_i32 : i32
    %16 = tpu.assume_multiple %15, 8 : i32
    %17 = arith.index_cast %16 : i32 to index
    %c0_16 = arith.constant 0 : index
    %18 = vector.load %arg10[%17, %c0_16] : memref<64x384xf32, #tpu.memory_space<vmem>>, vector<8x384xf32>
    %c0_17 = arith.constant 0 : index
    %c0_18 = arith.constant 0 : index
    %19 = vector.load %arg11[%c0_17, %c0_18] : memref<8x128xf32, #tpu.memory_space<vmem>>, vector<8x128xf32>
    %c0_19 = arith.constant 0 : index
    %c0_20 = arith.constant 0 : index
    %c0_21 = arith.constant 0 : index
    %20 = vector.load %arg5[%c0_19, %c0_20, %c0_21] : memref<1x128x384xf32, #tpu.memory_space<vmem>>, vector<1x128x384xf32>
    %21 = vector.shape_cast %20 : vector<1x128x384xf32> to vector<128x384xf32>
    %cst_22 = arith.constant dense<0.000000e+00> : vector<8x384xf32>
    %22 = tpu.matmul %19, %21, %cst_22 {dimension_numbers = #tpu.dot_dimension_numbers<[1], [0], [0], [1], [0, 0, 1, 1], [], []>} : vector<8x128xf32>, vector<128x384xf32>, vector<8x384xf32> -> vector<8x384xf32>
    %c0_23 = arith.constant 0 : index
    %c0_24 = arith.constant 0 : index
    %c0_25 = arith.constant 0 : index
    %23 = vector.load %arg7[%c0_23, %c0_24, %c0_25] : memref<1x1x384xf32, #tpu.memory_space<vmem>>, vector<1x1x384xf32>
    %24 = vector.shape_cast %23 : vector<1x1x384xf32> to vector<1x384xf32>
    %25 = vector.broadcast %24 : vector<1x384xf32> to vector<8x384xf32>
    %26 = arith.addf %22, %25 : vector<8x384xf32>
    %27 = vector.extract_strided_slice %18 {offsets = [0, 0], sizes = [8, 128], strides = [1, 1]} : vector<8x384xf32> to vector<8x128xf32>
    %28 = vector.extract_strided_slice %26 {offsets = [0, 0], sizes = [8, 128], strides = [1, 1]} : vector<8x384xf32> to vector<8x128xf32>
    %29 = arith.addf %27, %28 : vector<8x128xf32>
    %30 = arith.negf %29 : vector<8x128xf32>
    %31 = math.exp %30 : vector<8x128xf32>
    %cst_26 = arith.constant 1.000000e+00 : f32
    %32 = vector.broadcast %cst_26 : f32 to vector<8x128xf32>
    %33 = arith.addf %32, %31 : vector<8x128xf32>
    %34 = arith.divf %32, %33 : vector<8x128xf32>
    %35 = vector.extract_strided_slice %18 {offsets = [0, 128], sizes = [8, 128], strides = [1, 1]} : vector<8x384xf32> to vector<8x128xf32>
    %36 = vector.extract_strided_slice %26 {offsets = [0, 128], sizes = [8, 128], strides = [1, 1]} : vector<8x384xf32> to vector<8x128xf32>
    %37 = arith.addf %35, %36 : vector<8x128xf32>
    %38 = arith.negf %37 : vector<8x128xf32>
    %39 = math.exp %38 : vector<8x128xf32>
    %cst_27 = arith.constant 1.000000e+00 : f32
    %40 = vector.broadcast %cst_27 : f32 to vector<8x128xf32>
    %41 = arith.addf %40, %39 : vector<8x128xf32>
    %42 = arith.divf %40, %41 : vector<8x128xf32>
    %43 = vector.extract_strided_slice %18 {offsets = [0, 256], sizes = [8, 128], strides = [1, 1]} : vector<8x384xf32> to vector<8x128xf32>
    %44 = vector.extract_strided_slice %26 {offsets = [0, 256], sizes = [8, 128], strides = [1, 1]} : vector<8x384xf32> to vector<8x128xf32>
    %45 = arith.mulf %34, %44 : vector<8x128xf32>
    %46 = arith.addf %43, %45 : vector<8x128xf32>
    %47 = math.tanh %46 : vector<8x128xf32>
    %cst_28 = arith.constant 1.000000e+00 : f32
    %48 = vector.broadcast %cst_28 : f32 to vector<8x128xf32>
    %49 = arith.subf %48, %42 : vector<8x128xf32>
    %50 = arith.mulf %49, %47 : vector<8x128xf32>
    %51 = arith.mulf %42, %19 : vector<8x128xf32>
    %52 = arith.addf %50, %51 : vector<8x128xf32>
    %c0_29 = arith.constant 0 : index
    %c0_30 = arith.constant 0 : index
    %53 = vector.load %arg11[%c0_29, %c0_30] : memref<8x128xf32, #tpu.memory_space<vmem>>, vector<8x128xf32>
    tpu.vector_store %arg11[%c0_29, %c0_30], %52 {strides = array<i32>} : memref<8x128xf32, #tpu.memory_space<vmem>>, vector<8x128xf32>,
    %54 = arith.index_cast %16 : i32 to index
    %c0_31 = arith.constant 0 : index
    %55 = vector.load %arg9[%54, %c0_31] : memref<64x128xf32, #tpu.memory_space<vmem>>, vector<8x128xf32>
    tpu.vector_store %arg9[%54, %c0_31], %52 {strides = array<i32>} : memref<64x128xf32, #tpu.memory_space<vmem>>, vector<8x128xf32>,
    %c1_i32 = arith.constant 1 : i32
    %c8_i32_32 = arith.constant 8 : i32
    %56 = arith.muli %c1_i32, %c8_i32_32 : i32
    %57 = tpu.assume_multiple %56, 8 : i32
    %58 = arith.index_cast %57 : i32 to index
    %c0_33 = arith.constant 0 : index
    %59 = vector.load %arg10[%58, %c0_33] : memref<64x384xf32, #tpu.memory_space<vmem>>, vector<8x384xf32>
    %c0_34 = arith.constant 0 : index
    %c0_35 = arith.constant 0 : index
    %60 = vector.load %arg11[%c0_34, %c0_35] : memref<8x128xf32, #tpu.memory_space<vmem>>, vector<8x128xf32>
    %c0_36 = arith.constant 0 : index
    %c0_37 = arith.constant 0 : index
    %c0_38 = arith.constant 0 : index
    %61 = vector.load %arg5[%c0_36, %c0_37, %c0_38] : memref<1x128x384xf32, #tpu.memory_space<vmem>>, vector<1x128x384xf32>
    %62 = vector.shape_cast %61 : vector<1x128x384xf32> to vector<128x384xf32>
    %cst_39 = arith.constant dense<0.000000e+00> : vector<8x384xf32>
    %63 = tpu.matmul %60, %62, %cst_39 {dimension_numbers = #tpu.dot_dimension_numbers<[1], [0], [0], [1], [0, 0, 1, 1], [], []>} : vector<8x128xf32>, vector<128x384xf32>, vector<8x384xf32> -> vector<8x384xf32>
    %c0_40 = arith.constant 0 : index
    %c0_41 = arith.constant 0 : index
    %c0_42 = arith.constant 0 : index
    %64 = vector.load %arg7[%c0_40, %c0_41, %c0_42] : memref<1x1x384xf32, #tpu.memory_space<vmem>>, vector<1x1x384xf32>
    %65 = vector.shape_cast %64 : vector<1x1x384xf32> to vector<1x384xf32>
    %66 = vector.broadcast %65 : vector<1x384xf32> to vector<8x384xf32>
    %67 = arith.addf %63, %66 : vector<8x384xf32>
    %68 = vector.extract_strided_slice %59 {offsets = [0, 0], sizes = [8, 128], strides = [1, 1]} : vector<8x384xf32> to vector<8x128xf32>
    %69 = vector.extract_strided_slice %67 {offsets = [0, 0], sizes = [8, 128], strides = [1, 1]} : vector<8x384xf32> to vector<8x128xf32>
    %70 = arith.addf %68, %69 : vector<8x128xf32>
    %71 = arith.negf %70 : vector<8x128xf32>
    %72 = math.exp %71 : vector<8x128xf32>
    %cst_43 = arith.constant 1.000000e+00 : f32
    %73 = vector.broadcast %cst_43 : f32 to vector<8x128xf32>
    %74 = arith.addf %73, %72 : vector<8x128xf32>
    %75 = arith.divf %73, %74 : vector<8x128xf32>
    %76 = vector.extract_strided_slice %59 {offsets = [0, 128], sizes = [8, 128], strides = [1, 1]} : vector<8x384xf32> to vector<8x128xf32>
    %77 = vector.extract_strided_slice %67 {offsets = [0, 128], sizes = [8, 128], strides = [1, 1]} : vector<8x384xf32> to vector<8x128xf32>
    %78 = arith.addf %76, %77 : vector<8x128xf32>
    %79 = arith.negf %78 : vector<8x128xf32>
    %80 = math.exp %79 : vector<8x128xf32>
    %cst_44 = arith.constant 1.000000e+00 : f32
    %81 = vector.broadcast %cst_44 : f32 to vector<8x128xf32>
    %82 = arith.addf %81, %80 : vector<8x128xf32>
    %83 = arith.divf %81, %82 : vector<8x128xf32>
    %84 = vector.extract_strided_slice %59 {offsets = [0, 256], sizes = [8, 128], strides = [1, 1]} : vector<8x384xf32> to vector<8x128xf32>
    %85 = vector.extract_strided_slice %67 {offsets = [0, 256], sizes = [8, 128], strides = [1, 1]} : vector<8x384xf32> to vector<8x128xf32>
    %86 = arith.mulf %75, %85 : vector<8x128xf32>
    %87 = arith.addf %84, %86 : vector<8x128xf32>
    %88 = math.tanh %87 : vector<8x128xf32>
    %cst_45 = arith.constant 1.000000e+00 : f32
    %89 = vector.broadcast %cst_45 : f32 to vector<8x128xf32>
    %90 = arith.subf %89, %83 : vector<8x128xf32>
    %91 = arith.mulf %90, %88 : vector<8x128xf32>
    %92 = arith.mulf %83, %60 : vector<8x128xf32>
    %93 = arith.addf %91, %92 : vector<8x128xf32>
    %c0_46 = arith.constant 0 : index
    %c0_47 = arith.constant 0 : index
    %94 = vector.load %arg11[%c0_46, %c0_47] : memref<8x128xf32, #tpu.memory_space<vmem>>, vector<8x128xf32>
    tpu.vector_store %arg11[%c0_46, %c0_47], %93 {strides = array<i32>} : memref<8x128xf32, #tpu.memory_space<vmem>>, vector<8x128xf32>,
    %95 = arith.index_cast %57 : i32 to index
    %c0_48 = arith.constant 0 : index
    %96 = vector.load %arg9[%95, %c0_48] : memref<64x128xf32, #tpu.memory_space<vmem>>, vector<8x128xf32>
    tpu.vector_store %arg9[%95, %c0_48], %93 {strides = array<i32>} : memref<64x128xf32, #tpu.memory_space<vmem>>, vector<8x128xf32>,
    %c2_i32 = arith.constant 2 : i32
    %c8_i32_49 = arith.constant 8 : i32
    %97 = arith.muli %c2_i32, %c8_i32_49 : i32
    %98 = tpu.assume_multiple %97, 8 : i32
    %99 = arith.index_cast %98 : i32 to index
    %c0_50 = arith.constant 0 : index
    %100 = vector.load %arg10[%99, %c0_50] : memref<64x384xf32, #tpu.memory_space<vmem>>, vector<8x384xf32>
    %c0_51 = arith.constant 0 : index
    %c0_52 = arith.constant 0 : index
    %101 = vector.load %arg11[%c0_51, %c0_52] : memref<8x128xf32, #tpu.memory_space<vmem>>, vector<8x128xf32>
    %c0_53 = arith.constant 0 : index
    %c0_54 = arith.constant 0 : index
    %c0_55 = arith.constant 0 : index
    %102 = vector.load %arg5[%c0_53, %c0_54, %c0_55] : memref<1x128x384xf32, #tpu.memory_space<vmem>>, vector<1x128x384xf32>
    %103 = vector.shape_cast %102 : vector<1x128x384xf32> to vector<128x384xf32>
    %cst_56 = arith.constant dense<0.000000e+00> : vector<8x384xf32>
    %104 = tpu.matmul %101, %103, %cst_56 {dimension_numbers = #tpu.dot_dimension_numbers<[1], [0], [0], [1], [0, 0, 1, 1], [], []>} : vector<8x128xf32>, vector<128x384xf32>, vector<8x384xf32> -> vector<8x384xf32>
    %c0_57 = arith.constant 0 : index
    %c0_58 = arith.constant 0 : index
    %c0_59 = arith.constant 0 : index
    %105 = vector.load %arg7[%c0_57, %c0_58, %c0_59] : memref<1x1x384xf32, #tpu.memory_space<vmem>>, vector<1x1x384xf32>
    %106 = vector.shape_cast %105 : vector<1x1x384xf32> to vector<1x384xf32>
    %107 = vector.broadcast %106 : vector<1x384xf32> to vector<8x384xf32>
    %108 = arith.addf %104, %107 : vector<8x384xf32>
    %109 = vector.extract_strided_slice %100 {offsets = [0, 0], sizes = [8, 128], strides = [1, 1]} : vector<8x384xf32> to vector<8x128xf32>
    %110 = vector.extract_strided_slice %108 {offsets = [0, 0], sizes = [8, 128], strides = [1, 1]} : vector<8x384xf32> to vector<8x128xf32>
    %111 = arith.addf %109, %110 : vector<8x128xf32>
    %112 = arith.negf %111 : vector<8x128xf32>
    %113 = math.exp %112 : vector<8x128xf32>
    %cst_60 = arith.constant 1.000000e+00 : f32
    %114 = vector.broadcast %cst_60 : f32 to vector<8x128xf32>
    %115 = arith.addf %114, %113 : vector<8x128xf32>
    %116 = arith.divf %114, %115 : vector<8x128xf32>
    %117 = vector.extract_strided_slice %100 {offsets = [0, 128], sizes = [8, 128], strides = [1, 1]} : vector<8x384xf32> to vector<8x128xf32>
    %118 = vector.extract_strided_slice %108 {offsets = [0, 128], sizes = [8, 128], strides = [1, 1]} : vector<8x384xf32> to vector<8x128xf32>
    %119 = arith.addf %117, %118 : vector<8x128xf32>
    %120 = arith.negf %119 : vector<8x128xf32>
    %121 = math.exp %120 : vector<8x128xf32>
    %cst_61 = arith.constant 1.000000e+00 : f32
    %122 = vector.broadcast %cst_61 : f32 to vector<8x128xf32>
    %123 = arith.addf %122, %121 : vector<8x128xf32>
    %124 = arith.divf %122, %123 : vector<8x128xf32>
    %125 = vector.extract_strided_slice %100 {offsets = [0, 256], sizes = [8, 128], strides = [1, 1]} : vector<8x384xf32> to vector<8x128xf32>
    %126 = vector.extract_strided_slice %108 {offsets = [0, 256], sizes = [8, 128], strides = [1, 1]} : vector<8x384xf32> to vector<8x128xf32>
    %127 = arith.mulf %116, %126 : vector<8x128xf32>
    %128 = arith.addf %125, %127 : vector<8x128xf32>
    %129 = math.tanh %128 : vector<8x128xf32>
    %cst_62 = arith.constant 1.000000e+00 : f32
    %130 = vector.broadcast %cst_62 : f32 to vector<8x128xf32>
    %131 = arith.subf %130, %124 : vector<8x128xf32>
    %132 = arith.mulf %131, %129 : vector<8x128xf32>
    %133 = arith.mulf %124, %101 : vector<8x128xf32>
    %134 = arith.addf %132, %133 : vector<8x128xf32>
    %c0_63 = arith.constant 0 : index
    %c0_64 = arith.constant 0 : index
    %135 = vector.load %arg11[%c0_63, %c0_64] : memref<8x128xf32, #tpu.memory_space<vmem>>, vector<8x128xf32>
    tpu.vector_store %arg11[%c0_63, %c0_64], %134 {strides = array<i32>} : memref<8x128xf32, #tpu.memory_space<vmem>>, vector<8x128xf32>,
    %136 = arith.index_cast %98 : i32 to index
    %c0_65 = arith.constant 0 : index
    %137 = vector.load %arg9[%136, %c0_65] : memref<64x128xf32, #tpu.memory_space<vmem>>, vector<8x128xf32>
    tpu.vector_store %arg9[%136, %c0_65], %134 {strides = array<i32>} : memref<64x128xf32, #tpu.memory_space<vmem>>, vector<8x128xf32>,
    %c3_i32 = arith.constant 3 : i32
    %c8_i32_66 = arith.constant 8 : i32
    %138 = arith.muli %c3_i32, %c8_i32_66 : i32
    %139 = tpu.assume_multiple %138, 8 : i32
    %140 = arith.index_cast %139 : i32 to index
    %c0_67 = arith.constant 0 : index
    %141 = vector.load %arg10[%140, %c0_67] : memref<64x384xf32, #tpu.memory_space<vmem>>, vector<8x384xf32>
    %c0_68 = arith.constant 0 : index
    %c0_69 = arith.constant 0 : index
    %142 = vector.load %arg11[%c0_68, %c0_69] : memref<8x128xf32, #tpu.memory_space<vmem>>, vector<8x128xf32>
    %c0_70 = arith.constant 0 : index
    %c0_71 = arith.constant 0 : index
    %c0_72 = arith.constant 0 : index
    %143 = vector.load %arg5[%c0_70, %c0_71, %c0_72] : memref<1x128x384xf32, #tpu.memory_space<vmem>>, vector<1x128x384xf32>
    %144 = vector.shape_cast %143 : vector<1x128x384xf32> to vector<128x384xf32>
    %cst_73 = arith.constant dense<0.000000e+00> : vector<8x384xf32>
    %145 = tpu.matmul %142, %144, %cst_73 {dimension_numbers = #tpu.dot_dimension_numbers<[1], [0], [0], [1], [0, 0, 1, 1], [], []>} : vector<8x128xf32>, vector<128x384xf32>, vector<8x384xf32> -> vector<8x384xf32>
    %c0_74 = arith.constant 0 : index
    %c0_75 = arith.constant 0 : index
    %c0_76 = arith.constant 0 : index
    %146 = vector.load %arg7[%c0_74, %c0_75, %c0_76] : memref<1x1x384xf32, #tpu.memory_space<vmem>>, vector<1x1x384xf32>
    %147 = vector.shape_cast %146 : vector<1x1x384xf32> to vector<1x384xf32>
    %148 = vector.broadcast %147 : vector<1x384xf32> to vector<8x384xf32>
    %149 = arith.addf %145, %148 : vector<8x384xf32>
    %150 = vector.extract_strided_slice %141 {offsets = [0, 0], sizes = [8, 128], strides = [1, 1]} : vector<8x384xf32> to vector<8x128xf32>
    %151 = vector.extract_strided_slice %149 {offsets = [0, 0], sizes = [8, 128], strides = [1, 1]} : vector<8x384xf32> to vector<8x128xf32>
    %152 = arith.addf %150, %151 : vector<8x128xf32>
    %153 = arith.negf %152 : vector<8x128xf32>
    %154 = math.exp %153 : vector<8x128xf32>
    %cst_77 = arith.constant 1.000000e+00 : f32
    %155 = vector.broadcast %cst_77 : f32 to vector<8x128xf32>
    %156 = arith.addf %155, %154 : vector<8x128xf32>
    %157 = arith.divf %155, %156 : vector<8x128xf32>
    %158 = vector.extract_strided_slice %141 {offsets = [0, 128], sizes = [8, 128], strides = [1, 1]} : vector<8x384xf32> to vector<8x128xf32>
    %159 = vector.extract_strided_slice %149 {offsets = [0, 128], sizes = [8, 128], strides = [1, 1]} : vector<8x384xf32> to vector<8x128xf32>
    %160 = arith.addf %158, %159 : vector<8x128xf32>
    %161 = arith.negf %160 : vector<8x128xf32>
    %162 = math.exp %161 : vector<8x128xf32>
    %cst_78 = arith.constant 1.000000e+00 : f32
    %163 = vector.broadcast %cst_78 : f32 to vector<8x128xf32>
    %164 = arith.addf %163, %162 : vector<8x128xf32>
    %165 = arith.divf %163, %164 : vector<8x128xf32>
    %166 = vector.extract_strided_slice %141 {offsets = [0, 256], sizes = [8, 128], strides = [1, 1]} : vector<8x384xf32> to vector<8x128xf32>
    %167 = vector.extract_strided_slice %149 {offsets = [0, 256], sizes = [8, 128], strides = [1, 1]} : vector<8x384xf32> to vector<8x128xf32>
    %168 = arith.mulf %157, %167 : vector<8x128xf32>
    %169 = arith.addf %166, %168 : vector<8x128xf32>
    %170 = math.tanh %169 : vector<8x128xf32>
    %cst_79 = arith.constant 1.000000e+00 : f32
    %171 = vector.broadcast %cst_79 : f32 to vector<8x128xf32>
    %172 = arith.subf %171, %165 : vector<8x128xf32>
    %173 = arith.mulf %172, %170 : vector<8x128xf32>
    %174 = arith.mulf %165, %142 : vector<8x128xf32>
    %175 = arith.addf %173, %174 : vector<8x128xf32>
    %c0_80 = arith.constant 0 : index
    %c0_81 = arith.constant 0 : index
    %176 = vector.load %arg11[%c0_80, %c0_81] : memref<8x128xf32, #tpu.memory_space<vmem>>, vector<8x128xf32>
    tpu.vector_store %arg11[%c0_80, %c0_81], %175 {strides = array<i32>} : memref<8x128xf32, #tpu.memory_space<vmem>>, vector<8x128xf32>,
    %177 = arith.index_cast %139 : i32 to index
    %c0_82 = arith.constant 0 : index
    %178 = vector.load %arg9[%177, %c0_82] : memref<64x128xf32, #tpu.memory_space<vmem>>, vector<8x128xf32>
    tpu.vector_store %arg9[%177, %c0_82], %175 {strides = array<i32>} : memref<64x128xf32, #tpu.memory_space<vmem>>, vector<8x128xf32>,
    %c4_i32 = arith.constant 4 : i32
    %c8_i32_83 = arith.constant 8 : i32
    %179 = arith.muli %c4_i32, %c8_i32_83 : i32
    %180 = tpu.assume_multiple %179, 8 : i32
    %181 = arith.index_cast %180 : i32 to index
    %c0_84 = arith.constant 0 : index
    %182 = vector.load %arg10[%181, %c0_84] : memref<64x384xf32, #tpu.memory_space<vmem>>, vector<8x384xf32>
    %c0_85 = arith.constant 0 : index
    %c0_86 = arith.constant 0 : index
    %183 = vector.load %arg11[%c0_85, %c0_86] : memref<8x128xf32, #tpu.memory_space<vmem>>, vector<8x128xf32>
    %c0_87 = arith.constant 0 : index
    %c0_88 = arith.constant 0 : index
    %c0_89 = arith.constant 0 : index
    %184 = vector.load %arg5[%c0_87, %c0_88, %c0_89] : memref<1x128x384xf32, #tpu.memory_space<vmem>>, vector<1x128x384xf32>
    %185 = vector.shape_cast %184 : vector<1x128x384xf32> to vector<128x384xf32>
    %cst_90 = arith.constant dense<0.000000e+00> : vector<8x384xf32>
    %186 = tpu.matmul %183, %185, %cst_90 {dimension_numbers = #tpu.dot_dimension_numbers<[1], [0], [0], [1], [0, 0, 1, 1], [], []>} : vector<8x128xf32>, vector<128x384xf32>, vector<8x384xf32> -> vector<8x384xf32>
    %c0_91 = arith.constant 0 : index
    %c0_92 = arith.constant 0 : index
    %c0_93 = arith.constant 0 : index
    %187 = vector.load %arg7[%c0_91, %c0_92, %c0_93] : memref<1x1x384xf32, #tpu.memory_space<vmem>>, vector<1x1x384xf32>
    %188 = vector.shape_cast %187 : vector<1x1x384xf32> to vector<1x384xf32>
    %189 = vector.broadcast %188 : vector<1x384xf32> to vector<8x384xf32>
    %190 = arith.addf %186, %189 : vector<8x384xf32>
    %191 = vector.extract_strided_slice %182 {offsets = [0, 0], sizes = [8, 128], strides = [1, 1]} : vector<8x384xf32> to vector<8x128xf32>
    %192 = vector.extract_strided_slice %190 {offsets = [0, 0], sizes = [8, 128], strides = [1, 1]} : vector<8x384xf32> to vector<8x128xf32>
    %193 = arith.addf %191, %192 : vector<8x128xf32>
    %194 = arith.negf %193 : vector<8x128xf32>
    %195 = math.exp %194 : vector<8x128xf32>
    %cst_94 = arith.constant 1.000000e+00 : f32
    %196 = vector.broadcast %cst_94 : f32 to vector<8x128xf32>
    %197 = arith.addf %196, %195 : vector<8x128xf32>
    %198 = arith.divf %196, %197 : vector<8x128xf32>
    %199 = vector.extract_strided_slice %182 {offsets = [0, 128], sizes = [8, 128], strides = [1, 1]} : vector<8x384xf32> to vector<8x128xf32>
    %200 = vector.extract_strided_slice %190 {offsets = [0, 128], sizes = [8, 128], strides = [1, 1]} : vector<8x384xf32> to vector<8x128xf32>
    %201 = arith.addf %199, %200 : vector<8x128xf32>
    %202 = arith.negf %201 : vector<8x128xf32>
    %203 = math.exp %202 : vector<8x128xf32>
    %cst_95 = arith.constant 1.000000e+00 : f32
    %204 = vector.broadcast %cst_95 : f32 to vector<8x128xf32>
    %205 = arith.addf %204, %203 : vector<8x128xf32>
    %206 = arith.divf %204, %205 : vector<8x128xf32>
    %207 = vector.extract_strided_slice %182 {offsets = [0, 256], sizes = [8, 128], strides = [1, 1]} : vector<8x384xf32> to vector<8x128xf32>
    %208 = vector.extract_strided_slice %190 {offsets = [0, 256], sizes = [8, 128], strides = [1, 1]} : vector<8x384xf32> to vector<8x128xf32>
    %209 = arith.mulf %198, %208 : vector<8x128xf32>
    %210 = arith.addf %207, %209 : vector<8x128xf32>
    %211 = math.tanh %210 : vector<8x128xf32>
    %cst_96 = arith.constant 1.000000e+00 : f32
    %212 = vector.broadcast %cst_96 : f32 to vector<8x128xf32>
    %213 = arith.subf %212, %206 : vector<8x128xf32>
    %214 = arith.mulf %213, %211 : vector<8x128xf32>
    %215 = arith.mulf %206, %183 : vector<8x128xf32>
    %216 = arith.addf %214, %215 : vector<8x128xf32>
    %c0_97 = arith.constant 0 : index
    %c0_98 = arith.constant 0 : index
    %217 = vector.load %arg11[%c0_97, %c0_98] : memref<8x128xf32, #tpu.memory_space<vmem>>, vector<8x128xf32>
    tpu.vector_store %arg11[%c0_97, %c0_98], %216 {strides = array<i32>} : memref<8x128xf32, #tpu.memory_space<vmem>>, vector<8x128xf32>,
    %218 = arith.index_cast %180 : i32 to index
    %c0_99 = arith.constant 0 : index
    %219 = vector.load %arg9[%218, %c0_99] : memref<64x128xf32, #tpu.memory_space<vmem>>, vector<8x128xf32>
    tpu.vector_store %arg9[%218, %c0_99], %216 {strides = array<i32>} : memref<64x128xf32, #tpu.memory_space<vmem>>, vector<8x128xf32>,
    %c5_i32 = arith.constant 5 : i32
    %c8_i32_100 = arith.constant 8 : i32
    %220 = arith.muli %c5_i32, %c8_i32_100 : i32
    %221 = tpu.assume_multiple %220, 8 : i32
    %222 = arith.index_cast %221 : i32 to index
    %c0_101 = arith.constant 0 : index
    %223 = vector.load %arg10[%222, %c0_101] : memref<64x384xf32, #tpu.memory_space<vmem>>, vector<8x384xf32>
    %c0_102 = arith.constant 0 : index
    %c0_103 = arith.constant 0 : index
    %224 = vector.load %arg11[%c0_102, %c0_103] : memref<8x128xf32, #tpu.memory_space<vmem>>, vector<8x128xf32>
    %c0_104 = arith.constant 0 : index
    %c0_105 = arith.constant 0 : index
    %c0_106 = arith.constant 0 : index
    %225 = vector.load %arg5[%c0_104, %c0_105, %c0_106] : memref<1x128x384xf32, #tpu.memory_space<vmem>>, vector<1x128x384xf32>
    %226 = vector.shape_cast %225 : vector<1x128x384xf32> to vector<128x384xf32>
    %cst_107 = arith.constant dense<0.000000e+00> : vector<8x384xf32>
    %227 = tpu.matmul %224, %226, %cst_107 {dimension_numbers = #tpu.dot_dimension_numbers<[1], [0], [0], [1], [0, 0, 1, 1], [], []>} : vector<8x128xf32>, vector<128x384xf32>, vector<8x384xf32> -> vector<8x384xf32>
    %c0_108 = arith.constant 0 : index
    %c0_109 = arith.constant 0 : index
    %c0_110 = arith.constant 0 : index
    %228 = vector.load %arg7[%c0_108, %c0_109, %c0_110] : memref<1x1x384xf32, #tpu.memory_space<vmem>>, vector<1x1x384xf32>
    %229 = vector.shape_cast %228 : vector<1x1x384xf32> to vector<1x384xf32>
    %230 = vector.broadcast %229 : vector<1x384xf32> to vector<8x384xf32>
    %231 = arith.addf %227, %230 : vector<8x384xf32>
    %232 = vector.extract_strided_slice %223 {offsets = [0, 0], sizes = [8, 128], strides = [1, 1]} : vector<8x384xf32> to vector<8x128xf32>
    %233 = vector.extract_strided_slice %231 {offsets = [0, 0], sizes = [8, 128], strides = [1, 1]} : vector<8x384xf32> to vector<8x128xf32>
    %234 = arith.addf %232, %233 : vector<8x128xf32>
    %235 = arith.negf %234 : vector<8x128xf32>
    %236 = math.exp %235 : vector<8x128xf32>
    %cst_111 = arith.constant 1.000000e+00 : f32
    %237 = vector.broadcast %cst_111 : f32 to vector<8x128xf32>
    %238 = arith.addf %237, %236 : vector<8x128xf32>
    %239 = arith.divf %237, %238 : vector<8x128xf32>
    %240 = vector.extract_strided_slice %223 {offsets = [0, 128], sizes = [8, 128], strides = [1, 1]} : vector<8x384xf32> to vector<8x128xf32>
    %241 = vector.extract_strided_slice %231 {offsets = [0, 128], sizes = [8, 128], strides = [1, 1]} : vector<8x384xf32> to vector<8x128xf32>
    %242 = arith.addf %240, %241 : vector<8x128xf32>
    %243 = arith.negf %242 : vector<8x128xf32>
    %244 = math.exp %243 : vector<8x128xf32>
    %cst_112 = arith.constant 1.000000e+00 : f32
    %245 = vector.broadcast %cst_112 : f32 to vector<8x128xf32>
    %246 = arith.addf %245, %244 : vector<8x128xf32>
    %247 = arith.divf %245, %246 : vector<8x128xf32>
    %248 = vector.extract_strided_slice %223 {offsets = [0, 256], sizes = [8, 128], strides = [1, 1]} : vector<8x384xf32> to vector<8x128xf32>
    %249 = vector.extract_strided_slice %231 {offsets = [0, 256], sizes = [8, 128], strides = [1, 1]} : vector<8x384xf32> to vector<8x128xf32>
    %250 = arith.mulf %239, %249 : vector<8x128xf32>
    %251 = arith.addf %248, %250 : vector<8x128xf32>
    %252 = math.tanh %251 : vector<8x128xf32>
    %cst_113 = arith.constant 1.000000e+00 : f32
    %253 = vector.broadcast %cst_113 : f32 to vector<8x128xf32>
    %254 = arith.subf %253, %247 : vector<8x128xf32>
    %255 = arith.mulf %254, %252 : vector<8x128xf32>
    %256 = arith.mulf %247, %224 : vector<8x128xf32>
    %257 = arith.addf %255, %256 : vector<8x128xf32>
    %c0_114 = arith.constant 0 : index
    %c0_115 = arith.constant 0 : index
    %258 = vector.load %arg11[%c0_114, %c0_115] : memref<8x128xf32, #tpu.memory_space<vmem>>, vector<8x128xf32>
    tpu.vector_store %arg11[%c0_114, %c0_115], %257 {strides = array<i32>} : memref<8x128xf32, #tpu.memory_space<vmem>>, vector<8x128xf32>,
    %259 = arith.index_cast %221 : i32 to index
    %c0_116 = arith.constant 0 : index
    %260 = vector.load %arg9[%259, %c0_116] : memref<64x128xf32, #tpu.memory_space<vmem>>, vector<8x128xf32>
    tpu.vector_store %arg9[%259, %c0_116], %257 {strides = array<i32>} : memref<64x128xf32, #tpu.memory_space<vmem>>, vector<8x128xf32>,
    %c6_i32 = arith.constant 6 : i32
    %c8_i32_117 = arith.constant 8 : i32
    %261 = arith.muli %c6_i32, %c8_i32_117 : i32
    %262 = tpu.assume_multiple %261, 8 : i32
    %263 = arith.index_cast %262 : i32 to index
    %c0_118 = arith.constant 0 : index
    %264 = vector.load %arg10[%263, %c0_118] : memref<64x384xf32, #tpu.memory_space<vmem>>, vector<8x384xf32>
    %c0_119 = arith.constant 0 : index
    %c0_120 = arith.constant 0 : index
    %265 = vector.load %arg11[%c0_119, %c0_120] : memref<8x128xf32, #tpu.memory_space<vmem>>, vector<8x128xf32>
    %c0_121 = arith.constant 0 : index
    %c0_122 = arith.constant 0 : index
    %c0_123 = arith.constant 0 : index
    %266 = vector.load %arg5[%c0_121, %c0_122, %c0_123] : memref<1x128x384xf32, #tpu.memory_space<vmem>>, vector<1x128x384xf32>
    %267 = vector.shape_cast %266 : vector<1x128x384xf32> to vector<128x384xf32>
    %cst_124 = arith.constant dense<0.000000e+00> : vector<8x384xf32>
    %268 = tpu.matmul %265, %267, %cst_124 {dimension_numbers = #tpu.dot_dimension_numbers<[1], [0], [0], [1], [0, 0, 1, 1], [], []>} : vector<8x128xf32>, vector<128x384xf32>, vector<8x384xf32> -> vector<8x384xf32>
    %c0_125 = arith.constant 0 : index
    %c0_126 = arith.constant 0 : index
    %c0_127 = arith.constant 0 : index
    %269 = vector.load %arg7[%c0_125, %c0_126, %c0_127] : memref<1x1x384xf32, #tpu.memory_space<vmem>>, vector<1x1x384xf32>
    %270 = vector.shape_cast %269 : vector<1x1x384xf32> to vector<1x384xf32>
    %271 = vector.broadcast %270 : vector<1x384xf32> to vector<8x384xf32>
    %272 = arith.addf %268, %271 : vector<8x384xf32>
    %273 = vector.extract_strided_slice %264 {offsets = [0, 0], sizes = [8, 128], strides = [1, 1]} : vector<8x384xf32> to vector<8x128xf32>
    %274 = vector.extract_strided_slice %272 {offsets = [0, 0], sizes = [8, 128], strides = [1, 1]} : vector<8x384xf32> to vector<8x128xf32>
    %275 = arith.addf %273, %274 : vector<8x128xf32>
    %276 = arith.negf %275 : vector<8x128xf32>
    %277 = math.exp %276 : vector<8x128xf32>
    %cst_128 = arith.constant 1.000000e+00 : f32
    %278 = vector.broadcast %cst_128 : f32 to vector<8x128xf32>
    %279 = arith.addf %278, %277 : vector<8x128xf32>
    %280 = arith.divf %278, %279 : vector<8x128xf32>
    %281 = vector.extract_strided_slice %264 {offsets = [0, 128], sizes = [8, 128], strides = [1, 1]} : vector<8x384xf32> to vector<8x128xf32>
    %282 = vector.extract_strided_slice %272 {offsets = [0, 128], sizes = [8, 128], strides = [1, 1]} : vector<8x384xf32> to vector<8x128xf32>
    %283 = arith.addf %281, %282 : vector<8x128xf32>
    %284 = arith.negf %283 : vector<8x128xf32>
    %285 = math.exp %284 : vector<8x128xf32>
    %cst_129 = arith.constant 1.000000e+00 : f32
    %286 = vector.broadcast %cst_129 : f32 to vector<8x128xf32>
    %287 = arith.addf %286, %285 : vector<8x128xf32>
    %288 = arith.divf %286, %287 : vector<8x128xf32>
    %289 = vector.extract_strided_slice %264 {offsets = [0, 256], sizes = [8, 128], strides = [1, 1]} : vector<8x384xf32> to vector<8x128xf32>
    %290 = vector.extract_strided_slice %272 {offsets = [0, 256], sizes = [8, 128], strides = [1, 1]} : vector<8x384xf32> to vector<8x128xf32>
    %291 = arith.mulf %280, %290 : vector<8x128xf32>
    %292 = arith.addf %289, %291 : vector<8x128xf32>
    %293 = math.tanh %292 : vector<8x128xf32>
    %cst_130 = arith.constant 1.000000e+00 : f32
    %294 = vector.broadcast %cst_130 : f32 to vector<8x128xf32>
    %295 = arith.subf %294, %288 : vector<8x128xf32>
    %296 = arith.mulf %295, %293 : vector<8x128xf32>
    %297 = arith.mulf %288, %265 : vector<8x128xf32>
    %298 = arith.addf %296, %297 : vector<8x128xf32>
    %c0_131 = arith.constant 0 : index
    %c0_132 = arith.constant 0 : index
    %299 = vector.load %arg11[%c0_131, %c0_132] : memref<8x128xf32, #tpu.memory_space<vmem>>, vector<8x128xf32>
    tpu.vector_store %arg11[%c0_131, %c0_132], %298 {strides = array<i32>} : memref<8x128xf32, #tpu.memory_space<vmem>>, vector<8x128xf32>,
    %300 = arith.index_cast %262 : i32 to index
    %c0_133 = arith.constant 0 : index
    %301 = vector.load %arg9[%300, %c0_133] : memref<64x128xf32, #tpu.memory_space<vmem>>, vector<8x128xf32>
    tpu.vector_store %arg9[%300, %c0_133], %298 {strides = array<i32>} : memref<64x128xf32, #tpu.memory_space<vmem>>, vector<8x128xf32>,
    %c7_i32 = arith.constant 7 : i32
    %c8_i32_134 = arith.constant 8 : i32
    %302 = arith.muli %c7_i32, %c8_i32_134 : i32
    %303 = tpu.assume_multiple %302, 8 : i32
    %304 = arith.index_cast %303 : i32 to index
    %c0_135 = arith.constant 0 : index
    %305 = vector.load %arg10[%304, %c0_135] : memref<64x384xf32, #tpu.memory_space<vmem>>, vector<8x384xf32>
    %c0_136 = arith.constant 0 : index
    %c0_137 = arith.constant 0 : index
    %306 = vector.load %arg11[%c0_136, %c0_137] : memref<8x128xf32, #tpu.memory_space<vmem>>, vector<8x128xf32>
    %c0_138 = arith.constant 0 : index
    %c0_139 = arith.constant 0 : index
    %c0_140 = arith.constant 0 : index
    %307 = vector.load %arg5[%c0_138, %c0_139, %c0_140] : memref<1x128x384xf32, #tpu.memory_space<vmem>>, vector<1x128x384xf32>
    %308 = vector.shape_cast %307 : vector<1x128x384xf32> to vector<128x384xf32>
    %cst_141 = arith.constant dense<0.000000e+00> : vector<8x384xf32>
    %309 = tpu.matmul %306, %308, %cst_141 {dimension_numbers = #tpu.dot_dimension_numbers<[1], [0], [0], [1], [0, 0, 1, 1], [], []>} : vector<8x128xf32>, vector<128x384xf32>, vector<8x384xf32> -> vector<8x384xf32>
    %c0_142 = arith.constant 0 : index
    %c0_143 = arith.constant 0 : index
    %c0_144 = arith.constant 0 : index
    %310 = vector.load %arg7[%c0_142, %c0_143, %c0_144] : memref<1x1x384xf32, #tpu.memory_space<vmem>>, vector<1x1x384xf32>
    %311 = vector.shape_cast %310 : vector<1x1x384xf32> to vector<1x384xf32>
    %312 = vector.broadcast %311 : vector<1x384xf32> to vector<8x384xf32>
    %313 = arith.addf %309, %312 : vector<8x384xf32>
    %314 = vector.extract_strided_slice %305 {offsets = [0, 0], sizes = [8, 128], strides = [1, 1]} : vector<8x384xf32> to vector<8x128xf32>
    %315 = vector.extract_strided_slice %313 {offsets = [0, 0], sizes = [8, 128], strides = [1, 1]} : vector<8x384xf32> to vector<8x128xf32>
    %316 = arith.addf %314, %315 : vector<8x128xf32>
    %317 = arith.negf %316 : vector<8x128xf32>
    %318 = math.exp %317 : vector<8x128xf32>
    %cst_145 = arith.constant 1.000000e+00 : f32
    %319 = vector.broadcast %cst_145 : f32 to vector<8x128xf32>
    %320 = arith.addf %319, %318 : vector<8x128xf32>
    %321 = arith.divf %319, %320 : vector<8x128xf32>
    %322 = vector.extract_strided_slice %305 {offsets = [0, 128], sizes = [8, 128], strides = [1, 1]} : vector<8x384xf32> to vector<8x128xf32>
    %323 = vector.extract_strided_slice %313 {offsets = [0, 128], sizes = [8, 128], strides = [1, 1]} : vector<8x384xf32> to vector<8x128xf32>
    %324 = arith.addf %322, %323 : vector<8x128xf32>
    %325 = arith.negf %324 : vector<8x128xf32>
    %326 = math.exp %325 : vector<8x128xf32>
    %cst_146 = arith.constant 1.000000e+00 : f32
    %327 = vector.broadcast %cst_146 : f32 to vector<8x128xf32>
    %328 = arith.addf %327, %326 : vector<8x128xf32>
    %329 = arith.divf %327, %328 : vector<8x128xf32>
    %330 = vector.extract_strided_slice %305 {offsets = [0, 256], sizes = [8, 128], strides = [1, 1]} : vector<8x384xf32> to vector<8x128xf32>
    %331 = vector.extract_strided_slice %313 {offsets = [0, 256], sizes = [8, 128], strides = [1, 1]} : vector<8x384xf32> to vector<8x128xf32>
    %332 = arith.mulf %321, %331 : vector<8x128xf32>
    %333 = arith.addf %330, %332 : vector<8x128xf32>
    %334 = math.tanh %333 : vector<8x128xf32>
    %cst_147 = arith.constant 1.000000e+00 : f32
    %335 = vector.broadcast %cst_147 : f32 to vector<8x128xf32>
    %336 = arith.subf %335, %329 : vector<8x128xf32>
    %337 = arith.mulf %336, %334 : vector<8x128xf32>
    %338 = arith.mulf %329, %306 : vector<8x128xf32>
    %339 = arith.addf %337, %338 : vector<8x128xf32>
    %c0_148 = arith.constant 0 : index
    %c0_149 = arith.constant 0 : index
    %340 = vector.load %arg11[%c0_148, %c0_149] : memref<8x128xf32, #tpu.memory_space<vmem>>, vector<8x128xf32>
    tpu.vector_store %arg11[%c0_148, %c0_149], %339 {strides = array<i32>} : memref<8x128xf32, #tpu.memory_space<vmem>>, vector<8x128xf32>,
    %341 = arith.index_cast %303 : i32 to index
    %c0_150 = arith.constant 0 : index
    %342 = vector.load %arg9[%341, %c0_150] : memref<64x128xf32, #tpu.memory_space<vmem>>, vector<8x128xf32>
    tpu.vector_store %arg9[%341, %c0_150], %339 {strides = array<i32>} : memref<64x128xf32, #tpu.memory_space<vmem>>, vector<8x128xf32>,
    %c8_i32_151 = arith.constant 8 : i32
    %c1_i32_152 = arith.constant 1 : i32
    %343 = arith.cmpi eq, %arg0, %c1_i32_152 : i32
    %344 = arith.extui %343 : i1 to i32
    %c0_i32_153 = arith.constant 0 : i32
    %345 = arith.cmpi ne, %344, %c0_i32_153 : i32
    scf.if %345 {
      %c0_154 = arith.constant 0 : index
      %c0_155 = arith.constant 0 : index
      %346 = vector.load %arg9[%c0_154, %c0_155] : memref<64x128xf32, #tpu.memory_space<vmem>>, vector<64x128xf32>
      %c0_156 = arith.constant 0 : index
      %c0_157 = arith.constant 0 : index
      %347 = vector.load %arg3[%c0_156, %c0_157] : memref<64x1xf32, #tpu.memory_space<vmem>>, vector<64x1xf32>
      %348 = vector.broadcast %347 : vector<64x1xf32> to vector<64x128xf32>
      %349 = arith.mulf %346, %348 : vector<64x128xf32>
      %c0_158 = arith.constant 0 : index
      %c0_159 = arith.constant 0 : index
      %350 = vector.load %arg8[%c0_158, %c0_159] : memref<64x128xf32, #tpu.memory_space<vmem>>, vector<64x128xf32>
      tpu.vector_store %arg8[%c0_158, %c0_159], %349 {strides = array<i32>} : memref<64x128xf32, #tpu.memory_space<vmem>>, vector<64x128xf32>,
    } else {
    }
    return
  }
  func.func @transform_0(%arg0: i32) -> (i32, i32) {
    %c0_i32 = arith.constant 0 : i32
    %c0_i32_0 = arith.constant 0 : i32
    %c0_i32_1 = arith.constant 0 : i32
    return %c0_i32, %c0_i32_0 : i32, i32
  }
  func.func @transform_1(%arg0: i32) -> (i32, i32, i32) {
    %c0_i32 = arith.constant 0 : i32
    %c0_i32_0 = arith.constant 0 : i32
    %c0_i32_1 = arith.constant 0 : i32
    return %arg0, %c0_i32, %c0_i32_0 : i32, i32, i32
  }
  func.func @transform_2(%arg0: i32) -> (i32, i32) {
    %c0_i32 = arith.constant 0 : i32
    %c0_i32_0 = arith.constant 0 : i32
    %c0_i32_1 = arith.constant 0 : i32
    return %c0_i32, %c0_i32_0 : i32, i32
  }
  func.func @transform_3(%arg0: i32) -> (i32, i32, i32) {
    %c0_i32 = arith.constant 0 : i32
    %c0_i32_0 = arith.constant 0 : i32
    %c0_i32_1 = arith.constant 0 : i32
    return %arg0, %c0_i32, %c0_i32_0 : i32, i32, i32
  }
  func.func @transform_4(%arg0: i32) -> (i32, i32, i32) {
    %c0_i32 = arith.constant 0 : i32
    %c0_i32_0 = arith.constant 0 : i32
    %c0_i32_1 = arith.constant 0 : i32
    return %arg0, %c0_i32, %c0_i32_0 : i32, i32, i32
  }
  func.func @transform_5(%arg0: i32) -> (i32, i32, i32) {
    %c0_i32 = arith.constant 0 : i32
    %c0_i32_0 = arith.constant 0 : i32
    %c0_i32_1 = arith.constant 0 : i32
    return %arg0, %c0_i32, %c0_i32_0 : i32, i32, i32
  }
  func.func @transform_6(%arg0: i32) -> (i32, i32, i32) {
    %c0_i32 = arith.constant 0 : i32
    %c0_i32_0 = arith.constant 0 : i32
    %c0_i32_1 = arith.constant 0 : i32
    return %arg0, %c0_i32, %c0_i32_0 : i32, i32, i32
  }
  func.func @transform_7(%arg0: i32) -> (i32, i32) {
    %c0_i32 = arith.constant 0 : i32
    %c0_i32_0 = arith.constant 0 : i32
    %c0_i32_1 = arith.constant 0 : i32
    return %c0_i32, %c0_i32_0 : i32, i32
  }
}

module attributes {stable_mosaic.version = 11 : i64} {
  func.func @linear_kernel(%arg0: i32, %arg1: i32, %arg2: memref<64x128xf32, #tpu.memory_space<vmem>>, %arg3: memref<128x128xf32, #tpu.memory_space<vmem>>, %arg4: memref<1x128xf32, #tpu.memory_space<vmem>>, %arg5: memref<64x128xf32, #tpu.memory_space<vmem>>) attributes {dimension_semantics = [#tpu.dimension_semantics<parallel>, #tpu.dimension_semantics<parallel>], iteration_bounds = array<i64: 1, 1>, scalar_prefetch = 0 : i64, scratch_operands = 0 : i64, tpu.core_type = #tpu.core_type<tc>, window_params = [{transform_indices = @transform_0, window_bounds = array<i64: 64, 128>}, {transform_indices = @transform_1, window_bounds = array<i64: 128, 128>}, {transform_indices = @transform_2, window_bounds = array<i64: 1, 128>}, {transform_indices = @transform_3, window_bounds = array<i64: 64, 128>}]} {
    %c0 = arith.constant 0 : index
    %c0_0 = arith.constant 0 : index
    %0 = vector.load %arg2[%c0, %c0_0] : memref<64x128xf32, #tpu.memory_space<vmem>>, vector<64x128xf32>
    %c0_1 = arith.constant 0 : index
    %c0_2 = arith.constant 0 : index
    %1 = vector.load %arg3[%c0_1, %c0_2] : memref<128x128xf32, #tpu.memory_space<vmem>>, vector<128x128xf32>
    %cst = arith.constant dense<0.000000e+00> : vector<64x128xf32>
    %2 = tpu.matmul %0, %1, %cst {dimension_numbers = #tpu.dot_dimension_numbers<[1], [0], [0], [1], [0, 0, 1, 1], [], []>} : vector<64x128xf32>, vector<128x128xf32>, vector<64x128xf32> -> vector<64x128xf32>
    %c0_3 = arith.constant 0 : index
    %c0_4 = arith.constant 0 : index
    %3 = vector.load %arg4[%c0_3, %c0_4] : memref<1x128xf32, #tpu.memory_space<vmem>>, vector<1x128xf32>
    %4 = vector.broadcast %3 : vector<1x128xf32> to vector<64x128xf32>
    %5 = arith.addf %2, %4 : vector<64x128xf32>
    %c0_5 = arith.constant 0 : index
    %c0_6 = arith.constant 0 : index
    %6 = vector.load %arg5[%c0_5, %c0_6] : memref<64x128xf32, #tpu.memory_space<vmem>>, vector<64x128xf32>
    tpu.vector_store %arg5[%c0_5, %c0_6], %5 {strides = array<i32>} : memref<64x128xf32, #tpu.memory_space<vmem>>, vector<64x128xf32>,
    return
  }
  func.func @transform_0(%arg0: i32, %arg1: i32) -> (i32, i32) {
    %c0_i32 = arith.constant 0 : i32
    %c0_i32_0 = arith.constant 0 : i32
    return %arg0, %c0_i32 : i32, i32
  }
  func.func @transform_1(%arg0: i32, %arg1: i32) -> (i32, i32) {
    %c0_i32 = arith.constant 0 : i32
    %c0_i32_0 = arith.constant 0 : i32
    return %c0_i32, %arg1 : i32, i32
  }
  func.func @transform_2(%arg0: i32, %arg1: i32) -> (i32, i32) {
    %c0_i32 = arith.constant 0 : i32
    %c0_i32_0 = arith.constant 0 : i32
    return %c0_i32, %arg1 : i32, i32
  }
  func.func @transform_3(%arg0: i32, %arg1: i32) -> (i32, i32) {
    %c0_i32 = arith.constant 0 : i32
    return %arg0, %arg1 : i32, i32
  }
}

</mosaic_0001>

<llo_original>
// kernel: decoder_forward.3
$region0: #{decoder_forward.3}
  #allocation0 [shape = 'u32[]', space=smem, size = 0x4, offset = 0x4, fixed_abs, tag = 'smem constant byte address 0x4 - core index']
  #allocation1 [shape = 'u32[72,128]{1,0:T(1,128)}', space=vmem, size = 0x9000, scoped, tag = 'internal scratch']
  %s0 = inlined_call_operand.vmem [shape: f32[64,128], index: 0, kind: input, shape index: {}]
  %s1 = inlined_call_operand.vmem [shape: f32[128,128], index: 1, kind: input, shape index: {}]
  %s2 = inlined_call_operand.vmem [shape: f32[1,128], index: 2, kind: input, shape index: {}]
  %s3 = inlined_call_operand.vmem [shape: f32[64,128], index: 3, kind: output, shape index: {}]
  %s4 = sld [smem:[#allocation0]]
  $region22: #{decoder_forward.3} parent=0
    _
  %s6 = ssub.s32 1, %s4
  %s7 = scalar_select 0, %s6, %s4
  // Predicated region
  $region2: #{decoder_forward.3} parent=0 // pred_check
    _
  $region3: #{decoder_forward.3} parent=0 // pred_check_branch
    %9 = sbr.rel (0) target = $region5
  $region4: #{decoder_forward.3} parent=0 // pred_region
    _
  $region5: #{decoder_forward.3} parent=0 // pred_fallthru
    _
  // Predicated region
  $region6: #{decoder_forward.3} parent=0 // pred_check
    _
  $region7: #{decoder_forward.3} parent=0 // pred_check_branch
    %11 = sbr.rel (0) target = $region9
  $region8: #{decoder_forward.3} parent=0 // pred_region
    _
  $region9: #{decoder_forward.3} parent=0 // pred_fallthru
    _
  // Predicated region
  $region10: #{decoder_forward.3} parent=0 // pred_check
    _
  $region11: #{decoder_forward.3} parent=0 // pred_check_branch
    %13 = sbr.rel (0) target = $region13
  $region12: #{decoder_forward.3} parent=0 // pred_region
    _
  $region13: #{decoder_forward.3} parent=0 // pred_fallthru
    _
  %v14 = vld [vmem:[%s0] sm:$0xff]
  %v15 = vld [vmem:[%s0 + $0x8] sm:$0xff]
  %v16 = vld [vmem:[%s0 + $0x10] sm:$0xff]
  %v17 = vld [vmem:[%s0 + $0x18] sm:$0xff]
  %v18 = vld [vmem:[%s0 + $0x20] sm:$0xff]
  %v19 = vld [vmem:[%s0 + $0x28] sm:$0xff]
  %v20 = vld [vmem:[%s0 + $0x30] sm:$0xff]
  %v21 = vld [vmem:[%s0 + $0x38] sm:$0xff]
  %v22 = vld [vmem:[%s1] sm:$0xff]
  %v23 = vld [vmem:[%s1 + $0x8] sm:$0xff]
  %v24 = vld [vmem:[%s1 + $0x10] sm:$0xff]
  %v25 = vld [vmem:[%s1 + $0x18] sm:$0xff]
  %v26 = vld [vmem:[%s1 + $0x20] sm:$0xff]
  %v27 = vld [vmem:[%s1 + $0x28] sm:$0xff]
  %v28 = vld [vmem:[%s1 + $0x30] sm:$0xff]
  %v29 = vld [vmem:[%s1 + $0x38] sm:$0xff]
  %v30 = vld [vmem:[%s1 + $0x40] sm:$0xff]
  %v31 = vld [vmem:[%s1 + $0x48] sm:$0xff]
  %v32 = vld [vmem:[%s1 + $0x50] sm:$0xff]
  %v33 = vld [vmem:[%s1 + $0x58] sm:$0xff]
  %v34 = vld [vmem:[%s1 + $0x60] sm:$0xff]
  %v35 = vld [vmem:[%s1 + $0x68] sm:$0xff]
  %v36 = vld [vmem:[%s1 + $0x70] sm:$0xff]
  %v37 = vld [vmem:[%s1 + $0x78] sm:$0xff]
  %v38 = vld [vmem:[%s2] sm:$0x1]
  %v40 = vperm.slane %v38, 0
  %42 = vmatpush.msra.mxu0 %v37
  %43 = vmatpush.msra.mxu0 %v36
  %44 = vmatpush.msra.mxu0 %v35
  %45 = vmatpush.msra.mxu0 %v34
  %46 = vmatpush.msra.mxu0 %v33
  %47 = vmatpush.msra.mxu0 %v32
  %48 = vmatpush.msra.mxu0 %v31
  %49 = vmatpush.msra.mxu0 %v30
  %50 = vmatpush.msra.mxu0 %v29
  %51 = vmatpush.msra.mxu0 %v28
  %52 = vmatpush.msra.mxu0 %v27
  %53 = vmatpush.msra.mxu0 %v26
  %54 = vmatpush.msra.mxu0 %v25
  %55 = vmatpush.msra.mxu0 %v24
  %56 = vmatpush.msra.mxu0 %v23
  %57 = vmatpush.msra.mxu0 %v22
  %58 = vmatmul.f32.gmra.mxu0 %v14
  %v59 = vpop.f32.mrf.mxu0
  %v60 = vadd.f32 %v40, %v59
  %61 = vmatmul.f32.gmra.mxu0 %v15
  %v62 = vpop.f32.mrf.mxu0
  %v63 = vadd.f32 %v40, %v62
  %64 = vmatmul.f32.gmra.mxu0 %v16
  %v65 = vpop.f32.mrf.mxu0
  %v66 = vadd.f32 %v40, %v65
  %67 = vmatmul.f32.gmra.mxu0 %v17
  %v68 = vpop.f32.mrf.mxu0
  %v69 = vadd.f32 %v40, %v68
  %70 = vmatmul.f32.gmra.mxu0 %v18
  %v71 = vpop.f32.mrf.mxu0
  %v72 = vadd.f32 %v40, %v71
  %73 = vmatmul.f32.gmra.mxu0 %v19
  %v74 = vpop.f32.mrf.mxu0
  %v75 = vadd.f32 %v40, %v74
  %76 = vmatmul.f32.gmra.mxu0 %v20
  %v77 = vpop.f32.mrf.mxu0
  %v78 = vadd.f32 %v40, %v77
  %79 = vmatmul.f32.gmra.mxu0 %v21
  %v80 = vpop.f32.mrf.mxu0
  %v81 = vadd.f32 %v40, %v80
  %82 = vdwg.mxu0
  %83 = vst [vmem:[%s3] sm:$0xff] %v60
  %84 = vst [vmem:[%s3 + $0x8] sm:$0xff] %v63
  %85 = vst [vmem:[%s3 + $0x10] sm:$0xff] %v66
  %86 = vst [vmem:[%s3 + $0x18] sm:$0xff] %v69
  %87 = vst [vmem:[%s3 + $0x20] sm:$0xff] %v72
  %88 = vst [vmem:[%s3 + $0x28] sm:$0xff] %v75
  %89 = vst [vmem:[%s3 + $0x30] sm:$0xff] %v78
  %90 = vst [vmem:[%s3 + $0x38] sm:$0xff] %v81
  // Predicated region
  $region14: #{decoder_forward.3} parent=0 // pred_check
    _
  $region15: #{decoder_forward.3} parent=0 // pred_check_branch
    %92 = sbr.rel (0) target = $region17
  $region16: #{decoder_forward.3} parent=0 // pred_region
    _
  $region17: #{decoder_forward.3} parent=0 // pred_fallthru
    _
  // Predicated region
  $region18: #{decoder_forward.3} parent=0 // pred_check
    _
  $region19: #{decoder_forward.3} parent=0 // pred_check_branch
    %94 = sbr.rel (0) target = $region21
  $region20: #{decoder_forward.3} parent=0 // pred_region
    _
  $region21: #{decoder_forward.3} parent=0 // pred_fallthru
    _

// kernel: decoder_forward.2
$region0: #{decoder_forward.2}
  #allocation0 [shape = 'u32[]', space=smem, size = 0x4, offset = 0x4, fixed_abs, tag = 'smem constant byte address 0x4 - core index']
  #allocation1 [shape = 'u32[72,128]{1,0:T(1,128)}', space=vmem, size = 0x9000, scoped, tag = 'internal scratch']
  #allocation2 [shape = 'f32[64,128]{1,0:T(8,128)}', space=vmem, size = 0x8000, scoped, tag = 'scratch operand']
  #allocation3 [shape = 'f32[64,384]{1,0:T(8,128)}', space=vmem, size = 0x18000, scoped, tag = 'scratch operand']
  #allocation4 [shape = 'f32[8,128]{1,0:T(8,128)}', space=vmem, size = 0x1000, scoped, tag = 'scratch operand']
  %s0 = inlined_call_operand.vmem [shape: f32[64,128], index: 0, kind: input, shape index: {}]
  %s1 = inlined_call_operand.vmem [shape: f32[2,8,128], index: 1, kind: input, shape index: {}]
  %s2 = inlined_call_operand.vmem [shape: f32[64,1], index: 2, kind: input, shape index: {}]
  %s3 = inlined_call_operand.vmem [shape: f32[2,128,384], index: 3, kind: input, shape index: {}]
  %s4 = inlined_call_operand.vmem [shape: f32[2,128,384], index: 4, kind: input, shape index: {}]
  %s5 = inlined_call_operand.vmem [shape: f32[2,1,384], index: 5, kind: input, shape index: {}]
  %s6 = inlined_call_operand.vmem [shape: f32[2,1,384], index: 6, kind: input, shape index: {}]
  %s7 = inlined_call_operand.vmem [shape: f32[64,128], index: 7, kind: output, shape index: {}]
  %s8 = sld [smem:[#allocation0]]
  $region69: #{decoder_forward.2} parent=0
    _
  %s10 = ssub.s32 1, %s8
  %s11 = scalar_select 0, %s10, %s8
  loop: start=0, step=1, limit=4
  $region2: #{decoder_forward.2} parent=0 // loop_pre_header
    _
  $region3: #{decoder_forward.2} parent=0 // loop_header
    %s13 = sphi 0, %s17
    %p14 = scmp.ge.s32.totalorder %s13, 4
    %s21 = sphi 0, %s21
    %s23 = sphi 0, %s21
    %s24 = sphi 0, %s23
    %s38 = sphi 0, %s24
    %s44 = sphi 0, %s46
    %s47 = sphi 0, %s44
    %s48 = sphi 0, %s47
    %s64 = sphi 0, %s48
    %s68 = sphi 0, %s68
    %s70 = sphi 0, %s68
    %s71 = sphi 0, %s70
    %s85 = sphi 0, %s71
    %s91 = sphi 0, %s93
    %s94 = sphi 0, %s91
    %s95 = sphi 0, %s94
    %s111 = sphi 0, %s95
    %s117 = sphi 0, %s119
    %s120 = sphi 0, %s117
    %s121 = sphi 0, %s120
    %s137 = sphi 0, %s121
    %s143 = sphi 0, %s145
    %s146 = sphi 0, %s143
    %s147 = sphi 0, %s146
    %s163 = sphi 0, %s147
    %s169 = sphi 0, %s171
    %s172 = sphi 0, %s169
    %s173 = sphi 0, %s172
    %s189 = sphi 0, %s173
    %s193 = sphi 0, %s193
    %s195 = sphi 0, %s193
    %s196 = sphi 0, %s195
    %s210 = sphi 0, %s196
  $region4: #{decoder_forward.2} parent=0 // loop_header_branch
    %16 = sbr.rel (%p14) target = $region8
  $region5: #{decoder_forward.2} parent=0 // loop_body
    %s18 = ssub.s32 %s13, 1
    %s19 = ssub.s32 %s13, 2
    %s20 = sadd.s32 %s13, 1
    %s22 = sadd.s32 %s21, 1
    %p25 = scmp.eq.s32.totalorder %s13, 1
    %p26 = scmp.ne.s32.totalorder %s21, %s23
    %p27 = scmp.eq.s32.totalorder %s13, 0
    %p28 = por %p26, %p27
    %p29 = scmp.ne.s32.totalorder %s21, %s23
    %p30 = scmp.eq.s32.totalorder %s18, 1
    %p31 = por %p29, %p30
    %p32 = scmp.ne.s32.totalorder %s23, %s24
    %p33 = scmp.eq.s32.totalorder %s18, 0
    %p34 = por %p32, %p33
    %p35 = scmp.ne.s32.totalorder %s23, %s24
    %p36 = scmp.eq.s32.totalorder %s19, 1
    %p37 = por %p35, %p36
    %p39 = scmp.ne.s32.totalorder %s24, %s38
    %p40 = scmp.eq.s32.totalorder %s19, 0
    %p41 = por %p39, %p40
    %s42 = ssub.s32 %s13, %s20
    %p43 = scmp.eq.s32.totalorder %s42, 0
    %s45 = sadd.s32 %s44, 1
    %s46 = scalar_select %p43, %s44, %s45
    %p49 = pneg %p43
    %p50 = scmp.eq.s32.totalorder %s13, 1
    %p51 = por %p49, %p50
    %p52 = scmp.ne.s32.totalorder %s44, %s47
    %p53 = scmp.eq.s32.totalorder %s13, 0
    %p54 = por %p52, %p53
    %p55 = scmp.ne.s32.totalorder %s44, %s47
    %p56 = scmp.eq.s32.totalorder %s18, 1
    %p57 = por %p55, %p56
    %p58 = scmp.ne.s32.totalorder %s47, %s48
    %p59 = scmp.eq.s32.totalorder %s18, 0
    %p60 = por %p58, %p59
    %p61 = scmp.ne.s32.totalorder %s47, %s48
    %p62 = scmp.eq.s32.totalorder %s19, 1
    %p63 = por %p61, %p62
    %p65 = scmp.ne.s32.totalorder %s48, %s64
    %p66 = scmp.eq.s32.totalorder %s19, 0
    %p67 = por %p65, %p66
    %s69 = sadd.s32 %s68, 1
    %p72 = scmp.eq.s32.totalorder %s13, 1
    %p73 = scmp.ne.s32.totalorder %s68, %s70
    %p74 = scmp.eq.s32.totalorder %s13, 0
    %p75 = por %p73, %p74
    %p76 = scmp.ne.s32.totalorder %s68, %s70
    %p77 = scmp.eq.s32.totalorder %s18, 1
    %p78 = por %p76, %p77
    %p79 = scmp.ne.s32.totalorder %s70, %s71
    %p80 = scmp.eq.s32.totalorder %s18, 0
    %p81 = por %p79, %p80
    %p82 = scmp.ne.s32.totalorder %s70, %s71
    %p83 = scmp.eq.s32.totalorder %s19, 1
    %p84 = por %p82, %p83
    %p86 = scmp.ne.s32.totalorder %s71, %s85
    %p87 = scmp.eq.s32.totalorder %s19, 0
    %p88 = por %p86, %p87
    %s89 = ssub.s32 %s13, %s20
    %p90 = scmp.eq.s32.totalorder %s89, 0
    %s92 = sadd.s32 %s91, 1
    %s93 = scalar_select %p90, %s91, %s92
    %p96 = pneg %p90
    %p97 = scmp.eq.s32.totalorder %s13, 1
    %p98 = por %p96, %p97
    %p99 = scmp.ne.s32.totalorder %s91, %s94
    %p100 = scmp.eq.s32.totalorder %s13, 0
    %p101 = por %p99, %p100
    %p102 = scmp.ne.s32.totalorder %s91, %s94
    %p103 = scmp.eq.s32.totalorder %s18, 1
    %p104 = por %p102, %p103
    %p105 = scmp.ne.s32.totalorder %s94, %s95
    %p106 = scmp.eq.s32.totalorder %s18, 0
    %p107 = por %p105, %p106
    %p108 = scmp.ne.s32.totalorder %s94, %s95
    %p109 = scmp.eq.s32.totalorder %s19, 1
    %p110 = por %p108, %p109
    %p112 = scmp.ne.s32.totalorder %s95, %s111
    %p113 = scmp.eq.s32.totalorder %s19, 0
    %p114 = por %p112, %p113
    %s115 = ssub.s32 %s13, %s20
    %p116 = scmp.eq.s32.totalorder %s115, 0
    %s118 = sadd.s32 %s117, 1
    %s119 = scalar_select %p116, %s117, %s118
    %p122 = pneg %p116
    %p123 = scmp.eq.s32.totalorder %s13, 1
    %p124 = por %p122, %p123
    %p125 = scmp.ne.s32.totalorder %s117, %s120
    %p126 = scmp.eq.s32.totalorder %s13, 0
    %p127 = por %p125, %p126
    %p128 = scmp.ne.s32.totalorder %s117, %s120
    %p129 = scmp.eq.s32.totalorder %s18, 1
    %p130 = por %p128, %p129
    %p131 = scmp.ne.s32.totalorder %s120, %s121
    %p132 = scmp.eq.s32.totalorder %s18, 0
    %p133 = por %p131, %p132
    %p134 = scmp.ne.s32.totalorder %s120, %s121
    %p135 = scmp.eq.s32.totalorder %s19, 1
    %p136 = por %p134, %p135
    %p138 = scmp.ne.s32.totalorder %s121, %s137
    %p139 = scmp.eq.s32.totalorder %s19, 0
    %p140 = por %p138, %p139
    %s141 = ssub.s32 %s13, %s20
    %p142 = scmp.eq.s32.totalorder %s141, 0
    %s144 = sadd.s32 %s143, 1
    %s145 = scalar_select %p142, %s143, %s144
    %p148 = pneg %p142
    %p149 = scmp.eq.s32.totalorder %s13, 1
    %p150 = por %p148, %p149
    %p151 = scmp.ne.s32.totalorder %s143, %s146
    %p152 = scmp.eq.s32.totalorder %s13, 0
    %p153 = por %p151, %p152
    %p154 = scmp.ne.s32.totalorder %s143, %s146
    %p155 = scmp.eq.s32.totalorder %s18, 1
    %p156 = por %p154, %p155
    %p157 = scmp.ne.s32.totalorder %s146, %s147
    %p158 = scmp.eq.s32.totalorder %s18, 0
    %p159 = por %p157, %p158
    %p160 = scmp.ne.s32.totalorder %s146, %s147
    %p161 = scmp.eq.s32.totalorder %s19, 1
    %p162 = por %p160, %p161
    %p164 = scmp.ne.s32.totalorder %s147, %s163
    %p165 = scmp.eq.s32.totalorder %s19, 0
    %p166 = por %p164, %p165
    %s167 = ssub.s32 %s13, %s20
    %p168 = scmp.eq.s32.totalorder %s167, 0
    %s170 = sadd.s32 %s169, 1
    %s171 = scalar_select %p168, %s169, %s170
    %p174 = pneg %p168
    %p175 = scmp.eq.s32.totalorder %s13, 1
    %p176 = por %p174, %p175
    %p177 = scmp.ne.s32.totalorder %s169, %s172
    %p178 = scmp.eq.s32.totalorder %s13, 0
    %p179 = por %p177, %p178
    %p180 = scmp.ne.s32.totalorder %s169, %s172
    %p181 = scmp.eq.s32.totalorder %s18, 1
    %p182 = por %p180, %p181
    %p183 = scmp.ne.s32.totalorder %s172, %s173
    %p184 = scmp.eq.s32.totalorder %s18, 0
    %p185 = por %p183, %p184
    %p186 = scmp.ne.s32.totalorder %s172, %s173
    %p187 = scmp.eq.s32.totalorder %s19, 1
    %p188 = por %p186, %p187
    %p190 = scmp.ne.s32.totalorder %s173, %s189
    %p191 = scmp.eq.s32.totalorder %s19, 0
    %p192 = por %p190, %p191
    %s194 = sadd.s32 %s193, 1
    %p197 = scmp.eq.s32.totalorder %s13, 1
    %p198 = scmp.ne.s32.totalorder %s193, %s195
    %p199 = scmp.eq.s32.totalorder %s13, 0
    %p200 = por %p198, %p199
    %p201 = scmp.ne.s32.totalorder %s193, %s195
    %p202 = scmp.eq.s32.totalorder %s18, 1
    %p203 = por %p201, %p202
    %p204 = scmp.ne.s32.totalorder %s195, %s196
    %p205 = scmp.eq.s32.totalorder %s18, 0
    %p206 = por %p204, %p205
    %p207 = scmp.ne.s32.totalorder %s195, %s196
    %p208 = scmp.eq.s32.totalorder %s19, 1
    %p209 = por %p207, %p208
    %p211 = scmp.ne.s32.totalorder %s196, %s210
    %p212 = scmp.eq.s32.totalorder %s19, 0
    %p213 = por %p211, %p212
    %p214 = scmp.le.s32.totalorder 1, %s13
    %p215 = scmp.lt.s32.totalorder %s13, 3
    %p216 = pnand %p214, %p215
    %p217 = pneg %p216
    // Predicated region
    $region9: #{decoder_forward.2} parent=5 // pred_check
      _
    $region10: #{decoder_forward.2} parent=5 // pred_check_branch
      %219 = sbr.rel (%p216) target = $region12
    $region11: #{decoder_forward.2} parent=5 // pred_region
      %s220 = ssub.s32 %s13, 1
      // Predicated region
      $region13: #{decoder_forward.2} parent=11 // pred_check
        %p221 = pneg %p34
      $region14: #{decoder_forward.2} parent=11 // pred_check_branch
        %223 = sbr.rel (%p221) target = $region16
      $region15: #{decoder_forward.2} parent=11 // pred_region
        _
      $region16: #{decoder_forward.2} parent=11 // pred_fallthru
        _
      // Predicated region
      $region17: #{decoder_forward.2} parent=11 // pred_check
        %p224 = pneg %p81
      $region18: #{decoder_forward.2} parent=11 // pred_check_branch
        %226 = sbr.rel (%p224) target = $region20
      $region19: #{decoder_forward.2} parent=11 // pred_region
        _
      $region20: #{decoder_forward.2} parent=11 // pred_fallthru
        _
    $region12: #{decoder_forward.2} parent=5 // pred_fallthru
      _
    %p227 = scmp.lt.s32.totalorder %s13, 2
    // Predicated region
    $region21: #{decoder_forward.2} parent=5 // pred_check
      %p228 = pneg %p227
    $region22: #{decoder_forward.2} parent=5 // pred_check_branch
      %230 = sbr.rel (%p228) target = $region24
    $region23: #{decoder_forward.2} parent=5 // pred_region
      // Predicated region
      $region25: #{decoder_forward.2} parent=23 // pred_check
        %p231 = pneg %p54
      $region26: #{decoder_forward.2} parent=23 // pred_check_branch
        %233 = sbr.rel (%p231) target = $region28
      $region27: #{decoder_forward.2} parent=23 // pred_region
        %p234 = scmp.lt.s32.totalorder %s13, 1
        %s235 = scalar_select %p234, %s13, 1
        %s236 = smul.addr %s235, 8
        %s237 = scalar_lea.vmem %s1, %s236
      $region28: #{decoder_forward.2} parent=23 // pred_fallthru
        _
      // Predicated region
      $region29: #{decoder_forward.2} parent=23 // pred_check
        %p238 = pneg %p101
      $region30: #{decoder_forward.2} parent=23 // pred_check_branch
        %240 = sbr.rel (%p238) target = $region32
      $region31: #{decoder_forward.2} parent=23 // pred_region
        %p241 = scmp.lt.s32.totalorder %s13, 1
        %s242 = scalar_select %p241, %s13, 1
        %s243 = smul.addr %s242, 48
        %s244 = smul.addr %s243, 8
        %s245 = scalar_lea.vmem %s3, %s244
      $region32: #{decoder_forward.2} parent=23 // pred_fallthru
        _
      // Predicated region
      $region33: #{decoder_forward.2} parent=23 // pred_check
        %p246 = pneg %p127
      $region34: #{decoder_forward.2} parent=23 // pred_check_branch
        %248 = sbr.rel (%p246) target = $region36
      $region35: #{decoder_forward.2} parent=23 // pred_region
        %p249 = scmp.lt.s32.totalorder %s13, 1
        %s250 = scalar_select %p249, %s13, 1
        %s251 = smul.addr %s250, 48
        %s252 = smul.addr %s251, 8
        %s253 = scalar_lea.vmem %s4, %s252
      $region36: #{decoder_forward.2} parent=23 // pred_fallthru
        _
      // Predicated region
      $region37: #{decoder_forward.2} parent=23 // pred_check
        %p254 = pneg %p153
      $region38: #{decoder_forward.2} parent=23 // pred_check_branch
        %256 = sbr.rel (%p254) target = $region40
      $region39: #{decoder_forward.2} parent=23 // pred_region
        %p257 = scmp.lt.s32.totalorder %s13, 1
        %s258 = scalar_select %p257, %s13, 1
        %s259 = smul.addr %s258, 3
        %s260 = scalar_lea.vmem %s5, %s259
      $region40: #{decoder_forward.2} parent=23 // pred_fallthru
        _
      // Predicated region
      $region41: #{decoder_forward.2} parent=23 // pred_check
        %p261 = pneg %p179
      $region42: #{decoder_forward.2} parent=23 // pred_check_branch
        %263 = sbr.rel (%p261) target = $region44
      $region43: #{decoder_forward.2} parent=23 // pred_region
        %p264 = scmp.lt.s32.totalorder %s13, 1
        %s265 = scalar_select %p264, %s13, 1
        %s266 = smul.addr %s265, 3
        %s267 = scalar_lea.vmem %s6, %s266
      $region44: #{decoder_forward.2} parent=23 // pred_fallthru
        _
    $region24: #{decoder_forward.2} parent=5 // pred_fallthru
      _
    %p268 = scmp.le.s32.totalorder 1, %s13
    %p269 = scmp.lt.s32.totalorder %s13, 3
    %p270 = pnand %p268, %p269
    %p271 = pneg %p270
    // Predicated region
    $region45: #{decoder_forward.2} parent=5 // pred_check
      _
    $region46: #{decoder_forward.2} parent=5 // pred_check_branch
      %273 = sbr.rel (%p270) target = $region48
    $region47: #{decoder_forward.2} parent=5 // pred_region
      %s274 = ssub.s32 %s13, 1
      %p275 = pneg %p34
      %p276 = pneg %p31
      %p277 = scmp.lt.s32.totalorder %s18, 1
      %s278 = scalar_select %p277, %s18, 1
      %s279 = smul.addr %s278, 8
      %s280 = scalar_lea.vmem %s1, %s279
      %p281 = pneg %p60
      %p282 = pneg %p57
      %p283 = pneg %p81
      %p284 = pneg %p78
      %p285 = scmp.lt.s32.totalorder %s18, 1
      %s286 = scalar_select %p285, %s18, 1
      %s287 = smul.addr %s286, 48
      %s288 = smul.addr %s287, 8
      %s289 = scalar_lea.vmem %s3, %s288
      %p290 = pneg %p107
      %p291 = pneg %p104
      %p292 = scmp.lt.s32.totalorder %s18, 1
      %s293 = scalar_select %p292, %s18, 1
      %s294 = smul.addr %s293, 48
      %s295 = smul.addr %s294, 8
      %s296 = scalar_lea.vmem %s4, %s295
      %p297 = pneg %p133
      %p298 = pneg %p130
      %p299 = scmp.lt.s32.totalorder %s18, 1
      %s300 = scalar_select %p299, %s18, 1
      %s301 = smul.addr %s300, 3
      %s302 = scalar_lea.vmem %s5, %s301
      %p303 = pneg %p159
      %p304 = pneg %p156
      %p305 = scmp.lt.s32.totalorder %s18, 1
      %s306 = scalar_select %p305, %s18, 1
      %s307 = smul.addr %s306, 3
      %s308 = scalar_lea.vmem %s6, %s307
      %p309 = pneg %p185
      %p310 = pneg %p182
      %p311 = pneg %p206
      %p312 = pneg %p203
      %p313 = scmp.lt.s32.totalorder %s18, 1
      %s314 = scalar_select %p313, %s18, 1
      %s315 = smul.addr %s314, 8
      %s316 = scalar_lea.vmem %s1, %s315
      %p317 = scmp.lt.s32.totalorder %s18, 1
      %s318 = scalar_select %p317, %s18, 1
      %s319 = smul.addr %s318, 48
      %s320 = smul.addr %s319, 8
      %s321 = scalar_lea.vmem %s3, %s320
      %p322 = scmp.lt.s32.totalorder %s18, 1
      %s323 = scalar_select %p322, %s18, 1
      %s324 = smul.addr %s323, 48
      %s325 = smul.addr %s324, 8
      %s326 = scalar_lea.vmem %s4, %s325
      %p327 = scmp.lt.s32.totalorder %s18, 1
      %s328 = scalar_select %p327, %s18, 1
      %s329 = smul.addr %s328, 3
      %s330 = scalar_lea.vmem %s5, %s329
      %p331 = scmp.lt.s32.totalorder %s18, 1
      %s332 = scalar_select %p331, %s18, 1
      %s333 = smul.addr %s332, 3
      %s334 = scalar_lea.vmem %s6, %s333
      %p335 = scmp.eq.s32.totalorder %s18, 0
      // Predicated region
      $region49: #{decoder_forward.2} parent=47 // pred_check
        %p336 = pneg %p335
      $region50: #{decoder_forward.2} parent=47 // pred_check_branch
        %338 = sbr.rel (%p336) target = $region52
      $region51: #{decoder_forward.2} parent=47 // pred_region
        %v339 = vld [vmem:[%s0] sm:$0xff]
        %v340 = vld [vmem:[%s0 + $0x8] sm:$0xff]
        %v341 = vld [vmem:[%s0 + $0x10] sm:$0xff]
        %v342 = vld [vmem:[%s0 + $0x18] sm:$0xff]
        %v343 = vld [vmem:[%s0 + $0x20] sm:$0xff]
        %v344 = vld [vmem:[%s0 + $0x28] sm:$0xff]
        %v345 = vld [vmem:[%s0 + $0x30] sm:$0xff]
        %v346 = vld [vmem:[%s0 + $0x38] sm:$0xff]
        %347 = vst [vmem:[#allocation2] sm:$0xff] %v339
        %348 = vst [vmem:[#allocation2 + $0x8] sm:$0xff] %v340
        %349 = vst [vmem:[#allocation2 + $0x10] sm:$0xff] %v341
        %350 = vst [vmem:[#allocation2 + $0x18] sm:$0xff] %v342
        %351 = vst [vmem:[#allocation2 + $0x20] sm:$0xff] %v343
        %352 = vst [vmem:[#allocation2 + $0x28] sm:$0xff] %v344
        %353 = vst [vmem:[#allocation2 + $0x30] sm:$0xff] %v345
        %354 = vst [vmem:[#allocation2 + $0x38] sm:$0xff] %v346
      $region52: #{decoder_forward.2} parent=47 // pred_fallthru
        _
      %v355 = vld [vmem:[#allocation2] sm:$0xff]
      %v356 = vld [vmem:[#allocation2 + $0x8] sm:$0xff]
      %v357 = vld [vmem:[#allocation2 + $0x10] sm:$0xff]
      %v358 = vld [vmem:[#allocation2 + $0x18] sm:$0xff]
      %v359 = vld [vmem:[#allocation2 + $0x20] sm:$0xff]
      %v360 = vld [vmem:[#allocation2 + $0x28] sm:$0xff]
      %v361 = vld [vmem:[#allocation2 + $0x30] sm:$0xff]
      %v362 = vld [vmem:[#allocation2 + $0x38] sm:$0xff]
      %v363 = vld [vmem:[%s321] sm:$0xff]
      %v364 = vld [vmem:[%s321 + $0x8] sm:$0xff]
      %v365 = vld [vmem:[%s321 + $0x10] sm:$0xff]
      %v366 = vld [vmem:[%s321 + $0x18] sm:$0xff]
      %v367 = vld [vmem:[%s321 + $0x20] sm:$0xff]
      %v368 = vld [vmem:[%s321 + $0x28] sm:$0xff]
      %v369 = vld [vmem:[%s321 + $0x30] sm:$0xff]
      %v370 = vld [vmem:[%s321 + $0x38] sm:$0xff]
      %v371 = vld [vmem:[%s321 + $0x40] sm:$0xff]
      %v372 = vld [vmem:[%s321 + $0x48] sm:$0xff]
      %v373 = vld [vmem:[%s321 + $0x50] sm:$0xff]
      %v374 = vld [vmem:[%s321 + $0x58] sm:$0xff]
      %v375 = vld [vmem:[%s321 + $0x60] sm:$0xff]
      %v376 = vld [vmem:[%s321 + $0x68] sm:$0xff]
      %v377 = vld [vmem:[%s321 + $0x70] sm:$0xff]
      %v378 = vld [vmem:[%s321 + $0x78] sm:$0xff]
      %v379 = vld [vmem:[%s321 + $0x80] sm:$0xff]
      %v380 = vld [vmem:[%s321 + $0x88] sm:$0xff]
      %v381 = vld [vmem:[%s321 + $0x90] sm:$0xff]
      %v382 = vld [vmem:[%s321 + $0x98] sm:$0xff]
      %v383 = vld [vmem:[%s321 + $0xa0] sm:$0xff]
      %v384 = vld [vmem:[%s321 + $0xa8] sm:$0xff]
      %v385 = vld [vmem:[%s321 + $0xb0] sm:$0xff]
      %v386 = vld [vmem:[%s321 + $0xb8] sm:$0xff]
      %v387 = vld [vmem:[%s321 + $0xc0] sm:$0xff]
      %v388 = vld [vmem:[%s321 + $0xc8] sm:$0xff]
      %v389 = vld [vmem:[%s321 + $0xd0] sm:$0xff]
      %v390 = vld [vmem:[%s321 + $0xd8] sm:$0xff]
      %v391 = vld [vmem:[%s321 + $0xe0] sm:$0xff]
      %v392 = vld [vmem:[%s321 + $0xe8] sm:$0xff]
      %v393 = vld [vmem:[%s321 + $0xf0] sm:$0xff]
      %v394 = vld [vmem:[%s321 + $0xf8] sm:$0xff]
      %v395 = vld [vmem:[%s321 + $0x100] sm:$0xff]
      %v396 = vld [vmem:[%s321 + $0x108] sm:$0xff]
      %v397 = vld [vmem:[%s321 + $0x110] sm:$0xff]
      %v398 = vld [vmem:[%s321 + $0x118] sm:$0xff]
      %v399 = vld [vmem:[%s321 + $0x120] sm:$0xff]
      %v400 = vld [vmem:[%s321 + $0x128] sm:$0xff]
      %v401 = vld [vmem:[%s321 + $0x130] sm:$0xff]
      %v402 = vld [vmem:[%s321 + $0x138] sm:$0xff]
      %v403 = vld [vmem:[%s321 + $0x140] sm:$0xff]
      %v404 = vld [vmem:[%s321 + $0x148] sm:$0xff]
      %v405 = vld [vmem:[%s321 + $0x150] sm:$0xff]
      %v406 = vld [vmem:[%s321 + $0x158] sm:$0xff]
      %v407 = vld [vmem:[%s321 + $0x160] sm:$0xff]
      %v408 = vld [vmem:[%s321 + $0x168] sm:$0xff]
      %v409 = vld [vmem:[%s321 + $0x170] sm:$0xff]
      %v410 = vld [vmem:[%s321 + $0x178] sm:$0xff]
      %v411 = vld [vmem:[%s330] sm:$0x7]
      %v413 = vperm.slane %v411, 0
      %v414 = vperm.slane %v411, 1
      %v415 = vperm.slane %v411, 2
      %419 = vmatpush.msra.mxu0 %v408
      %420 = vmatpush.msra.mxu0 %v405
      %421 = vmatpush.msra.mxu0 %v402
      %422 = vmatpush.msra.mxu0 %v399
      %423 = vmatpush.msra.mxu0 %v396
      %424 = vmatpush.msra.mxu0 %v393
      %425 = vmatpush.msra.mxu0 %v390
      %426 = vmatpush.msra.mxu0 %v387
      %427 = vmatpush.msra.mxu0 %v384
      %428 = vmatpush.msra.mxu0 %v381
      %429 = vmatpush.msra.mxu0 %v378
      %430 = vmatpush.msra.mxu0 %v375
      %431 = vmatpush.msra.mxu0 %v372
      %432 = vmatpush.msra.mxu0 %v369
      %433 = vmatpush.msra.mxu0 %v366
      %434 = vmatpush.msra.mxu0 %v363
      %435 = vmatmul.f32.gmra.mxu0 %v355
      %v436 = vpop.f32.mrf.mxu0
      %v437 = vadd.f32 %v413, %v436
      %438 = vmatmul.f32.gmra.mxu0 %v356
      %v439 = vpop.f32.mrf.mxu0
      %v440 = vadd.f32 %v413, %v439
      %441 = vmatmul.f32.gmra.mxu0 %v357
      %v442 = vpop.f32.mrf.mxu0
      %v443 = vadd.f32 %v413, %v442
      %444 = vmatmul.f32.gmra.mxu0 %v358
      %v445 = vpop.f32.mrf.mxu0
      %v446 = vadd.f32 %v413, %v445
      %447 = vmatmul.f32.gmra.mxu0 %v359
      %v448 = vpop.f32.mrf.mxu0
      %v449 = vadd.f32 %v413, %v448
      %450 = vmatmul.f32.gmra.mxu0 %v360
      %v451 = vpop.f32.mrf.mxu0
      %v452 = vadd.f32 %v413, %v451
      %453 = vmatmul.f32.gmra.mxu0 %v361
      %v454 = vpop.f32.mrf.mxu0
      %v455 = vadd.f32 %v413, %v454
      %456 = vmatmul.f32.gmra.mxu0 %v362
      %v457 = vpop.f32.mrf.mxu0
      %v458 = vadd.f32 %v413, %v457
      %459 = vdwg.mxu0
      %460 = vmatpush.msra.mxu0 %v409
      %461 = vmatpush.msra.mxu0 %v406
      %462 = vmatpush.msra.mxu0 %v403
      %463 = vmatpush.msra.mxu0 %v400
      %464 = vmatpush.msra.mxu0 %v397
      %465 = vmatpush.msra.mxu0 %v394
      %466 = vmatpush.msra.mxu0 %v391
      %467 = vmatpush.msra.mxu0 %v388
      %468 = vmatpush.msra.mxu0 %v385
      %469 = vmatpush.msra.mxu0 %v382
      %470 = vmatpush.msra.mxu0 %v379
      %471 = vmatpush.msra.mxu0 %v376
      %472 = vmatpush.msra.mxu0 %v373
      %473 = vmatpush.msra.mxu0 %v370
      %474 = vmatpush.msra.mxu0 %v367
      %475 = vmatpush.msra.mxu0 %v364
      %476 = vmatmul.f32.gmra.mxu0 %v355
      %v477 = vpop.f32.mrf.mxu0
      %v478 = vadd.f32 %v414, %v477
      %479 = vmatmul.f32.gmra.mxu0 %v356
      %v480 = vpop.f32.mrf.mxu0
      %v481 = vadd.f32 %v414, %v480
      %482 = vmatmul.f32.gmra.mxu0 %v357
      %v483 = vpop.f32.mrf.mxu0
      %v484 = vadd.f32 %v414, %v483
      %485 = vmatmul.f32.gmra.mxu0 %v358
      %v486 = vpop.f32.mrf.mxu0
      %v487 = vadd.f32 %v414, %v486
      %488 = vmatmul.f32.gmra.mxu0 %v359
      %v489 = vpop.f32.mrf.mxu0
      %v490 = vadd.f32 %v414, %v489
      %491 = vmatmul.f32.gmra.mxu0 %v360
      %v492 = vpop.f32.mrf.mxu0
      %v493 = vadd.f32 %v414, %v492
      %494 = vmatmul.f32.gmra.mxu0 %v361
      %v495 = vpop.f32.mrf.mxu0
      %v496 = vadd.f32 %v414, %v495
      %497 = vmatmul.f32.gmra.mxu0 %v362
      %v498 = vpop.f32.mrf.mxu0
      %v499 = vadd.f32 %v414, %v498
      %500 = vdwg.mxu0
      %501 = vmatpush.msra.mxu0 %v410
      %502 = vmatpush.msra.mxu0 %v407
      %503 = vmatpush.msra.mxu0 %v404
      %504 = vmatpush.msra.mxu0 %v401
      %505 = vmatpush.msra.mxu0 %v398
      %506 = vmatpush.msra.mxu0 %v395
      %507 = vmatpush.msra.mxu0 %v392
      %508 = vmatpush.msra.mxu0 %v389
      %509 = vmatpush.msra.mxu0 %v386
      %510 = vmatpush.msra.mxu0 %v383
      %511 = vmatpush.msra.mxu0 %v380
      %512 = vmatpush.msra.mxu0 %v377
      %513 = vmatpush.msra.mxu0 %v374
      %514 = vmatpush.msra.mxu0 %v371
      %515 = vmatpush.msra.mxu0 %v368
      %516 = vmatpush.msra.mxu0 %v365
      %517 = vmatmul.f32.gmra.mxu0 %v355
      %v518 = vpop.f32.mrf.mxu0
      %v519 = vadd.f32 %v415, %v518
      %520 = vmatmul.f32.gmra.mxu0 %v356
      %v521 = vpop.f32.mrf.mxu0
      %v522 = vadd.f32 %v415, %v521
      %523 = vmatmul.f32.gmra.mxu0 %v357
      %v524 = vpop.f32.mrf.mxu0
      %v525 = vadd.f32 %v415, %v524
      %526 = vmatmul.f32.gmra.mxu0 %v358
      %v527 = vpop.f32.mrf.mxu0
      %v528 = vadd.f32 %v415, %v527
      %529 = vmatmul.f32.gmra.mxu0 %v359
      %v530 = vpop.f32.mrf.mxu0
      %v531 = vadd.f32 %v415, %v530
      %532 = vmatmul.f32.gmra.mxu0 %v360
      %v533 = vpop.f32.mrf.mxu0
      %v534 = vadd.f32 %v415, %v533
      %535 = vmatmul.f32.gmra.mxu0 %v361
      %v536 = vpop.f32.mrf.mxu0
      %v537 = vadd.f32 %v415, %v536
      %538 = vmatmul.f32.gmra.mxu0 %v362
      %v539 = vpop.f32.mrf.mxu0
      %v540 = vadd.f32 %v415, %v539
      %541 = vdwg.mxu0
      %542 = vst [vmem:[#allocation3] sm:$0xff] %v437
      %543 = vst [vmem:[#allocation3 + $0x8] sm:$0xff] %v478
      %544 = vst [vmem:[#allocation3 + $0x10] sm:$0xff] %v519
      %545 = vst [vmem:[#allocation3 + $0x18] sm:$0xff] %v440
      %546 = vst [vmem:[#allocation3 + $0x20] sm:$0xff] %v481
      %547 = vst [vmem:[#allocation3 + $0x28] sm:$0xff] %v522
      %548 = vst [vmem:[#allocation3 + $0x30] sm:$0xff] %v443
      %549 = vst [vmem:[#allocation3 + $0x38] sm:$0xff] %v484
      %550 = vst [vmem:[#allocation3 + $0x40] sm:$0xff] %v525
      %551 = vst [vmem:[#allocation3 + $0x48] sm:$0xff] %v446
      %552 = vst [vmem:[#allocation3 + $0x50] sm:$0xff] %v487
      %553 = vst [vmem:[#allocation3 + $0x58] sm:$0xff] %v528
      %554 = vst [vmem:[#allocation3 + $0x60] sm:$0xff] %v449
      %555 = vst [vmem:[#allocation3 + $0x68] sm:$0xff] %v490
      %556 = vst [vmem:[#allocation3 + $0x70] sm:$0xff] %v531
      %557 = vst [vmem:[#allocation3 + $0x78] sm:$0xff] %v452
      %558 = vst [vmem:[#allocation3 + $0x80] sm:$0xff] %v493
      %559 = vst [vmem:[#allocation3 + $0x88] sm:$0xff] %v534
      %560 = vst [vmem:[#allocation3 + $0x90] sm:$0xff] %v455
      %561 = vst [vmem:[#allocation3 + $0x98] sm:$0xff] %v496
      %562 = vst [vmem:[#allocation3 + $0xa0] sm:$0xff] %v537
      %563 = vst [vmem:[#allocation3 + $0xa8] sm:$0xff] %v458
      %564 = vst [vmem:[#allocation3 + $0xb0] sm:$0xff] %v499
      %565 = vst [vmem:[#allocation3 + $0xb8] sm:$0xff] %v540
      %v566 = vld [vmem:[%s316] sm:$0xff]
      %567 = vst [vmem:[#allocation4] sm:$0xff] %v566
      %s568 = smul.u32 0, 3
      %s569 = smul.addr %s568, 8
      %s570 = scalar_lea.vmem [#allocation3], %s569
      %v571 = vld [vmem:[%s570] sm:$0xff]
      %v572 = vld [vmem:[%s570 + $0x8] sm:$0xff]
      %v573 = vld [vmem:[%s570 + $0x10] sm:$0xff]
      %v574 = vld [vmem:[#allocation4] sm:$0xff]
      %v575 = vld [vmem:[%s326] sm:$0xff]
      %v576 = vld [vmem:[%s326 + $0x8] sm:$0xff]
      %v577 = vld [vmem:[%s326 + $0x10] sm:$0xff]
      %v578 = vld [vmem:[%s326 + $0x18] sm:$0xff]
      %v579 = vld [vmem:[%s326 + $0x20] sm:$0xff]
      %v580 = vld [vmem:[%s326 + $0x28] sm:$0xff]
      %v581 = vld [vmem:[%s326 + $0x30] sm:$0xff]
      %v582 = vld [vmem:[%s326 + $0x38] sm:$0xff]
      %v583 = vld [vmem:[%s326 + $0x40] sm:$0xff]
      %v584 = vld [vmem:[%s326 + $0x48] sm:$0xff]
      %v585 = vld [vmem:[%s326 + $0x50] sm:$0xff]
      %v586 = vld [vmem:[%s326 + $0x58] sm:$0xff]
      %v587 = vld [vmem:[%s326 + $0x60] sm:$0xff]
      %v588 = vld [vmem:[%s326 + $0x68] sm:$0xff]
      %v589 = vld [vmem:[%s326 + $0x70] sm:$0xff]
      %v590 = vld [vmem:[%s326 + $0x78] sm:$0xff]
      %v591 = vld [vmem:[%s326 + $0x80] sm:$0xff]
      %v592 = vld [vmem:[%s326 + $0x88] sm:$0xff]
      %v593 = vld [vmem:[%s326 + $0x90] sm:$0xff]
      %v594 = vld [vmem:[%s326 + $0x98] sm:$0xff]
      %v595 = vld [vmem:[%s326 + $0xa0] sm:$0xff]
      %v596 = vld [vmem:[%s326 + $0xa8] sm:$0xff]
      %v597 = vld [vmem:[%s326 + $0xb0] sm:$0xff]
      %v598 = vld [vmem:[%s326 + $0xb8] sm:$0xff]
      %v599 = vld [vmem:[%s326 + $0xc0] sm:$0xff]
      %v600 = vld [vmem:[%s326 + $0xc8] sm:$0xff]
      %v601 = vld [vmem:[%s326 + $0xd0] sm:$0xff]
      %v602 = vld [vmem:[%s326 + $0xd8] sm:$0xff]
      %v603 = vld [vmem:[%s326 + $0xe0] sm:$0xff]
      %v604 = vld [vmem:[%s326 + $0xe8] sm:$0xff]
      %v605 = vld [vmem:[%s326 + $0xf0] sm:$0xff]
      %v606 = vld [vmem:[%s326 + $0xf8] sm:$0xff]
      %v607 = vld [vmem:[%s326 + $0x100] sm:$0xff]
      %v608 = vld [vmem:[%s326 + $0x108] sm:$0xff]
      %v609 = vld [vmem:[%s326 + $0x110] sm:$0xff]
      %v610 = vld [vmem:[%s326 + $0x118] sm:$0xff]
      %v611 = vld [vmem:[%s326 + $0x120] sm:$0xff]
      %v612 = vld [vmem:[%s326 + $0x128] sm:$0xff]
      %v613 = vld [vmem:[%s326 + $0x130] sm:$0xff]
      %v614 = vld [vmem:[%s326 + $0x138] sm:$0xff]
      %v615 = vld [vmem:[%s326 + $0x140] sm:$0xff]
      %v616 = vld [vmem:[%s326 + $0x148] sm:$0xff]
      %v617 = vld [vmem:[%s326 + $0x150] sm:$0xff]
      %v618 = vld [vmem:[%s326 + $0x158] sm:$0xff]
      %v619 = vld [vmem:[%s326 + $0x160] sm:$0xff]
      %v620 = vld [vmem:[%s326 + $0x168] sm:$0xff]
      %v621 = vld [vmem:[%s326 + $0x170] sm:$0xff]
      %v622 = vld [vmem:[%s326 + $0x178] sm:$0xff]
      %v623 = vld [vmem:[%s334] sm:$0x7]
      %v625 = vperm.slane %v623, 0
      %v626 = vperm.slane %v623, 1
      %v627 = vperm.slane %v623, 2
      %631 = vmatpush.msra.mxu0 %v620
      %632 = vmatpush.msra.mxu0 %v617
      %633 = vmatpush.msra.mxu0 %v614
      %634 = vmatpush.msra.mxu0 %v611
      %635 = vmatpush.msra.mxu0 %v608
      %636 = vmatpush.msra.mxu0 %v605
      %637 = vmatpush.msra.mxu0 %v602
      %638 = vmatpush.msra.mxu0 %v599
      %639 = vmatpush.msra.mxu0 %v596
      %640 = vmatpush.msra.mxu0 %v593
      %641 = vmatpush.msra.mxu0 %v590
      %642 = vmatpush.msra.mxu0 %v587
      %643 = vmatpush.msra.mxu0 %v584
      %644 = vmatpush.msra.mxu0 %v581
      %645 = vmatpush.msra.mxu0 %v578
      %646 = vmatpush.msra.mxu0 %v575
      %647 = vmatmul.f32.gmra.mxu0 %v574
      %v648 = vpop.f32.mrf.mxu0
      %v649 = vadd.f32 %v625, %v648
      %650 = vdwg.mxu0
      %651 = vmatpush.msra.mxu0 %v621
      %652 = vmatpush.msra.mxu0 %v618
      %653 = vmatpush.msra.mxu0 %v615
      %654 = vmatpush.msra.mxu0 %v612
      %655 = vmatpush.msra.mxu0 %v609
      %656 = vmatpush.msra.mxu0 %v606
      %657 = vmatpush.msra.mxu0 %v603
      %658 = vmatpush.msra.mxu0 %v600
      %659 = vmatpush.msra.mxu0 %v597
      %660 = vmatpush.msra.mxu0 %v594
      %661 = vmatpush.msra.mxu0 %v591
      %662 = vmatpush.msra.mxu0 %v588
      %663 = vmatpush.msra.mxu0 %v585
      %664 = vmatpush.msra.mxu0 %v582
      %665 = vmatpush.msra.mxu0 %v579
      %666 = vmatpush.msra.mxu0 %v576
      %667 = vmatmul.f32.gmra.mxu0 %v574
      %v668 = vpop.f32.mrf.mxu0
      %v669 = vadd.f32 %v626, %v668
      %670 = vdwg.mxu0
      %671 = vmatpush.msra.mxu0 %v622
      %672 = vmatpush.msra.mxu0 %v619
      %673 = vmatpush.msra.mxu0 %v616
      %674 = vmatpush.msra.mxu0 %v613
      %675 = vmatpush.msra.mxu0 %v610
      %676 = vmatpush.msra.mxu0 %v607
      %677 = vmatpush.msra.mxu0 %v604
      %678 = vmatpush.msra.mxu0 %v601
      %679 = vmatpush.msra.mxu0 %v598
      %680 = vmatpush.msra.mxu0 %v595
      %681 = vmatpush.msra.mxu0 %v592
      %682 = vmatpush.msra.mxu0 %v589
      %683 = vmatpush.msra.mxu0 %v586
      %684 = vmatpush.msra.mxu0 %v583
      %685 = vmatpush.msra.mxu0 %v580
      %686 = vmatpush.msra.mxu0 %v577
      %687 = vmatmul.f32.gmra.mxu0 %v574
      %v688 = vpop.f32.mrf.mxu0
      %v689 = vadd.f32 %v627, %v688
      %690 = vdwg.mxu0
      %v691 = vadd.f32 %v571, %v649
      %v692 = vxor.u32 %v691, 2147483648
      %v693 = vmul.f32 %v692, 1.442695
      %v694 = vpow.pop %v693
      %v695 = vadd.f32 %v694, 1.0
      %v696 = vrcp.pop %v695
      %v697 = vmul.f32 %v695, %v696
      %v698 = vsub.f32 1.0, %v697
      %v699 = vmul.f32 %v696, %v698
      %v700 = vadd.f32 %v696, %v699
      %vm701 = vweird.f32 %v695
      %vm702 = vweird.f32 %v696
      %vm703 = vmor %vm701, %vm702
      %v704 = vsel %vm703, %v696, %v700
      %v705 = vand.u32 2147483647, %v695
      %vm706 = vcmp.eq.f32.partialorder %v705, 8.507059e+37
      %v707 = vand.u32 %v695, 2147483648
      %v708 = vor.u32 1.1754944e-38, %v707
      %v709 = vsel %vm706, %v708, %v704
      %v710 = vmul.f32 1.0, %v709
      %v711 = vadd.f32 %v572, %v669
      %v712 = vxor.u32 %v711, 2147483648
      %v713 = vmul.f32 %v712, 1.442695
      %v714 = vpow.pop %v713
      %v715 = vadd.f32 %v714, 1.0
      %v716 = vrcp.pop %v715
      %v717 = vmul.f32 %v715, %v716
      %v718 = vsub.f32 1.0, %v717
      %v719 = vmul.f32 %v716, %v718
      %v720 = vadd.f32 %v716, %v719
      %vm721 = vweird.f32 %v715
      %vm722 = vweird.f32 %v716
      %vm723 = vmor %vm721, %vm722
      %v724 = vsel %vm723, %v716, %v720
      %v725 = vand.u32 2147483647, %v715
      %vm726 = vcmp.eq.f32.partialorder %v725, 8.507059e+37
      %v727 = vand.u32 %v715, 2147483648
      %v728 = vor.u32 1.1754944e-38, %v727
      %v729 = vsel %vm726, %v728, %v724
      %v730 = vmul.f32 1.0, %v729
      %v731 = vmul.f32 %v710, %v689
      %v732 = vadd.f32 %v573, %v731
      %v733 = vtanh.pop %v732
      %v734 = vsub.f32 1.0, %v730
      %v735 = vmul.f32 %v734, %v733
      %v736 = vmul.f32 %v730, %v574
      %v737 = vadd.f32 %v735, %v736
      %738 = vst [vmem:[#allocation4] sm:$0xff] %v737
      %739 = vst [vmem:[#allocation2] sm:$0xff] %v737
      %s740 = smul.u32 1, 3
      %s741 = smul.addr %s740, 8
      %s742 = scalar_lea.vmem [#allocation3], %s741
      %v743 = vld [vmem:[%s742] sm:$0xff]
      %v744 = vld [vmem:[%s742 + $0x8] sm:$0xff]
      %v745 = vld [vmem:[%s742 + $0x10] sm:$0xff]
      %v746 = vld [vmem:[#allocation4] sm:$0xff]
      %v747 = vld [vmem:[%s326] sm:$0xff]
      %v748 = vld [vmem:[%s326 + $0x8] sm:$0xff]
      %v749 = vld [vmem:[%s326 + $0x10] sm:$0xff]
      %v750 = vld [vmem:[%s326 + $0x18] sm:$0xff]
      %v751 = vld [vmem:[%s326 + $0x20] sm:$0xff]
      %v752 = vld [vmem:[%s326 + $0x28] sm:$0xff]
      %v753 = vld [vmem:[%s326 + $0x30] sm:$0xff]
      %v754 = vld [vmem:[%s326 + $0x38] sm:$0xff]
      %v755 = vld [vmem:[%s326 + $0x40] sm:$0xff]
      %v756 = vld [vmem:[%s326 + $0x48] sm:$0xff]
      %v757 = vld [vmem:[%s326 + $0x50] sm:$0xff]
      %v758 = vld [vmem:[%s326 + $0x58] sm:$0xff]
      %v759 = vld [vmem:[%s326 + $0x60] sm:$0xff]
      %v760 = vld [vmem:[%s326 + $0x68] sm:$0xff]
      %v761 = vld [vmem:[%s326 + $0x70] sm:$0xff]
      %v762 = vld [vmem:[%s326 + $0x78] sm:$0xff]
      %v763 = vld [vmem:[%s326 + $0x80] sm:$0xff]
      %v764 = vld [vmem:[%s326 + $0x88] sm:$0xff]
      %v765 = vld [vmem:[%s326 + $0x90] sm:$0xff]
      %v766 = vld [vmem:[%s326 + $0x98] sm:$0xff]
      %v767 = vld [vmem:[%s326 + $0xa0] sm:$0xff]
      %v768 = vld [vmem:[%s326 + $0xa8] sm:$0xff]
      %v769 = vld [vmem:[%s326 + $0xb0] sm:$0xff]
      %v770 = vld [vmem:[%s326 + $0xb8] sm:$0xff]
      %v771 = vld [vmem:[%s326 + $0xc0] sm:$0xff]
      %v772 = vld [vmem:[%s326 + $0xc8] sm:$0xff]
      %v773 = vld [vmem:[%s326 + $0xd0] sm:$0xff]
      %v774 = vld [vmem:[%s326 + $0xd8] sm:$0xff]
      %v775 = vld [vmem:[%s326 + $0xe0] sm:$0xff]
      %v776 = vld [vmem:[%s326 + $0xe8] sm:$0xff]
      %v777 = vld [vmem:[%s326 + $0xf0] sm:$0xff]
      %v778 = vld [vmem:[%s326 + $0xf8] sm:$0xff]
      %v779 = vld [vmem:[%s326 + $0x100] sm:$0xff]
      %v780 = vld [vmem:[%s326 + $0x108] sm:$0xff]
      %v781 = vld [vmem:[%s326 + $0x110] sm:$0xff]
      %v782 = vld [vmem:[%s326 + $0x118] sm:$0xff]
      %v783 = vld [vmem:[%s326 + $0x120] sm:$0xff]
      %v784 = vld [vmem:[%s326 + $0x128] sm:$0xff]
      %v785 = vld [vmem:[%s326 + $0x130] sm:$0xff]
      %v786 = vld [vmem:[%s326 + $0x138] sm:$0xff]
      %v787 = vld [vmem:[%s326 + $0x140] sm:$0xff]
      %v788 = vld [vmem:[%s326 + $0x148] sm:$0xff]
      %v789 = vld [vmem:[%s326 + $0x150] sm:$0xff]
      %v790 = vld [vmem:[%s326 + $0x158] sm:$0xff]
      %v791 = vld [vmem:[%s326 + $0x160] sm:$0xff]
      %v792 = vld [vmem:[%s326 + $0x168] sm:$0xff]
      %v793 = vld [vmem:[%s326 + $0x170] sm:$0xff]
      %v794 = vld [vmem:[%s326 + $0x178] sm:$0xff]
      %v795 = vld [vmem:[%s334] sm:$0x7]
      %v797 = vperm.slane %v795, 0
      %v798 = vperm.slane %v795, 1
      %v799 = vperm.slane %v795, 2
      %803 = vmatpush.msra.mxu0 %v792
      %804 = vmatpush.msra.mxu0 %v789
      %805 = vmatpush.msra.mxu0 %v786
      %806 = vmatpush.msra.mxu0 %v783
      %807 = vmatpush.msra.mxu0 %v780
      %808 = vmatpush.msra.mxu0 %v777
      %809 = vmatpush.msra.mxu0 %v774
      %810 = vmatpush.msra.mxu0 %v771
      %811 = vmatpush.msra.mxu0 %v768
      %812 = vmatpush.msra.mxu0 %v765
      %813 = vmatpush.msra.mxu0 %v762
      %814 = vmatpush.msra.mxu0 %v759
      %815 = vmatpush.msra.mxu0 %v756
      %816 = vmatpush.msra.mxu0 %v753
      %817 = vmatpush.msra.mxu0 %v750
      %818 = vmatpush.msra.mxu0 %v747
      %819 = vmatmul.f32.gmra.mxu0 %v746
      %v820 = vpop.f32.mrf.mxu0
      %v821 = vadd.f32 %v797, %v820
      %822 = vdwg.mxu0
      %823 = vmatpush.msra.mxu0 %v793
      %824 = vmatpush.msra.mxu0 %v790
      %825 = vmatpush.msra.mxu0 %v787
      %826 = vmatpush.msra.mxu0 %v784
      %827 = vmatpush.msra.mxu0 %v781
      %828 = vmatpush.msra.mxu0 %v778
      %829 = vmatpush.msra.mxu0 %v775
      %830 = vmatpush.msra.mxu0 %v772
      %831 = vmatpush.msra.mxu0 %v769
      %832 = vmatpush.msra.mxu0 %v766
      %833 = vmatpush.msra.mxu0 %v763
      %834 = vmatpush.msra.mxu0 %v760
      %835 = vmatpush.msra.mxu0 %v757
      %836 = vmatpush.msra.mxu0 %v754
      %837 = vmatpush.msra.mxu0 %v751
      %838 = vmatpush.msra.mxu0 %v748
      %839 = vmatmul.f32.gmra.mxu0 %v746
      %v840 = vpop.f32.mrf.mxu0
      %v841 = vadd.f32 %v798, %v840
      %842 = vdwg.mxu0
      %843 = vmatpush.msra.mxu0 %v794
      %844 = vmatpush.msra.mxu0 %v791
      %845 = vmatpush.msra.mxu0 %v788
      %846 = vmatpush.msra.mxu0 %v785
      %847 = vmatpush.msra.mxu0 %v782
      %848 = vmatpush.msra.mxu0 %v779
      %849 = vmatpush.msra.mxu0 %v776
      %850 = vmatpush.msra.mxu0 %v773
      %851 = vmatpush.msra.mxu0 %v770
      %852 = vmatpush.msra.mxu0 %v767
      %853 = vmatpush.msra.mxu0 %v764
      %854 = vmatpush.msra.mxu0 %v761
      %855 = vmatpush.msra.mxu0 %v758
      %856 = vmatpush.msra.mxu0 %v755
      %857 = vmatpush.msra.mxu0 %v752
      %858 = vmatpush.msra.mxu0 %v749
      %859 = vmatmul.f32.gmra.mxu0 %v746
      %v860 = vpop.f32.mrf.mxu0
      %v861 = vadd.f32 %v799, %v860
      %862 = vdwg.mxu0
      %v863 = vadd.f32 %v743, %v821
      %v864 = vxor.u32 %v863, 2147483648
      %v865 = vmul.f32 %v864, 1.442695
      %v866 = vpow.pop %v865
      %v867 = vadd.f32 %v866, 1.0
      %v868 = vrcp.pop %v867
      %v869 = vmul.f32 %v867, %v868
      %v870 = vsub.f32 1.0, %v869
      %v871 = vmul.f32 %v868, %v870
      %v872 = vadd.f32 %v868, %v871
      %vm873 = vweird.f32 %v867
      %vm874 = vweird.f32 %v868
      %vm875 = vmor %vm873, %vm874
      %v876 = vsel %vm875, %v868, %v872
      %v877 = vand.u32 2147483647, %v867
      %vm878 = vcmp.eq.f32.partialorder %v877, 8.507059e+37
      %v879 = vand.u32 %v867, 2147483648
      %v880 = vor.u32 1.1754944e-38, %v879
      %v881 = vsel %vm878, %v880, %v876
      %v882 = vmul.f32 1.0, %v881
      %v883 = vadd.f32 %v744, %v841
      %v884 = vxor.u32 %v883, 2147483648
      %v885 = vmul.f32 %v884, 1.442695
      %v886 = vpow.pop %v885
      %v887 = vadd.f32 %v886, 1.0
      %v888 = vrcp.pop %v887
      %v889 = vmul.f32 %v887, %v888
      %v890 = vsub.f32 1.0, %v889
      %v891 = vmul.f32 %v888, %v890
      %v892 = vadd.f32 %v888, %v891
      %vm893 = vweird.f32 %v887
      %vm894 = vweird.f32 %v888
      %vm895 = vmor %vm893, %vm894
      %v896 = vsel %vm895, %v888, %v892
      %v897 = vand.u32 2147483647, %v887
      %vm898 = vcmp.eq.f32.partialorder %v897, 8.507059e+37
      %v899 = vand.u32 %v887, 2147483648
      %v900 = vor.u32 1.1754944e-38, %v899
      %v901 = vsel %vm898, %v900, %v896
      %v902 = vmul.f32 1.0, %v901
      %v903 = vmul.f32 %v882, %v861
      %v904 = vadd.f32 %v745, %v903
      %v905 = vtanh.pop %v904
      %v906 = vsub.f32 1.0, %v902
      %v907 = vmul.f32 %v906, %v905
      %v908 = vmul.f32 %v902, %v746
      %v909 = vadd.f32 %v907, %v908
      %910 = vst [vmem:[#allocation4] sm:$0xff] %v909
      %s911 = scalar_lea.vmem [#allocation2], 8
      %912 = vst [vmem:[%s911] sm:$0xff] %v909
      %s913 = smul.u32 2, 3
      %s914 = smul.addr %s913, 8
      %s915 = scalar_lea.vmem [#allocation3], %s914
      %v916 = vld [vmem:[%s915] sm:$0xff]
      %v917 = vld [vmem:[%s915 + $0x8] sm:$0xff]
      %v918 = vld [vmem:[%s915 + $0x10] sm:$0xff]
      %v919 = vld [vmem:[#allocation4] sm:$0xff]
      %v920 = vld [vmem:[%s326] sm:$0xff]
      %v921 = vld [vmem:[%s326 + $0x8] sm:$0xff]
      %v922 = vld [vmem:[%s326 + $0x10] sm:$0xff]
      %v923 = vld [vmem:[%s326 + $0x18] sm:$0xff]
      %v924 = vld [vmem:[%s326 + $0x20] sm:$0xff]
      %v925 = vld [vmem:[%s326 + $0x28] sm:$0xff]
      %v926 = vld [vmem:[%s326 + $0x30] sm:$0xff]
      %v927 = vld [vmem:[%s326 + $0x38] sm:$0xff]
      %v928 = vld [vmem:[%s326 + $0x40] sm:$0xff]
      %v929 = vld [vmem:[%s326 + $0x48] sm:$0xff]
      %v930 = vld [vmem:[%s326 + $0x50] sm:$0xff]
      %v931 = vld [vmem:[%s326 + $0x58] sm:$0xff]
      %v932 = vld [vmem:[%s326 + $0x60] sm:$0xff]
      %v933 = vld [vmem:[%s326 + $0x68] sm:$0xff]
      %v934 = vld [vmem:[%s326 + $0x70] sm:$0xff]
      %v935 = vld [vmem:[%s326 + $0x78] sm:$0xff]
      %v936 = vld [vmem:[%s326 + $0x80] sm:$0xff]
      %v937 = vld [vmem:[%s326 + $0x88] sm:$0xff]
      %v938 = vld [vmem:[%s326 + $0x90] sm:$0xff]
      %v939 = vld [vmem:[%s326 + $0x98] sm:$0xff]
      %v940 = vld [vmem:[%s326 + $0xa0] sm:$0xff]
      %v941 = vld [vmem:[%s326 + $0xa8] sm:$0xff]
      %v942 = vld [vmem:[%s326 + $0xb0] sm:$0xff]
      %v943 = vld [vmem:[%s326 + $0xb8] sm:$0xff]
      %v944 = vld [vmem:[%s326 + $0xc0] sm:$0xff]
      %v945 = vld [vmem:[%s326 + $0xc8] sm:$0xff]
      %v946 = vld [vmem:[%s326 + $0xd0] sm:$0xff]
      %v947 = vld [vmem:[%s326 + $0xd8] sm:$0xff]
      %v948 = vld [vmem:[%s326 + $0xe0] sm:$0xff]
      %v949 = vld [vmem:[%s326 + $0xe8] sm:$0xff]
      %v950 = vld [vmem:[%s326 + $0xf0] sm:$0xff]
      %v951 = vld [vmem:[%s326 + $0xf8] sm:$0xff]
      %v952 = vld [vmem:[%s326 + $0x100] sm:$0xff]
      %v953 = vld [vmem:[%s326 + $0x108] sm:$0xff]
      %v954 = vld [vmem:[%s326 + $0x110] sm:$0xff]
      %v955 = vld [vmem:[%s326 + $0x118] sm:$0xff]
      %v956 = vld [vmem:[%s326 + $0x120] sm:$0xff]
      %v957 = vld [vmem:[%s326 + $0x128] sm:$0xff]
      %v958 = vld [vmem:[%s326 + $0x130] sm:$0xff]
      %v959 = vld [vmem:[%s326 + $0x138] sm:$0xff]
      %v960 = vld [vmem:[%s326 + $0x140] sm:$0xff]
      %v961 = vld [vmem:[%s326 + $0x148] sm:$0xff]
      %v962 = vld [vmem:[%s326 + $0x150] sm:$0xff]
      %v963 = vld [vmem:[%s326 + $0x158] sm:$0xff]
      %v964 = vld [vmem:[%s326 + $0x160] sm:$0xff]
      %v965 = vld [vmem:[%s326 + $0x168] sm:$0xff]
      %v966 = vld [vmem:[%s326 + $0x170] sm:$0xff]
      %v967 = vld [vmem:[%s326 + $0x178] sm:$0xff]
      %v968 = vld [vmem:[%s334] sm:$0x7]
      %v970 = vperm.slane %v968, 0
      %v971 = vperm.slane %v968, 1
      %v972 = vperm.slane %v968, 2
      %976 = vmatpush.msra.mxu0 %v965
      %977 = vmatpush.msra.mxu0 %v962
      %978 = vmatpush.msra.mxu0 %v959
      %979 = vmatpush.msra.mxu0 %v956
      %980 = vmatpush.msra.mxu0 %v953
      %981 = vmatpush.msra.mxu0 %v950
      %982 = vmatpush.msra.mxu0 %v947
      %983 = vmatpush.msra.mxu0 %v944
      %984 = vmatpush.msra.mxu0 %v941
      %985 = vmatpush.msra.mxu0 %v938
      %986 = vmatpush.msra.mxu0 %v935
      %987 = vmatpush.msra.mxu0 %v932
      %988 = vmatpush.msra.mxu0 %v929
      %989 = vmatpush.msra.mxu0 %v926
      %990 = vmatpush.msra.mxu0 %v923
      %991 = vmatpush.msra.mxu0 %v920
      %992 = vmatmul.f32.gmra.mxu0 %v919
      %v993 = vpop.f32.mrf.mxu0
      %v994 = vadd.f32 %v970, %v993
      %995 = vdwg.mxu0
      %996 = vmatpush.msra.mxu0 %v966
      %997 = vmatpush.msra.mxu0 %v963
      %998 = vmatpush.msra.mxu0 %v960
      %999 = vmatpush.msra.mxu0 %v957
      %1000 = vmatpush.msra.mxu0 %v954
      %1001 = vmatpush.msra.mxu0 %v951
      %1002 = vmatpush.msra.mxu0 %v948
      %1003 = vmatpush.msra.mxu0 %v945
      %1004 = vmatpush.msra.mxu0 %v942
      %1005 = vmatpush.msra.mxu0 %v939
      %1006 = vmatpush.msra.mxu0 %v936
      %1007 = vmatpush.msra.mxu0 %v933
      %1008 = vmatpush.msra.mxu0 %v930
      %1009 = vmatpush.msra.mxu0 %v927
      %1010 = vmatpush.msra.mxu0 %v924
      %1011 = vmatpush.msra.mxu0 %v921
      %1012 = vmatmul.f32.gmra.mxu0 %v919
      %v1013 = vpop.f32.mrf.mxu0
      %v1014 = vadd.f32 %v971, %v1013
      %1015 = vdwg.mxu0
      %1016 = vmatpush.msra.mxu0 %v967
      %1017 = vmatpush.msra.mxu0 %v964
      %1018 = vmatpush.msra.mxu0 %v961
      %1019 = vmatpush.msra.mxu0 %v958
      %1020 = vmatpush.msra.mxu0 %v955
      %1021 = vmatpush.msra.mxu0 %v952
      %1022 = vmatpush.msra.mxu0 %v949
      %1023 = vmatpush.msra.mxu0 %v946
      %1024 = vmatpush.msra.mxu0 %v943
      %1025 = vmatpush.msra.mxu0 %v940
      %1026 = vmatpush.msra.mxu0 %v937
      %1027 = vmatpush.msra.mxu0 %v934
      %1028 = vmatpush.msra.mxu0 %v931
      %1029 = vmatpush.msra.mxu0 %v928
      %1030 = vmatpush.msra.mxu0 %v925
      %1031 = vmatpush.msra.mxu0 %v922
      %1032 = vmatmul.f32.gmra.mxu0 %v919
      %v1033 = vpop.f32.mrf.mxu0
      %v1034 = vadd.f32 %v972, %v1033
      %1035 = vdwg.mxu0
      %v1036 = vadd.f32 %v916, %v994
      %v1037 = vxor.u32 %v1036, 2147483648
      %v1038 = vmul.f32 %v1037, 1.442695
      %v1039 = vpow.pop %v1038
      %v1040 = vadd.f32 %v1039, 1.0
      %v1041 = vrcp.pop %v1040
      %v1042 = vmul.f32 %v1040, %v1041
      %v1043 = vsub.f32 1.0, %v1042
      %v1044 = vmul.f32 %v1041, %v1043
      %v1045 = vadd.f32 %v1041, %v1044
      %vm1046 = vweird.f32 %v1040
      %vm1047 = vweird.f32 %v1041
      %vm1048 = vmor %vm1046, %vm1047
      %v1049 = vsel %vm1048, %v1041, %v1045
      %v1050 = vand.u32 2147483647, %v1040
      %vm1051 = vcmp.eq.f32.partialorder %v1050, 8.507059e+37
      %v1052 = vand.u32 %v1040, 2147483648
      %v1053 = vor.u32 1.1754944e-38, %v1052
      %v1054 = vsel %vm1051, %v1053, %v1049
      %v1055 = vmul.f32 1.0, %v1054
      %v1056 = vadd.f32 %v917, %v1014
      %v1057 = vxor.u32 %v1056, 2147483648
      %v1058 = vmul.f32 %v1057, 1.442695
      %v1059 = vpow.pop %v1058
      %v1060 = vadd.f32 %v1059, 1.0
      %v1061 = vrcp.pop %v1060
      %v1062 = vmul.f32 %v1060, %v1061
      %v1063 = vsub.f32 1.0, %v1062
      %v1064 = vmul.f32 %v1061, %v1063
      %v1065 = vadd.f32 %v1061, %v1064
      %vm1066 = vweird.f32 %v1060
      %vm1067 = vweird.f32 %v1061
      %vm1068 = vmor %vm1066, %vm1067
      %v1069 = vsel %vm1068, %v1061, %v1065
      %v1070 = vand.u32 2147483647, %v1060
      %vm1071 = vcmp.eq.f32.partialorder %v1070, 8.507059e+37
      %v1072 = vand.u32 %v1060, 2147483648
      %v1073 = vor.u32 1.1754944e-38, %v1072
      %v1074 = vsel %vm1071, %v1073, %v1069
      %v1075 = vmul.f32 1.0, %v1074
      %v1076 = vmul.f32 %v1055, %v1034
      %v1077 = vadd.f32 %v918, %v1076
      %v1078 = vtanh.pop %v1077
      %v1079 = vsub.f32 1.0, %v1075
      %v1080 = vmul.f32 %v1079, %v1078
      %v1081 = vmul.f32 %v1075, %v919
      %v1082 = vadd.f32 %v1080, %v1081
      %1083 = vst [vmem:[#allocation4] sm:$0xff] %v1082
      %s1084 = scalar_lea.vmem [#allocation2], 16
      %1085 = vst [vmem:[%s1084] sm:$0xff] %v1082
      %s1086 = smul.u32 3, 3
      %s1087 = smul.addr %s1086, 8
      %s1088 = scalar_lea.vmem [#allocation3], %s1087
      %v1089 = vld [vmem:[%s1088] sm:$0xff]
      %v1090 = vld [vmem:[%s1088 + $0x8] sm:$0xff]
      %v1091 = vld [vmem:[%s1088 + $0x10] sm:$0xff]
      %v1092 = vld [vmem:[#allocation4] sm:$0xff]
      %v1093 = vld [vmem:[%s326] sm:$0xff]
      %v1094 = vld [vmem:[%s326 + $0x8] sm:$0xff]
      %v1095 = vld [vmem:[%s326 + $0x10] sm:$0xff]
      %v1096 = vld [vmem:[%s326 + $0x18] sm:$0xff]
      %v1097 = vld [vmem:[%s326 + $0x20] sm:$0xff]
      %v1098 = vld [vmem:[%s326 + $0x28] sm:$0xff]
      %v1099 = vld [vmem:[%s326 + $0x30] sm:$0xff]
      %v1100 = vld [vmem:[%s326 + $0x38] sm:$0xff]
      %v1101 = vld [vmem:[%s326 + $0x40] sm:$0xff]
      %v1102 = vld [vmem:[%s326 + $0x48] sm:$0xff]
      %v1103 = vld [vmem:[%s326 + $0x50] sm:$0xff]
      %v1104 = vld [vmem:[%s326 + $0x58] sm:$0xff]
      %v1105 = vld [vmem:[%s326 + $0x60] sm:$0xff]
      %v1106 = vld [vmem:[%s326 + $0x68] sm:$0xff]
      %v1107 = vld [vmem:[%s326 + $0x70] sm:$0xff]
      %v1108 = vld [vmem:[%s326 + $0x78] sm:$0xff]
      %v1109 = vld [vmem:[%s326 + $0x80] sm:$0xff]
      %v1110 = vld [vmem:[%s326 + $0x88] sm:$0xff]
      %v1111 = vld [vmem:[%s326 + $0x90] sm:$0xff]
      %v1112 = vld [vmem:[%s326 + $0x98] sm:$0xff]
      %v1113 = vld [vmem:[%s326 + $0xa0] sm:$0xff]
      %v1114 = vld [vmem:[%s326 + $0xa8] sm:$0xff]
      %v1115 = vld [vmem:[%s326 + $0xb0] sm:$0xff]
      %v1116 = vld [vmem:[%s326 + $0xb8] sm:$0xff]
      %v1117 = vld [vmem:[%s326 + $0xc0] sm:$0xff]
      %v1118 = vld [vmem:[%s326 + $0xc8] sm:$0xff]
      %v1119 = vld [vmem:[%s326 + $0xd0] sm:$0xff]
      %v1120 = vld [vmem:[%s326 + $0xd8] sm:$0xff]
      %v1121 = vld [vmem:[%s326 + $0xe0] sm:$0xff]
      %v1122 = vld [vmem:[%s326 + $0xe8] sm:$0xff]
      %v1123 = vld [vmem:[%s326 + $0xf0] sm:$0xff]
      %v1124 = vld [vmem:[%s326 + $0xf8] sm:$0xff]
      %v1125 = vld [vmem:[%s326 + $0x100] sm:$0xff]
      %v1126 = vld [vmem:[%s326 + $0x108] sm:$0xff]
      %v1127 = vld [vmem:[%s326 + $0x110] sm:$0xff]
      %v1128 = vld [vmem:[%s326 + $0x118] sm:$0xff]
      %v1129 = vld [vmem:[%s326 + $0x120] sm:$0xff]
      %v1130 = vld [vmem:[%s326 + $0x128] sm:$0xff]
      %v1131 = vld [vmem:[%s326 + $0x130] sm:$0xff]
      %v1132 = vld [vmem:[%s326 + $0x138] sm:$0xff]
      %v1133 = vld [vmem:[%s326 + $0x140] sm:$0xff]
      %v1134 = vld [vmem:[%s326 + $0x148] sm:$0xff]
      %v1135 = vld [vmem:[%s326 + $0x150] sm:$0xff]
      %v1136 = vld [vmem:[%s326 + $0x158] sm:$0xff]
      %v1137 = vld [vmem:[%s326 + $0x160] sm:$0xff]
      %v1138 = vld [vmem:[%s326 + $0x168] sm:$0xff]
      %v1139 = vld [vmem:[%s326 + $0x170] sm:$0xff]
      %v1140 = vld [vmem:[%s326 + $0x178] sm:$0xff]
      %v1141 = vld [vmem:[%s334] sm:$0x7]
      %v1143 = vperm.slane %v1141, 0
      %v1144 = vperm.slane %v1141, 1
      %v1145 = vperm.slane %v1141, 2
      %1149 = vmatpush.msra.mxu0 %v1138
      %1150 = vmatpush.msra.mxu0 %v1135
      %1151 = vmatpush.msra.mxu0 %v1132
      %1152 = vmatpush.msra.mxu0 %v1129
      %1153 = vmatpush.msra.mxu0 %v1126
      %1154 = vmatpush.msra.mxu0 %v1123
      %1155 = vmatpush.msra.mxu0 %v1120
      %1156 = vmatpush.msra.mxu0 %v1117
      %1157 = vmatpush.msra.mxu0 %v1114
      %1158 = vmatpush.msra.mxu0 %v1111
      %1159 = vmatpush.msra.mxu0 %v1108
      %1160 = vmatpush.msra.mxu0 %v1105
      %1161 = vmatpush.msra.mxu0 %v1102
      %1162 = vmatpush.msra.mxu0 %v1099
      %1163 = vmatpush.msra.mxu0 %v1096
      %1164 = vmatpush.msra.mxu0 %v1093
      %1165 = vmatmul.f32.gmra.mxu0 %v1092
      %v1166 = vpop.f32.mrf.mxu0
      %v1167 = vadd.f32 %v1143, %v1166
      %1168 = vdwg.mxu0
      %1169 = vmatpush.msra.mxu0 %v1139
      %1170 = vmatpush.msra.mxu0 %v1136
      %1171 = vmatpush.msra.mxu0 %v1133
      %1172 = vmatpush.msra.mxu0 %v1130
      %1173 = vmatpush.msra.mxu0 %v1127
      %1174 = vmatpush.msra.mxu0 %v1124
      %1175 = vmatpush.msra.mxu0 %v1121
      %1176 = vmatpush.msra.mxu0 %v1118
      %1177 = vmatpush.msra.mxu0 %v1115
      %1178 = vmatpush.msra.mxu0 %v1112
      %1179 = vmatpush.msra.mxu0 %v1109
      %1180 = vmatpush.msra.mxu0 %v1106
      %1181 = vmatpush.msra.mxu0 %v1103
      %1182 = vmatpush.msra.mxu0 %v1100
      %1183 = vmatpush.msra.mxu0 %v1097
      %1184 = vmatpush.msra.mxu0 %v1094
      %1185 = vmatmul.f32.gmra.mxu0 %v1092
      %v1186 = vpop.f32.mrf.mxu0
      %v1187 = vadd.f32 %v1144, %v1186
      %1188 = vdwg.mxu0
      %1189 = vmatpush.msra.mxu0 %v1140
      %1190 = vmatpush.msra.mxu0 %v1137
      %1191 = vmatpush.msra.mxu0 %v1134
      %1192 = vmatpush.msra.mxu0 %v1131
      %1193 = vmatpush.msra.mxu0 %v1128
      %1194 = vmatpush.msra.mxu0 %v1125
      %1195 = vmatpush.msra.mxu0 %v1122
      %1196 = vmatpush.msra.mxu0 %v1119
      %1197 = vmatpush.msra.mxu0 %v1116
      %1198 = vmatpush.msra.mxu0 %v1113
      %1199 = vmatpush.msra.mxu0 %v1110
      %1200 = vmatpush.msra.mxu0 %v1107
      %1201 = vmatpush.msra.mxu0 %v1104
      %1202 = vmatpush.msra.mxu0 %v1101
      %1203 = vmatpush.msra.mxu0 %v1098
      %1204 = vmatpush.msra.mxu0 %v1095
      %1205 = vmatmul.f32.gmra.mxu0 %v1092
      %v1206 = vpop.f32.mrf.mxu0
      %v1207 = vadd.f32 %v1145, %v1206
      %1208 = vdwg.mxu0
      %v1209 = vadd.f32 %v1089, %v1167
      %v1210 = vxor.u32 %v1209, 2147483648
      %v1211 = vmul.f32 %v1210, 1.442695
      %v1212 = vpow.pop %v1211
      %v1213 = vadd.f32 %v1212, 1.0
      %v1214 = vrcp.pop %v1213
      %v1215 = vmul.f32 %v1213, %v1214
      %v1216 = vsub.f32 1.0, %v1215
      %v1217 = vmul.f32 %v1214, %v1216
      %v1218 = vadd.f32 %v1214, %v1217
      %vm1219 = vweird.f32 %v1213
      %vm1220 = vweird.f32 %v1214
      %vm1221 = vmor %vm1219, %vm1220
      %v1222 = vsel %vm1221, %v1214, %v1218
      %v1223 = vand.u32 2147483647, %v1213
      %vm1224 = vcmp.eq.f32.partialorder %v1223, 8.507059e+37
      %v1225 = vand.u32 %v1213, 2147483648
      %v1226 = vor.u32 1.1754944e-38, %v1225
      %v1227 = vsel %vm1224, %v1226, %v1222
      %v1228 = vmul.f32 1.0, %v1227
      %v1229 = vadd.f32 %v1090, %v1187
      %v1230 = vxor.u32 %v1229, 2147483648
      %v1231 = vmul.f32 %v1230, 1.442695
      %v1232 = vpow.pop %v1231
      %v1233 = vadd.f32 %v1232, 1.0
      %v1234 = vrcp.pop %v1233
      %v1235 = vmul.f32 %v1233, %v1234
      %v1236 = vsub.f32 1.0, %v1235
      %v1237 = vmul.f32 %v1234, %v1236
      %v1238 = vadd.f32 %v1234, %v1237
      %vm1239 = vweird.f32 %v1233
      %vm1240 = vweird.f32 %v1234
      %vm1241 = vmor %vm1239, %vm1240
      %v1242 = vsel %vm1241, %v1234, %v1238
      %v1243 = vand.u32 2147483647, %v1233
      %vm1244 = vcmp.eq.f32.partialorder %v1243, 8.507059e+37
      %v1245 = vand.u32 %v1233, 2147483648
      %v1246 = vor.u32 1.1754944e-38, %v1245
      %v1247 = vsel %vm1244, %v1246, %v1242
      %v1248 = vmul.f32 1.0, %v1247
      %v1249 = vmul.f32 %v1228, %v1207
      %v1250 = vadd.f32 %v1091, %v1249
      %v1251 = vtanh.pop %v1250
      %v1252 = vsub.f32 1.0, %v1248
      %v1253 = vmul.f32 %v1252, %v1251
      %v1254 = vmul.f32 %v1248, %v1092
      %v1255 = vadd.f32 %v1253, %v1254
      %1256 = vst [vmem:[#allocation4] sm:$0xff] %v1255
      %s1257 = scalar_lea.vmem [#allocation2], 24
      %1258 = vst [vmem:[%s1257] sm:$0xff] %v1255
      %s1259 = smul.u32 4, 3
      %s1260 = smul.addr %s1259, 8
      %s1261 = scalar_lea.vmem [#allocation3], %s1260
      %v1262 = vld [vmem:[%s1261] sm:$0xff]
      %v1263 = vld [vmem:[%s1261 + $0x8] sm:$0xff]
      %v1264 = vld [vmem:[%s1261 + $0x10] sm:$0xff]
      %v1265 = vld [vmem:[#allocation4] sm:$0xff]
      %v1266 = vld [vmem:[%s326] sm:$0xff]
      %v1267 = vld [vmem:[%s326 + $0x8] sm:$0xff]
      %v1268 = vld [vmem:[%s326 + $0x10] sm:$0xff]
      %v1269 = vld [vmem:[%s326 + $0x18] sm:$0xff]
      %v1270 = vld [vmem:[%s326 + $0x20] sm:$0xff]
      %v1271 = vld [vmem:[%s326 + $0x28] sm:$0xff]
      %v1272 = vld [vmem:[%s326 + $0x30] sm:$0xff]
      %v1273 = vld [vmem:[%s326 + $0x38] sm:$0xff]
      %v1274 = vld [vmem:[%s326 + $0x40] sm:$0xff]
      %v1275 = vld [vmem:[%s326 + $0x48] sm:$0xff]
      %v1276 = vld [vmem:[%s326 + $0x50] sm:$0xff]
      %v1277 = vld [vmem:[%s326 + $0x58] sm:$0xff]
      %v1278 = vld [vmem:[%s326 + $0x60] sm:$0xff]
      %v1279 = vld [vmem:[%s326 + $0x68] sm:$0xff]
      %v1280 = vld [vmem:[%s326 + $0x70] sm:$0xff]
      %v1281 = vld [vmem:[%s326 + $0x78] sm:$0xff]
      %v1282 = vld [vmem:[%s326 + $0x80] sm:$0xff]
      %v1283 = vld [vmem:[%s326 + $0x88] sm:$0xff]
      %v1284 = vld [vmem:[%s326 + $0x90] sm:$0xff]
      %v1285 = vld [vmem:[%s326 + $0x98] sm:$0xff]
      %v1286 = vld [vmem:[%s326 + $0xa0] sm:$0xff]
      %v1287 = vld [vmem:[%s326 + $0xa8] sm:$0xff]
      %v1288 = vld [vmem:[%s326 + $0xb0] sm:$0xff]
      %v1289 = vld [vmem:[%s326 + $0xb8] sm:$0xff]
      %v1290 = vld [vmem:[%s326 + $0xc0] sm:$0xff]
      %v1291 = vld [vmem:[%s326 + $0xc8] sm:$0xff]
      %v1292 = vld [vmem:[%s326 + $0xd0] sm:$0xff]
      %v1293 = vld [vmem:[%s326 + $0xd8] sm:$0xff]
      %v1294 = vld [vmem:[%s326 + $0xe0] sm:$0xff]
      %v1295 = vld [vmem:[%s326 + $0xe8] sm:$0xff]
      %v1296 = vld [vmem:[%s326 + $0xf0] sm:$0xff]
      %v1297 = vld [vmem:[%s326 + $0xf8] sm:$0xff]
      %v1298 = vld [vmem:[%s326 + $0x100] sm:$0xff]
      %v1299 = vld [vmem:[%s326 + $0x108] sm:$0xff]
      %v1300 = vld [vmem:[%s326 + $0x110] sm:$0xff]
      %v1301 = vld [vmem:[%s326 + $0x118] sm:$0xff]
      %v1302 = vld [vmem:[%s326 + $0x120] sm:$0xff]
      %v1303 = vld [vmem:[%s326 + $0x128] sm:$0xff]
      %v1304 = vld [vmem:[%s326 + $0x130] sm:$0xff]
      %v1305 = vld [vmem:[%s326 + $0x138] sm:$0xff]
      %v1306 = vld [vmem:[%s326 + $0x140] sm:$0xff]
      %v1307 = vld [vmem:[%s326 + $0x148] sm:$0xff]
      %v1308 = vld [vmem:[%s326 + $0x150] sm:$0xff]
      %v1309 = vld [vmem:[%s326 + $0x158] sm:$0xff]
      %v1310 = vld [vmem:[%s326 + $0x160] sm:$0xff]
      %v1311 = vld [vmem:[%s326 + $0x168] sm:$0xff]
      %v1312 = vld [vmem:[%s326 + $0x170] sm:$0xff]
      %v1313 = vld [vmem:[%s326 + $0x178] sm:$0xff]
      %v1314 = vld [vmem:[%s334] sm:$0x7]
      %v1316 = vperm.slane %v1314, 0
      %v1317 = vperm.slane %v1314, 1
      %v1318 = vperm.slane %v1314, 2
      %1322 = vmatpush.msra.mxu0 %v1311
      %1323 = vmatpush.msra.mxu0 %v1308
      %1324 = vmatpush.msra.mxu0 %v1305
      %1325 = vmatpush.msra.mxu0 %v1302
      %1326 = vmatpush.msra.mxu0 %v1299
      %1327 = vmatpush.msra.mxu0 %v1296
      %1328 = vmatpush.msra.mxu0 %v1293
      %1329 = vmatpush.msra.mxu0 %v1290
      %1330 = vmatpush.msra.mxu0 %v1287
      %1331 = vmatpush.msra.mxu0 %v1284
      %1332 = vmatpush.msra.mxu0 %v1281
      %1333 = vmatpush.msra.mxu0 %v1278
      %1334 = vmatpush.msra.mxu0 %v1275
      %1335 = vmatpush.msra.mxu0 %v1272
      %1336 = vmatpush.msra.mxu0 %v1269
      %1337 = vmatpush.msra.mxu0 %v1266
      %1338 = vmatmul.f32.gmra.mxu0 %v1265
      %v1339 = vpop.f32.mrf.mxu0
      %v1340 = vadd.f32 %v1316, %v1339
      %1341 = vdwg.mxu0
      %1342 = vmatpush.msra.mxu0 %v1312
      %1343 = vmatpush.msra.mxu0 %v1309
      %1344 = vmatpush.msra.mxu0 %v1306
      %1345 = vmatpush.msra.mxu0 %v1303
      %1346 = vmatpush.msra.mxu0 %v1300
      %1347 = vmatpush.msra.mxu0 %v1297
      %1348 = vmatpush.msra.mxu0 %v1294
      %1349 = vmatpush.msra.mxu0 %v1291
      %1350 = vmatpush.msra.mxu0 %v1288
      %1351 = vmatpush.msra.mxu0 %v1285
      %1352 = vmatpush.msra.mxu0 %v1282
      %1353 = vmatpush.msra.mxu0 %v1279
      %1354 = vmatpush.msra.mxu0 %v1276
      %1355 = vmatpush.msra.mxu0 %v1273
      %1356 = vmatpush.msra.mxu0 %v1270
      %1357 = vmatpush.msra.mxu0 %v1267
      %1358 = vmatmul.f32.gmra.mxu0 %v1265
      %v1359 = vpop.f32.mrf.mxu0
      %v1360 = vadd.f32 %v1317, %v1359
      %1361 = vdwg.mxu0
      %1362 = vmatpush.msra.mxu0 %v1313
      %1363 = vmatpush.msra.mxu0 %v1310
      %1364 = vmatpush.msra.mxu0 %v1307
      %1365 = vmatpush.msra.mxu0 %v1304
      %1366 = vmatpush.msra.mxu0 %v1301
      %1367 = vmatpush.msra.mxu0 %v1298
      %1368 = vmatpush.msra.mxu0 %v1295
      %1369 = vmatpush.msra.mxu0 %v1292
      %1370 = vmatpush.msra.mxu0 %v1289
      %1371 = vmatpush.msra.mxu0 %v1286
      %1372 = vmatpush.msra.mxu0 %v1283
      %1373 = vmatpush.msra.mxu0 %v1280
      %1374 = vmatpush.msra.mxu0 %v1277
      %1375 = vmatpush.msra.mxu0 %v1274
      %1376 = vmatpush.msra.mxu0 %v1271
      %1377 = vmatpush.msra.mxu0 %v1268
      %1378 = vmatmul.f32.gmra.mxu0 %v1265
      %v1379 = vpop.f32.mrf.mxu0
      %v1380 = vadd.f32 %v1318, %v1379
      %1381 = vdwg.mxu0
      %v1382 = vadd.f32 %v1262, %v1340
      %v1383 = vxor.u32 %v1382, 2147483648
      %v1384 = vmul.f32 %v1383, 1.442695
      %v1385 = vpow.pop %v1384
      %v1386 = vadd.f32 %v1385, 1.0
      %v1387 = vrcp.pop %v1386
      %v1388 = vmul.f32 %v1386, %v1387
      %v1389 = vsub.f32 1.0, %v1388
      %v1390 = vmul.f32 %v1387, %v1389
      %v1391 = vadd.f32 %v1387, %v1390
      %vm1392 = vweird.f32 %v1386
      %vm1393 = vweird.f32 %v1387
      %vm1394 = vmor %vm1392, %vm1393
      %v1395 = vsel %vm1394, %v1387, %v1391
      %v1396 = vand.u32 2147483647, %v1386
      %vm1397 = vcmp.eq.f32.partialorder %v1396, 8.507059e+37
      %v1398 = vand.u32 %v1386, 2147483648
      %v1399 = vor.u32 1.1754944e-38, %v1398
      %v1400 = vsel %vm1397, %v1399, %v1395
      %v1401 = vmul.f32 1.0, %v1400
      %v1402 = vadd.f32 %v1263, %v1360
      %v1403 = vxor.u32 %v1402, 2147483648
      %v1404 = vmul.f32 %v1403, 1.442695
      %v1405 = vpow.pop %v1404
      %v1406 = vadd.f32 %v1405, 1.0
      %v1407 = vrcp.pop %v1406
      %v1408 = vmul.f32 %v1406, %v1407
      %v1409 = vsub.f32 1.0, %v1408
      %v1410 = vmul.f32 %v1407, %v1409
      %v1411 = vadd.f32 %v1407, %v1410
      %vm1412 = vweird.f32 %v1406
      %vm1413 = vweird.f32 %v1407
      %vm1414 = vmor %vm1412, %vm1413
      %v1415 = vsel %vm1414, %v1407, %v1411
      %v1416 = vand.u32 2147483647, %v1406
      %vm1417 = vcmp.eq.f32.partialorder %v1416, 8.507059e+37
      %v1418 = vand.u32 %v1406, 2147483648
      %v1419 = vor.u32 1.1754944e-38, %v1418
      %v1420 = vsel %vm1417, %v1419, %v1415
      %v1421 = vmul.f32 1.0, %v1420
      %v1422 = vmul.f32 %v1401, %v1380
      %v1423 = vadd.f32 %v1264, %v1422
      %v1424 = vtanh.pop %v1423
      %v1425 = vsub.f32 1.0, %v1421
      %v1426 = vmul.f32 %v1425, %v1424
      %v1427 = vmul.f32 %v1421, %v1265
      %v1428 = vadd.f32 %v1426, %v1427
      %1429 = vst [vmem:[#allocation4] sm:$0xff] %v1428
      %s1430 = scalar_lea.vmem [#allocation2], 32
      %1431 = vst [vmem:[%s1430] sm:$0xff] %v1428
      %s1432 = smul.u32 5, 3
      %s1433 = smul.addr %s1432, 8
      %s1434 = scalar_lea.vmem [#allocation3], %s1433
      %v1435 = vld [vmem:[%s1434] sm:$0xff]
      %v1436 = vld [vmem:[%s1434 + $0x8] sm:$0xff]
      %v1437 = vld [vmem:[%s1434 + $0x10] sm:$0xff]
      %v1438 = vld [vmem:[#allocation4] sm:$0xff]
      %v1439 = vld [vmem:[%s326] sm:$0xff]
      %v1440 = vld [vmem:[%s326 + $0x8] sm:$0xff]
      %v1441 = vld [vmem:[%s326 + $0x10] sm:$0xff]
      %v1442 = vld [vmem:[%s326 + $0x18] sm:$0xff]
      %v1443 = vld [vmem:[%s326 + $0x20] sm:$0xff]
      %v1444 = vld [vmem:[%s326 + $0x28] sm:$0xff]
      %v1445 = vld [vmem:[%s326 + $0x30] sm:$0xff]
      %v1446 = vld [vmem:[%s326 + $0x38] sm:$0xff]
      %v1447 = vld [vmem:[%s326 + $0x40] sm:$0xff]
      %v1448 = vld [vmem:[%s326 + $0x48] sm:$0xff]
      %v1449 = vld [vmem:[%s326 + $0x50] sm:$0xff]
      %v1450 = vld [vmem:[%s326 + $0x58] sm:$0xff]
      %v1451 = vld [vmem:[%s326 + $0x60] sm:$0xff]
      %v1452 = vld [vmem:[%s326 + $0x68] sm:$0xff]
      %v1453 = vld [vmem:[%s326 + $0x70] sm:$0xff]
      %v1454 = vld [vmem:[%s326 + $0x78] sm:$0xff]
      %v1455 = vld [vmem:[%s326 + $0x80] sm:$0xff]
      %v1456 = vld [vmem:[%s326 + $0x88] sm:$0xff]
      %v1457 = vld [vmem:[%s326 + $0x90] sm:$0xff]
      %v1458 = vld [vmem:[%s326 + $0x98] sm:$0xff]
      %v1459 = vld [vmem:[%s326 + $0xa0] sm:$0xff]
      %v1460 = vld [vmem:[%s326 + $0xa8] sm:$0xff]
      %v1461 = vld [vmem:[%s326 + $0xb0] sm:$0xff]
      %v1462 = vld [vmem:[%s326 + $0xb8] sm:$0xff]
      %v1463 = vld [vmem:[%s326 + $0xc0] sm:$0xff]
      %v1464 = vld [vmem:[%s326 + $0xc8] sm:$0xff]
      %v1465 = vld [vmem:[%s326 + $0xd0] sm:$0xff]
      %v1466 = vld [vmem:[%s326 + $0xd8] sm:$0xff]
      %v1467 = vld [vmem:[%s326 + $0xe0] sm:$0xff]
      %v1468 = vld [vmem:[%s326 + $0xe8] sm:$0xff]
      %v1469 = vld [vmem:[%s326 + $0xf0] sm:$0xff]
      %v1470 = vld [vmem:[%s326 + $0xf8] sm:$0xff]
      %v1471 = vld [vmem:[%s326 + $0x100] sm:$0xff]
      %v1472 = vld [vmem:[%s326 + $0x108] sm:$0xff]
      %v1473 = vld [vmem:[%s326 + $0x110] sm:$0xff]
      %v1474 = vld [vmem:[%s326 + $0x118] sm:$0xff]
      %v1475 = vld [vmem:[%s326 + $0x120] sm:$0xff]
      %v1476 = vld [vmem:[%s326 + $0x128] sm:$0xff]
      %v1477 = vld [vmem:[%s326 + $0x130] sm:$0xff]
      %v1478 = vld [vmem:[%s326 + $0x138] sm:$0xff]
      %v1479 = vld [vmem:[%s326 + $0x140] sm:$0xff]
      %v1480 = vld [vmem:[%s326 + $0x148] sm:$0xff]
      %v1481 = vld [vmem:[%s326 + $0x150] sm:$0xff]
      %v1482 = vld [vmem:[%s326 + $0x158] sm:$0xff]
      %v1483 = vld [vmem:[%s326 + $0x160] sm:$0xff]
      %v1484 = vld [vmem:[%s326 + $0x168] sm:$0xff]
      %v1485 = vld [vmem:[%s326 + $0x170] sm:$0xff]
      %v1486 = vld [vmem:[%s326 + $0x178] sm:$0xff]
      %v1487 = vld [vmem:[%s334] sm:$0x7]
      %v1489 = vperm.slane %v1487, 0
      %v1490 = vperm.slane %v1487, 1
      %v1491 = vperm.slane %v1487, 2
      %1495 = vmatpush.msra.mxu0 %v1484
      %1496 = vmatpush.msra.mxu0 %v1481
      %1497 = vmatpush.msra.mxu0 %v1478
      %1498 = vmatpush.msra.mxu0 %v1475
      %1499 = vmatpush.msra.mxu0 %v1472
      %1500 = vmatpush.msra.mxu0 %v1469
      %1501 = vmatpush.msra.mxu0 %v1466
      %1502 = vmatpush.msra.mxu0 %v1463
      %1503 = vmatpush.msra.mxu0 %v1460
      %1504 = vmatpush.msra.mxu0 %v1457
      %1505 = vmatpush.msra.mxu0 %v1454
      %1506 = vmatpush.msra.mxu0 %v1451
      %1507 = vmatpush.msra.mxu0 %v1448
      %1508 = vmatpush.msra.mxu0 %v1445
      %1509 = vmatpush.msra.mxu0 %v1442
      %1510 = vmatpush.msra.mxu0 %v1439
      %1511 = vmatmul.f32.gmra.mxu0 %v1438
      %v1512 = vpop.f32.mrf.mxu0
      %v1513 = vadd.f32 %v1489, %v1512
      %1514 = vdwg.mxu0
      %1515 = vmatpush.msra.mxu0 %v1485
      %1516 = vmatpush.msra.mxu0 %v1482
      %1517 = vmatpush.msra.mxu0 %v1479
      %1518 = vmatpush.msra.mxu0 %v1476
      %1519 = vmatpush.msra.mxu0 %v1473
      %1520 = vmatpush.msra.mxu0 %v1470
      %1521 = vmatpush.msra.mxu0 %v1467
      %1522 = vmatpush.msra.mxu0 %v1464
      %1523 = vmatpush.msra.mxu0 %v1461
      %1524 = vmatpush.msra.mxu0 %v1458
      %1525 = vmatpush.msra.mxu0 %v1455
      %1526 = vmatpush.msra.mxu0 %v1452
      %1527 = vmatpush.msra.mxu0 %v1449
      %1528 = vmatpush.msra.mxu0 %v1446
      %1529 = vmatpush.msra.mxu0 %v1443
      %1530 = vmatpush.msra.mxu0 %v1440
      %1531 = vmatmul.f32.gmra.mxu0 %v1438
      %v1532 = vpop.f32.mrf.mxu0
      %v1533 = vadd.f32 %v1490, %v1532
      %1534 = vdwg.mxu0
      %1535 = vmatpush.msra.mxu0 %v1486
      %1536 = vmatpush.msra.mxu0 %v1483
      %1537 = vmatpush.msra.mxu0 %v1480
      %1538 = vmatpush.msra.mxu0 %v1477
      %1539 = vmatpush.msra.mxu0 %v1474
      %1540 = vmatpush.msra.mxu0 %v1471
      %1541 = vmatpush.msra.mxu0 %v1468
      %1542 = vmatpush.msra.mxu0 %v1465
      %1543 = vmatpush.msra.mxu0 %v1462
      %1544 = vmatpush.msra.mxu0 %v1459
      %1545 = vmatpush.msra.mxu0 %v1456
      %1546 = vmatpush.msra.mxu0 %v1453
      %1547 = vmatpush.msra.mxu0 %v1450
      %1548 = vmatpush.msra.mxu0 %v1447
      %1549 = vmatpush.msra.mxu0 %v1444
      %1550 = vmatpush.msra.mxu0 %v1441
      %1551 = vmatmul.f32.gmra.mxu0 %v1438
      %v1552 = vpop.f32.mrf.mxu0
      %v1553 = vadd.f32 %v1491, %v1552
      %1554 = vdwg.mxu0
      %v1555 = vadd.f32 %v1435, %v1513
      %v1556 = vxor.u32 %v1555, 2147483648
      %v1557 = vmul.f32 %v1556, 1.442695
      %v1558 = vpow.pop %v1557
      %v1559 = vadd.f32 %v1558, 1.0
      %v1560 = vrcp.pop %v1559
      %v1561 = vmul.f32 %v1559, %v1560
      %v1562 = vsub.f32 1.0, %v1561
      %v1563 = vmul.f32 %v1560, %v1562
      %v1564 = vadd.f32 %v1560, %v1563
      %vm1565 = vweird.f32 %v1559
      %vm1566 = vweird.f32 %v1560
      %vm1567 = vmor %vm1565, %vm1566
      %v1568 = vsel %vm1567, %v1560, %v1564
      %v1569 = vand.u32 2147483647, %v1559
      %vm1570 = vcmp.eq.f32.partialorder %v1569, 8.507059e+37
      %v1571 = vand.u32 %v1559, 2147483648
      %v1572 = vor.u32 1.1754944e-38, %v1571
      %v1573 = vsel %vm1570, %v1572, %v1568
      %v1574 = vmul.f32 1.0, %v1573
      %v1575 = vadd.f32 %v1436, %v1533
      %v1576 = vxor.u32 %v1575, 2147483648
      %v1577 = vmul.f32 %v1576, 1.442695
      %v1578 = vpow.pop %v1577
      %v1579 = vadd.f32 %v1578, 1.0
      %v1580 = vrcp.pop %v1579
      %v1581 = vmul.f32 %v1579, %v1580
      %v1582 = vsub.f32 1.0, %v1581
      %v1583 = vmul.f32 %v1580, %v1582
      %v1584 = vadd.f32 %v1580, %v1583
      %vm1585 = vweird.f32 %v1579
      %vm1586 = vweird.f32 %v1580
      %vm1587 = vmor %vm1585, %vm1586
      %v1588 = vsel %vm1587, %v1580, %v1584
      %v1589 = vand.u32 2147483647, %v1579
      %vm1590 = vcmp.eq.f32.partialorder %v1589, 8.507059e+37
      %v1591 = vand.u32 %v1579, 2147483648
      %v1592 = vor.u32 1.1754944e-38, %v1591
      %v1593 = vsel %vm1590, %v1592, %v1588
      %v1594 = vmul.f32 1.0, %v1593
      %v1595 = vmul.f32 %v1574, %v1553
      %v1596 = vadd.f32 %v1437, %v1595
      %v1597 = vtanh.pop %v1596
      %v1598 = vsub.f32 1.0, %v1594
      %v1599 = vmul.f32 %v1598, %v1597
      %v1600 = vmul.f32 %v1594, %v1438
      %v1601 = vadd.f32 %v1599, %v1600
      %1602 = vst [vmem:[#allocation4] sm:$0xff] %v1601
      %s1603 = scalar_lea.vmem [#allocation2], 40
      %1604 = vst [vmem:[%s1603] sm:$0xff] %v1601
      %s1605 = smul.u32 6, 3
      %s1606 = smul.addr %s1605, 8
      %s1607 = scalar_lea.vmem [#allocation3], %s1606
      %v1608 = vld [vmem:[%s1607] sm:$0xff]
      %v1609 = vld [vmem:[%s1607 + $0x8] sm:$0xff]
      %v1610 = vld [vmem:[%s1607 + $0x10] sm:$0xff]
      %v1611 = vld [vmem:[#allocation4] sm:$0xff]
      %v1612 = vld [vmem:[%s326] sm:$0xff]
      %v1613 = vld [vmem:[%s326 + $0x8] sm:$0xff]
      %v1614 = vld [vmem:[%s326 + $0x10] sm:$0xff]
      %v1615 = vld [vmem:[%s326 + $0x18] sm:$0xff]
      %v1616 = vld [vmem:[%s326 + $0x20] sm:$0xff]
      %v1617 = vld [vmem:[%s326 + $0x28] sm:$0xff]
      %v1618 = vld [vmem:[%s326 + $0x30] sm:$0xff]
      %v1619 = vld [vmem:[%s326 + $0x38] sm:$0xff]
      %v1620 = vld [vmem:[%s326 + $0x40] sm:$0xff]
      %v1621 = vld [vmem:[%s326 + $0x48] sm:$0xff]
      %v1622 = vld [vmem:[%s326 + $0x50] sm:$0xff]
      %v1623 = vld [vmem:[%s326 + $0x58] sm:$0xff]
      %v1624 = vld [vmem:[%s326 + $0x60] sm:$0xff]
      %v1625 = vld [vmem:[%s326 + $0x68] sm:$0xff]
      %v1626 = vld [vmem:[%s326 + $0x70] sm:$0xff]
      %v1627 = vld [vmem:[%s326 + $0x78] sm:$0xff]
      %v1628 = vld [vmem:[%s326 + $0x80] sm:$0xff]
      %v1629 = vld [vmem:[%s326 + $0x88] sm:$0xff]
      %v1630 = vld [vmem:[%s326 + $0x90] sm:$0xff]
      %v1631 = vld [vmem:[%s326 + $0x98] sm:$0xff]
      %v1632 = vld [vmem:[%s326 + $0xa0] sm:$0xff]
      %v1633 = vld [vmem:[%s326 + $0xa8] sm:$0xff]
      %v1634 = vld [vmem:[%s326 + $0xb0] sm:$0xff]
      %v1635 = vld [vmem:[%s326 + $0xb8] sm:$0xff]
      %v1636 = vld [vmem:[%s326 + $0xc0] sm:$0xff]
      %v1637 = vld [vmem:[%s326 + $0xc8] sm:$0xff]
      %v1638 = vld [vmem:[%s326 + $0xd0] sm:$0xff]
      %v1639 = vld [vmem:[%s326 + $0xd8] sm:$0xff]
      %v1640 = vld [vmem:[%s326 + $0xe0] sm:$0xff]
      %v1641 = vld [vmem:[%s326 + $0xe8] sm:$0xff]
      %v1642 = vld [vmem:[%s326 + $0xf0] sm:$0xff]
      %v1643 = vld [vmem:[%s326 + $0xf8] sm:$0xff]
      %v1644 = vld [vmem:[%s326 + $0x100] sm:$0xff]
      %v1645 = vld [vmem:[%s326 + $0x108] sm:$0xff]
      %v1646 = vld [vmem:[%s326 + $0x110] sm:$0xff]
      %v1647 = vld [vmem:[%s326 + $0x118] sm:$0xff]
      %v1648 = vld [vmem:[%s326 + $0x120] sm:$0xff]
      %v1649 = vld [vmem:[%s326 + $0x128] sm:$0xff]
      %v1650 = vld [vmem:[%s326 + $0x130] sm:$0xff]
      %v1651 = vld [vmem:[%s326 + $0x138] sm:$0xff]
      %v1652 = vld [vmem:[%s326 + $0x140] sm:$0xff]
      %v1653 = vld [vmem:[%s326 + $0x148] sm:$0xff]
      %v1654 = vld [vmem:[%s326 + $0x150] sm:$0xff]
      %v1655 = vld [vmem:[%s326 + $0x158] sm:$0xff]
      %v1656 = vld [vmem:[%s326 + $0x160] sm:$0xff]
      %v1657 = vld [vmem:[%s326 + $0x168] sm:$0xff]
      %v1658 = vld [vmem:[%s326 + $0x170] sm:$0xff]
      %v1659 = vld [vmem:[%s326 + $0x178] sm:$0xff]
      %v1660 = vld [vmem:[%s334] sm:$0x7]
      %v1662 = vperm.slane %v1660, 0
      %v1663 = vperm.slane %v1660, 1
      %v1664 = vperm.slane %v1660, 2
      %1668 = vmatpush.msra.mxu0 %v1657
      %1669 = vmatpush.msra.mxu0 %v1654
      %1670 = vmatpush.msra.mxu0 %v1651
      %1671 = vmatpush.msra.mxu0 %v1648
      %1672 = vmatpush.msra.mxu0 %v1645
      %1673 = vmatpush.msra.mxu0 %v1642
      %1674 = vmatpush.msra.mxu0 %v1639
      %1675 = vmatpush.msra.mxu0 %v1636
      %1676 = vmatpush.msra.mxu0 %v1633
      %1677 = vmatpush.msra.mxu0 %v1630
      %1678 = vmatpush.msra.mxu0 %v1627
      %1679 = vmatpush.msra.mxu0 %v1624
      %1680 = vmatpush.msra.mxu0 %v1621
      %1681 = vmatpush.msra.mxu0 %v1618
      %1682 = vmatpush.msra.mxu0 %v1615
      %1683 = vmatpush.msra.mxu0 %v1612
      %1684 = vmatmul.f32.gmra.mxu0 %v1611
      %v1685 = vpop.f32.mrf.mxu0
      %v1686 = vadd.f32 %v1662, %v1685
      %1687 = vdwg.mxu0
      %1688 = vmatpush.msra.mxu0 %v1658
      %1689 = vmatpush.msra.mxu0 %v1655
      %1690 = vmatpush.msra.mxu0 %v1652
      %1691 = vmatpush.msra.mxu0 %v1649
      %1692 = vmatpush.msra.mxu0 %v1646
      %1693 = vmatpush.msra.mxu0 %v1643
      %1694 = vmatpush.msra.mxu0 %v1640
      %1695 = vmatpush.msra.mxu0 %v1637
      %1696 = vmatpush.msra.mxu0 %v1634
      %1697 = vmatpush.msra.mxu0 %v1631
      %1698 = vmatpush.msra.mxu0 %v1628
      %1699 = vmatpush.msra.mxu0 %v1625
      %1700 = vmatpush.msra.mxu0 %v1622
      %1701 = vmatpush.msra.mxu0 %v1619
      %1702 = vmatpush.msra.mxu0 %v1616
      %1703 = vmatpush.msra.mxu0 %v1613
      %1704 = vmatmul.f32.gmra.mxu0 %v1611
      %v1705 = vpop.f32.mrf.mxu0
      %v1706 = vadd.f32 %v1663, %v1705
      %1707 = vdwg.mxu0
      %1708 = vmatpush.msra.mxu0 %v1659
      %1709 = vmatpush.msra.mxu0 %v1656
      %1710 = vmatpush.msra.mxu0 %v1653
      %1711 = vmatpush.msra.mxu0 %v1650
      %1712 = vmatpush.msra.mxu0 %v1647
      %1713 = vmatpush.msra.mxu0 %v1644
      %1714 = vmatpush.msra.mxu0 %v1641
      %1715 = vmatpush.msra.mxu0 %v1638
      %1716 = vmatpush.msra.mxu0 %v1635
      %1717 = vmatpush.msra.mxu0 %v1632
      %1718 = vmatpush.msra.mxu0 %v1629
      %1719 = vmatpush.msra.mxu0 %v1626
      %1720 = vmatpush.msra.mxu0 %v1623
      %1721 = vmatpush.msra.mxu0 %v1620
      %1722 = vmatpush.msra.mxu0 %v1617
      %1723 = vmatpush.msra.mxu0 %v1614
      %1724 = vmatmul.f32.gmra.mxu0 %v1611
      %v1725 = vpop.f32.mrf.mxu0
      %v1726 = vadd.f32 %v1664, %v1725
      %1727 = vdwg.mxu0
      %v1728 = vadd.f32 %v1608, %v1686
      %v1729 = vxor.u32 %v1728, 2147483648
      %v1730 = vmul.f32 %v1729, 1.442695
      %v1731 = vpow.pop %v1730
      %v1732 = vadd.f32 %v1731, 1.0
      %v1733 = vrcp.pop %v1732
      %v1734 = vmul.f32 %v1732, %v1733
      %v1735 = vsub.f32 1.0, %v1734
      %v1736 = vmul.f32 %v1733, %v1735
      %v1737 = vadd.f32 %v1733, %v1736
      %vm1738 = vweird.f32 %v1732
      %vm1739 = vweird.f32 %v1733
      %vm1740 = vmor %vm1738, %vm1739
      %v1741 = vsel %vm1740, %v1733, %v1737
      %v1742 = vand.u32 2147483647, %v1732
      %vm1743 = vcmp.eq.f32.partialorder %v1742, 8.507059e+37
      %v1744 = vand.u32 %v1732, 2147483648
      %v1745 = vor.u32 1.1754944e-38, %v1744
      %v1746 = vsel %vm1743, %v1745, %v1741
      %v1747 = vmul.f32 1.0, %v1746
      %v1748 = vadd.f32 %v1609, %v1706
      %v1749 = vxor.u32 %v1748, 2147483648
      %v1750 = vmul.f32 %v1749, 1.442695
      %v1751 = vpow.pop %v1750
      %v1752 = vadd.f32 %v1751, 1.0
      %v1753 = vrcp.pop %v1752
      %v1754 = vmul.f32 %v1752, %v1753
      %v1755 = vsub.f32 1.0, %v1754
      %v1756 = vmul.f32 %v1753, %v1755
      %v1757 = vadd.f32 %v1753, %v1756
      %vm1758 = vweird.f32 %v1752
      %vm1759 = vweird.f32 %v1753
      %vm1760 = vmor %vm1758, %vm1759
      %v1761 = vsel %vm1760, %v1753, %v1757
      %v1762 = vand.u32 2147483647, %v1752
      %vm1763 = vcmp.eq.f32.partialorder %v1762, 8.507059e+37
      %v1764 = vand.u32 %v1752, 2147483648
      %v1765 = vor.u32 1.1754944e-38, %v1764
      %v1766 = vsel %vm1763, %v1765, %v1761
      %v1767 = vmul.f32 1.0, %v1766
      %v1768 = vmul.f32 %v1747, %v1726
      %v1769 = vadd.f32 %v1610, %v1768
      %v1770 = vtanh.pop %v1769
      %v1771 = vsub.f32 1.0, %v1767
      %v1772 = vmul.f32 %v1771, %v1770
      %v1773 = vmul.f32 %v1767, %v1611
      %v1774 = vadd.f32 %v1772, %v1773
      %1775 = vst [vmem:[#allocation4] sm:$0xff] %v1774
      %s1776 = scalar_lea.vmem [#allocation2], 48
      %1777 = vst [vmem:[%s1776] sm:$0xff] %v1774
      %s1778 = smul.u32 7, 3
      %s1779 = smul.addr %s1778, 8
      %s1780 = scalar_lea.vmem [#allocation3], %s1779
      %v1781 = vld [vmem:[%s1780] sm:$0xff]
      %v1782 = vld [vmem:[%s1780 + $0x8] sm:$0xff]
      %v1783 = vld [vmem:[%s1780 + $0x10] sm:$0xff]
      %v1784 = vld [vmem:[#allocation4] sm:$0xff]
      %v1785 = vld [vmem:[%s326] sm:$0xff]
      %v1786 = vld [vmem:[%s326 + $0x8] sm:$0xff]
      %v1787 = vld [vmem:[%s326 + $0x10] sm:$0xff]
      %v1788 = vld [vmem:[%s326 + $0x18] sm:$0xff]
      %v1789 = vld [vmem:[%s326 + $0x20] sm:$0xff]
      %v1790 = vld [vmem:[%s326 + $0x28] sm:$0xff]
      %v1791 = vld [vmem:[%s326 + $0x30] sm:$0xff]
      %v1792 = vld [vmem:[%s326 + $0x38] sm:$0xff]
      %v1793 = vld [vmem:[%s326 + $0x40] sm:$0xff]
      %v1794 = vld [vmem:[%s326 + $0x48] sm:$0xff]
      %v1795 = vld [vmem:[%s326 + $0x50] sm:$0xff]
      %v1796 = vld [vmem:[%s326 + $0x58] sm:$0xff]
      %v1797 = vld [vmem:[%s326 + $0x60] sm:$0xff]
      %v1798 = vld [vmem:[%s326 + $0x68] sm:$0xff]
      %v1799 = vld [vmem:[%s326 + $0x70] sm:$0xff]
      %v1800 = vld [vmem:[%s326 + $0x78] sm:$0xff]
      %v1801 = vld [vmem:[%s326 + $0x80] sm:$0xff]
      %v1802 = vld [vmem:[%s326 + $0x88] sm:$0xff]
      %v1803 = vld [vmem:[%s326 + $0x90] sm:$0xff]
      %v1804 = vld [vmem:[%s326 + $0x98] sm:$0xff]
      %v1805 = vld [vmem:[%s326 + $0xa0] sm:$0xff]
      %v1806 = vld [vmem:[%s326 + $0xa8] sm:$0xff]
      %v1807 = vld [vmem:[%s326 + $0xb0] sm:$0xff]
      %v1808 = vld [vmem:[%s326 + $0xb8] sm:$0xff]
      %v1809 = vld [vmem:[%s326 + $0xc0] sm:$0xff]
      %v1810 = vld [vmem:[%s326 + $0xc8] sm:$0xff]
      %v1811 = vld [vmem:[%s326 + $0xd0] sm:$0xff]
      %v1812 = vld [vmem:[%s326 + $0xd8] sm:$0xff]
      %v1813 = vld [vmem:[%s326 + $0xe0] sm:$0xff]
      %v1814 = vld [vmem:[%s326 + $0xe8] sm:$0xff]
      %v1815 = vld [vmem:[%s326 + $0xf0] sm:$0xff]
      %v1816 = vld [vmem:[%s326 + $0xf8] sm:$0xff]
      %v1817 = vld [vmem:[%s326 + $0x100] sm:$0xff]
      %v1818 = vld [vmem:[%s326 + $0x108] sm:$0xff]
      %v1819 = vld [vmem:[%s326 + $0x110] sm:$0xff]
      %v1820 = vld [vmem:[%s326 + $0x118] sm:$0xff]
      %v1821 = vld [vmem:[%s326 + $0x120] sm:$0xff]
      %v1822 = vld [vmem:[%s326 + $0x128] sm:$0xff]
      %v1823 = vld [vmem:[%s326 + $0x130] sm:$0xff]
      %v1824 = vld [vmem:[%s326 + $0x138] sm:$0xff]
      %v1825 = vld [vmem:[%s326 + $0x140] sm:$0xff]
      %v1826 = vld [vmem:[%s326 + $0x148] sm:$0xff]
      %v1827 = vld [vmem:[%s326 + $0x150] sm:$0xff]
      %v1828 = vld [vmem:[%s326 + $0x158] sm:$0xff]
      %v1829 = vld [vmem:[%s326 + $0x160] sm:$0xff]
      %v1830 = vld [vmem:[%s326 + $0x168] sm:$0xff]
      %v1831 = vld [vmem:[%s326 + $0x170] sm:$0xff]
      %v1832 = vld [vmem:[%s326 + $0x178] sm:$0xff]
      %v1833 = vld [vmem:[%s334] sm:$0x7]
      %v1835 = vperm.slane %v1833, 0
      %v1836 = vperm.slane %v1833, 1
      %v1837 = vperm.slane %v1833, 2
      %1841 = vmatpush.msra.mxu0 %v1830
      %1842 = vmatpush.msra.mxu0 %v1827
      %1843 = vmatpush.msra.mxu0 %v1824
      %1844 = vmatpush.msra.mxu0 %v1821
      %1845 = vmatpush.msra.mxu0 %v1818
      %1846 = vmatpush.msra.mxu0 %v1815
      %1847 = vmatpush.msra.mxu0 %v1812
      %1848 = vmatpush.msra.mxu0 %v1809
      %1849 = vmatpush.msra.mxu0 %v1806
      %1850 = vmatpush.msra.mxu0 %v1803
      %1851 = vmatpush.msra.mxu0 %v1800
      %1852 = vmatpush.msra.mxu0 %v1797
      %1853 = vmatpush.msra.mxu0 %v1794
      %1854 = vmatpush.msra.mxu0 %v1791
      %1855 = vmatpush.msra.mxu0 %v1788
      %1856 = vmatpush.msra.mxu0 %v1785
      %1857 = vmatmul.f32.gmra.mxu0 %v1784
      %v1858 = vpop.f32.mrf.mxu0
      %v1859 = vadd.f32 %v1835, %v1858
      %1860 = vdwg.mxu0
      %1861 = vmatpush.msra.mxu0 %v1831
      %1862 = vmatpush.msra.mxu0 %v1828
      %1863 = vmatpush.msra.mxu0 %v1825
      %1864 = vmatpush.msra.mxu0 %v1822
      %1865 = vmatpush.msra.mxu0 %v1819
      %1866 = vmatpush.msra.mxu0 %v1816
      %1867 = vmatpush.msra.mxu0 %v1813
      %1868 = vmatpush.msra.mxu0 %v1810
      %1869 = vmatpush.msra.mxu0 %v1807
      %1870 = vmatpush.msra.mxu0 %v1804
      %1871 = vmatpush.msra.mxu0 %v1801
      %1872 = vmatpush.msra.mxu0 %v1798
      %1873 = vmatpush.msra.mxu0 %v1795
      %1874 = vmatpush.msra.mxu0 %v1792
      %1875 = vmatpush.msra.mxu0 %v1789
      %1876 = vmatpush.msra.mxu0 %v1786
      %1877 = vmatmul.f32.gmra.mxu0 %v1784
      %v1878 = vpop.f32.mrf.mxu0
      %v1879 = vadd.f32 %v1836, %v1878
      %1880 = vdwg.mxu0
      %1881 = vmatpush.msra.mxu0 %v1832
      %1882 = vmatpush.msra.mxu0 %v1829
      %1883 = vmatpush.msra.mxu0 %v1826
      %1884 = vmatpush.msra.mxu0 %v1823
      %1885 = vmatpush.msra.mxu0 %v1820
      %1886 = vmatpush.msra.mxu0 %v1817
      %1887 = vmatpush.msra.mxu0 %v1814
      %1888 = vmatpush.msra.mxu0 %v1811
      %1889 = vmatpush.msra.mxu0 %v1808
      %1890 = vmatpush.msra.mxu0 %v1805
      %1891 = vmatpush.msra.mxu0 %v1802
      %1892 = vmatpush.msra.mxu0 %v1799
      %1893 = vmatpush.msra.mxu0 %v1796
      %1894 = vmatpush.msra.mxu0 %v1793
      %1895 = vmatpush.msra.mxu0 %v1790
      %1896 = vmatpush.msra.mxu0 %v1787
      %1897 = vmatmul.f32.gmra.mxu0 %v1784
      %v1898 = vpop.f32.mrf.mxu0
      %v1899 = vadd.f32 %v1837, %v1898
      %1900 = vdwg.mxu0
      %v1901 = vadd.f32 %v1781, %v1859
      %v1902 = vxor.u32 %v1901, 2147483648
      %v1903 = vmul.f32 %v1902, 1.442695
      %v1904 = vpow.pop %v1903
      %v1905 = vadd.f32 %v1904, 1.0
      %v1906 = vrcp.pop %v1905
      %v1907 = vmul.f32 %v1905, %v1906
      %v1908 = vsub.f32 1.0, %v1907
      %v1909 = vmul.f32 %v1906, %v1908
      %v1910 = vadd.f32 %v1906, %v1909
      %vm1911 = vweird.f32 %v1905
      %vm1912 = vweird.f32 %v1906
      %vm1913 = vmor %vm1911, %vm1912
      %v1914 = vsel %vm1913, %v1906, %v1910
      %v1915 = vand.u32 2147483647, %v1905
      %vm1916 = vcmp.eq.f32.partialorder %v1915, 8.507059e+37
      %v1917 = vand.u32 %v1905, 2147483648
      %v1918 = vor.u32 1.1754944e-38, %v1917
      %v1919 = vsel %vm1916, %v1918, %v1914
      %v1920 = vmul.f32 1.0, %v1919
      %v1921 = vadd.f32 %v1782, %v1879
      %v1922 = vxor.u32 %v1921, 2147483648
      %v1923 = vmul.f32 %v1922, 1.442695
      %v1924 = vpow.pop %v1923
      %v1925 = vadd.f32 %v1924, 1.0
      %v1926 = vrcp.pop %v1925
      %v1927 = vmul.f32 %v1925, %v1926
      %v1928 = vsub.f32 1.0, %v1927
      %v1929 = vmul.f32 %v1926, %v1928
      %v1930 = vadd.f32 %v1926, %v1929
      %vm1931 = vweird.f32 %v1925
      %vm1932 = vweird.f32 %v1926
      %vm1933 = vmor %vm1931, %vm1932
      %v1934 = vsel %vm1933, %v1926, %v1930
      %v1935 = vand.u32 2147483647, %v1925
      %vm1936 = vcmp.eq.f32.partialorder %v1935, 8.507059e+37
      %v1937 = vand.u32 %v1925, 2147483648
      %v1938 = vor.u32 1.1754944e-38, %v1937
      %v1939 = vsel %vm1936, %v1938, %v1934
      %v1940 = vmul.f32 1.0, %v1939
      %v1941 = vmul.f32 %v1920, %v1899
      %v1942 = vadd.f32 %v1783, %v1941
      %v1943 = vtanh.pop %v1942
      %v1944 = vsub.f32 1.0, %v1940
      %v1945 = vmul.f32 %v1944, %v1943
      %v1946 = vmul.f32 %v1940, %v1784
      %v1947 = vadd.f32 %v1945, %v1946
      %1948 = vst [vmem:[#allocation4] sm:$0xff] %v1947
      %s1949 = scalar_lea.vmem [#allocation2], 56
      %1950 = vst [vmem:[%s1949] sm:$0xff] %v1947
      %p1951 = scmp.eq.s32.totalorder %s18, 1
      // Predicated region
      $region53: #{decoder_forward.2} parent=47 // pred_check
        %p1952 = pneg %p1951
      $region54: #{decoder_forward.2} parent=47 // pred_check_branch
        %1954 = sbr.rel (%p1952) target = $region56
      $region55: #{decoder_forward.2} parent=47 // pred_region
        %v1955 = vld [vmem:[#allocation2] sm:$0xff]
        %v1956 = vld [vmem:[#allocation2 + $0x8] sm:$0xff]
        %v1957 = vld [vmem:[#allocation2 + $0x10] sm:$0xff]
        %v1958 = vld [vmem:[#allocation2 + $0x18] sm:$0xff]
        %v1959 = vld [vmem:[#allocation2 + $0x20] sm:$0xff]
        %v1960 = vld [vmem:[#allocation2 + $0x28] sm:$0xff]
        %v1961 = vld [vmem:[#allocation2 + $0x30] sm:$0xff]
        %v1962 = vld [vmem:[#allocation2 + $0x38] sm:$0xff]
        %v1963 = vld [vmem:[%s2] sm:$0xff]
        %v1964 = vld [vmem:[%s2 + $0x8] sm:$0xff]
        %v1965 = vld [vmem:[%s2 + $0x10] sm:$0xff]
        %v1966 = vld [vmem:[%s2 + $0x18] sm:$0xff]
        %v1967 = vld [vmem:[%s2 + $0x20] sm:$0xff]
        %v1968 = vld [vmem:[%s2 + $0x28] sm:$0xff]
        %v1969 = vld [vmem:[%s2 + $0x30] sm:$0xff]
        %v1970 = vld [vmem:[%s2 + $0x38] sm:$0xff]
        %1972 = vset.pattern.permute.xlu0 0
        %1973 = vperm.xlu0 %1972, %v1963
        %v1974 = vpop.permute.xlu0 %1973
        %1977 = vset.pattern.permute.xlu0 0
        %1978 = vperm.xlu0 %1977, %v1964
        %v1979 = vpop.permute.xlu0 %1978
        %1982 = vset.pattern.permute.xlu0 0
        %1983 = vperm.xlu0 %1982, %v1965
        %v1984 = vpop.permute.xlu0 %1983
        %1987 = vset.pattern.permute.xlu0 0
        %1988 = vperm.xlu0 %1987, %v1966
        %v1989 = vpop.permute.xlu0 %1988
        %1992 = vset.pattern.permute.xlu0 0
        %1993 = vperm.xlu0 %1992, %v1967
        %v1994 = vpop.permute.xlu0 %1993
        %1997 = vset.pattern.permute.xlu0 0
        %1998 = vperm.xlu0 %1997, %v1968
        %v1999 = vpop.permute.xlu0 %1998
        %2002 = vset.pattern.permute.xlu0 0
        %2003 = vperm.xlu0 %2002, %v1969
        %v2004 = vpop.permute.xlu0 %2003
        %2007 = vset.pattern.permute.xlu0 0
        %2008 = vperm.xlu0 %2007, %v1970
        %v2009 = vpop.permute.xlu0 %2008
        %v2011 = vmul.f32 %v1955, %v1974
        %v2012 = vmul.f32 %v1956, %v1979
        %v2013 = vmul.f32 %v1957, %v1984
        %v2014 = vmul.f32 %v1958, %v1989
        %v2015 = vmul.f32 %v1959, %v1994
        %v2016 = vmul.f32 %v1960, %v1999
        %v2017 = vmul.f32 %v1961, %v2004
        %v2018 = vmul.f32 %v1962, %v2009
        %2019 = vst [vmem:[%s7] sm:$0xff] %v2011
        %2020 = vst [vmem:[%s7 + $0x8] sm:$0xff] %v2012
        %2021 = vst [vmem:[%s7 + $0x10] sm:$0xff] %v2013
        %2022 = vst [vmem:[%s7 + $0x18] sm:$0xff] %v2014
        %2023 = vst [vmem:[%s7 + $0x20] sm:$0xff] %v2015
        %2024 = vst [vmem:[%s7 + $0x28] sm:$0xff] %v2016
        %2025 = vst [vmem:[%s7 + $0x30] sm:$0xff] %v2017
        %2026 = vst [vmem:[%s7 + $0x38] sm:$0xff] %v2018
      $region56: #{decoder_forward.2} parent=47 // pred_fallthru
        _
      // Predicated region
      $region57: #{decoder_forward.2} parent=47 // pred_check
        %p2027 = pneg %p203
      $region58: #{decoder_forward.2} parent=47 // pred_check_branch
        %2029 = sbr.rel (%p2027) target = $region60
      $region59: #{decoder_forward.2} parent=47 // pred_region
        _
      $region60: #{decoder_forward.2} parent=47 // pred_fallthru
        _
      // Predicated region
      $region61: #{decoder_forward.2} parent=47 // pred_check
        %p2030 = pneg %p203
      $region62: #{decoder_forward.2} parent=47 // pred_check_branch
        %2032 = sbr.rel (%p2030) target = $region64
      $region63: #{decoder_forward.2} parent=47 // pred_region
        _
      $region64: #{decoder_forward.2} parent=47 // pred_fallthru
        _
    $region48: #{decoder_forward.2} parent=5 // pred_fallthru
      _
    %p2033 = scmp.le.s32.totalorder 2, %s13
    // Predicated region
    $region65: #{decoder_forward.2} parent=5 // pred_check
      %p2034 = pneg %p2033
    $region66: #{decoder_forward.2} parent=5 // pred_check_branch
      %2036 = sbr.rel (%p2034) target = $region68
    $region67: #{decoder_forward.2} parent=5 // pred_region
      %s2037 = ssub.s32 %s13, 2
    $region68: #{decoder_forward.2} parent=5 // pred_fallthru
      _
  $region6: #{decoder_forward.2} parent=0 // loop_footer
    %s17 = sadd.s32 1, %s13
  $region7: #{decoder_forward.2} parent=0 // loop_footer_branch
    %12 = sbr.rel target = $region3
  $region8: #{decoder_forward.2} parent=0 // loop_exit
    _

</llo_original>
